<compile_context>
chip_gen: v7x
topology: tpu7x:2x2x1
jax: 0.10.0
libtpu: 0.0.40
codegen_flags: <defaults>
</compile_context>

<pallas_src>
import jax
import jax.numpy as jnp
from jax import lax
from jax.experimental import pallas as pl
from jax.experimental.pallas import tpu as pltpu

_BN_EPS = 1e-5


# --------------------------------------------------------------------------
# helpers
# --------------------------------------------------------------------------
def _fold_bn(gamma, beta, mean, var, eps=_BN_EPS):
    scale = gamma / jnp.sqrt(var + eps)
    bias = beta - mean * scale
    return scale, bias


def _vmem_limit_bytes():
    """75% of this generation's VMEM; safe fallback if the query fails."""
    try:
        cap = pltpu.get_tpu_info().vmem_capacity_bytes
        if cap:
            return int(cap * 3 // 4)
    except Exception:
        pass
    return 48 * 1024 * 1024


# --------------------------------------------------------------------------
# Fused kernel:  BN1+ReLU -> conv1(3x3,s2 via s2d+2x2,s1) -> BN2+ReLU+concat
#                -> conv2(3x3,s1).   One grid step == one batch element.
# --------------------------------------------------------------------------
def _conv2x_fused_kernel(x_ref, rem_ref, w1_ref, w2_ref,
                         s1_ref, b1_ref, s2a_ref, b2a_ref, s2b_ref, b2b_ref,
                         o_ref, pad1_ref, pad2_ref):
    # x_ref:    (Ho, Wo, 4*Cin)  f32   space-to-depth input (batch squeezed)
    # rem_ref:  (Ho, Wo, Cout)   f32
    # w1_ref:   (4, 4*Cin, Cout) bf16  (2x2 taps of the s2d-rewritten conv1)
    # w2_ref:   (9, 2*Cout, Cout) bf16 (3x3 taps, concat halves merged on K)
    # s*/b*:    (1, 1, C)        f32   folded BN scale / bias
    # o_ref:    (Ho, Wo, Cout)   f32
    # pad1_ref: VMEM (Ho+1, Wo+1, 4*Cin)  bf16 scratch (pad top/left only)
    # pad2_ref: VMEM (Ho+2, Wo+2, 2*Cout) bf16 scratch (pad 1 all around)
    ho, wo, c4 = x_ref.shape
    co = o_ref.shape[-1]
    c2 = pad2_ref.shape[-1]

    # Clear padded scratches every step (cheap; keeps halo zeros valid and is
    # safe regardless of how "parallel" grid steps are sharded across cores).
    pad1_ref[...] = jnp.zeros_like(pad1_ref)
    pad2_ref[...] = jnp.zeros_like(pad2_ref)

    # ---- stage 1: BN1 + ReLU in f32 (VPU), cast to bf16, padded scratch ----
    act1 = jnp.maximum(x_ref[...] * s1_ref[...] + b1_ref[...], 0.0)
    pad1_ref[1:1 + ho, 1:1 + wo, :] = act1.astype(pad1_ref.dtype)

    # ---- stage 1 conv: 2x2/stride-1 taps on s2d input, MXU bf16 x bf16 ----
    acc1 = jnp.zeros((ho * wo, co), jnp.float32)
    for t in range(4):                                  # unrolled taps
        ty, tx = divmod(t, 2)
        win = pad1_ref[ty:ty + ho, tx:tx + wo, :].reshape(ho * wo, c4)
        acc1 = acc1 + jnp.dot(win, w1_ref[t],
                              preferred_element_type=jnp.float32)
    y = acc1.reshape(ho, wo, co)                        # conv1 output, f32

    # ---- stage 2: BN2 + ReLU (f32) on [y | rem], fused concat -> scratch ---
    act2a = jnp.maximum(y * s2a_ref[...] + b2a_ref[...], 0.0)
    act2b = jnp.maximum(rem_ref[...] * s2b_ref[...] + b2b_ref[...], 0.0)
    cat = jnp.concatenate([act2a, act2b], axis=-1).astype(pad2_ref.dtype)
    pad2_ref[1:1 + ho, 1:1 + wo, :] = cat

    # ---- stage 2 conv: 3x3/stride-1 taps, one merged dot per tap ----------
    acc2 = jnp.zeros((ho * wo, co), jnp.float32)
    for t in range(9):                                  # unrolled taps
        ky, kx = divmod(t, 3)
        win = pad2_ref[ky:ky + ho, kx:kx + wo, :].reshape(ho * wo, c2)
        acc2 = acc2 + jnp.dot(win, w2_ref[t],
                              preferred_element_type=jnp.float32)
    o_ref[...] = acc2.reshape(ho, wo, co).astype(o_ref.dtype)


# --------------------------------------------------------------------------
# Conv2x forward (NCHW in / NCHW out, matching the PyTorch module)
# --------------------------------------------------------------------------
def conv2x_forward(x, rem, params):
    b, cin, h, w = x.shape
    cout = params["w1"].shape[0]
    assert h % 2 == 0 and w % 2 == 0, "H and W must be even for stride-2 conv"
    ho, wo = h // 2, w // 2
    assert rem.shape == (b, cout, ho, wo), "rem must match conv1's output"
    c4 = 4 * cin
    c2 = 2 * cout

    # NCHW -> NHWC + space-to-depth folded into a single transpose:
    # channel order of the s2d axis is (row-parity p, col-parity q, cin).
    x_s2d = (x.astype(jnp.float32)
             .reshape(b, cin, ho, 2, wo, 2)
             .transpose(0, 2, 4, 3, 5, 1)               # (B,Ho,Wo,p,q,Cin)
             .reshape(b, ho, wo, c4))
    rem_nhwc = jnp.transpose(rem, (0, 2, 3, 1)).astype(jnp.float32)

    # Folded BN (inference form).
    g1, be1, m1, v1 = params["bn1"]
    s1, o1 = _fold_bn(g1, be1, m1, v1)
    s1_4 = jnp.tile(s1, 4).reshape(1, 1, c4)            # (p,q,c): scale dep. on c
    o1_4 = jnp.tile(o1, 4).reshape(1, 1, c4)
    g2, be2, m2, v2 = params["bn2"]
    s2, o2 = _fold_bn(g2, be2, m2, v2)
    s2a = s2[:cout].reshape(1, 1, cout)
    o2a = o2[:cout].reshape(1, 1, cout)
    s2b = s2[cout:].reshape(1, 1, cout)
    o2b = o2[cout:].reshape(1, 1, cout)

    # conv1 weight repack: OIHW -> HWIO -> pad top/left -> 2x2 s2d taps, bf16.
    w1_hwio = jnp.transpose(params["w1"], (2, 3, 1, 0))          # (3,3,Ci,Co)
    k4 = jnp.pad(w1_hwio, ((1, 0), (1, 0), (0, 0), (0, 0)))      # (4,4,Ci,Co)
    w1p = (k4.reshape(2, 2, 2, 2, cin, cout)                     # (ty,p,tx,q,Ci,Co)
           .transpose(0, 2, 1, 3, 4, 5)                          # (ty,tx,p,q,Ci,Co)
           .reshape(4, c4, cout)).astype(jnp.bfloat16)

    # conv2 weight: OIHW -> HWIO -> (9, 2*Cout, Cout), bf16 (concat merged).
    w2p = (jnp.transpose(params["w2"], (2, 3, 1, 0))
           .reshape(9, c2, cout)).astype(jnp.bfloat16)

    flops = 2 * b * ho * wo * (4 * c4 * cout + 9 * c2 * cout)
    bytes_accessed = (4 * (x_s2d.size + rem_nhwc.size + b * ho * wo * cout)
                      + 2 * (w1p.size + w2p.size)
                      + 4 * (s1_4.size + o1_4.size + 4 * cout))

    out = pl.pallas_call(
        _conv2x_fused_kernel,
        out_shape=jax.ShapeDtypeStruct((b, ho, wo, cout), jnp.float32),
        grid_spec=pltpu.PrefetchScalarGridSpec(
            num_scalar_prefetch=0,
            grid=(b,),
            in_specs=[
                pl.BlockSpec((pl.Squeezed(), ho, wo, c4),
                             lambda i: (i, 0, 0, 0)),
                pl.BlockSpec((pl.Squeezed(), ho, wo, cout),
                             lambda i: (i, 0, 0, 0)),
                pl.BlockSpec((4, c4, cout), lambda i: (0, 0, 0)),
                pl.BlockSpec((9, c2, cout), lambda i: (0, 0, 0)),
                pl.BlockSpec((1, 1, c4), lambda i: (0, 0, 0)),
                pl.BlockSpec((1, 1, c4), lambda i: (0, 0, 0)),
                pl.BlockSpec((1, 1, cout), lambda i: (0, 0, 0)),
                pl.BlockSpec((1, 1, cout), lambda i: (0, 0, 0)),
                pl.BlockSpec((1, 1, cout), lambda i: (0, 0, 0)),
                pl.BlockSpec((1, 1, cout), lambda i: (0, 0, 0)),
            ],
            out_specs=pl.BlockSpec((pl.Squeezed(), ho, wo, cout),
                                   lambda i: (i, 0, 0, 0)),
            scratch_shapes=[
                pltpu.VMEM((ho + 1, wo + 1, c4), jnp.bfloat16),
                pltpu.VMEM((ho + 2, wo + 2, c2), jnp.bfloat16),
            ],
        ),
        compiler_params=pltpu.CompilerParams(
            dimension_semantics=("parallel",),
            vmem_limit_bytes=_vmem_limit_bytes(),
        ),
        cost_estimate=pl.CostEstimate(flops=int(flops), transcendentals=0,
                                      bytes_accessed=int(bytes_accessed)),
    )(x_s2d, rem_nhwc, w1p, w2p, s1_4, o1_4, s2a, o2a, s2b, o2b)

    return jnp.transpose(out, (0, 3, 1, 2))              # back to NCHW


# --------------------------------------------------------------------------
# pure-JAX references
#   operand_dtype=bf16 mirrors the kernel's numerics (bf16 operands, f32 acc)
#   operand_dtype=f32 is the full-precision PyTorch semantics.
# --------------------------------------------------------------------------
def conv2x_reference(x, rem, params, operand_dtype=jnp.float32):
    g1, be1, m1, v1 = params["bn1"]
    s1, o1 = _fold_bn(g1, be1, m1, v1)
    a1 = jnp.maximum(x * s1.reshape(1, -1, 1, 1) + o1.reshape(1, -1, 1, 1), 0.0)
    y = lax.conv_general_dilated(
        a1.astype(operand_dtype), params["w1"].astype(operand_dtype),
        window_strides=(2, 2), padding=((1, 1), (1, 1)),
        dimension_numbers=("NCHW", "OIHW", "NCHW"),
        preferred_element_type=jnp.float32)
    cat = jnp.concatenate([y, rem], axis=1)
    g2, be2, m2, v2 = params["bn2"]
    s2, o2 = _fold_bn(g2, be2, m2, v2)
    a2 = jnp.maximum(cat * s2.reshape(1, -1, 1, 1) + o2.reshape(1, -1, 1, 1), 0.0)
    out = lax.conv_general_dilated(
        a2.astype(operand_dtype), params["w2"].astype(operand_dtype),
        window_strides=(1, 1), padding=((1, 1), (1, 1)),
        dimension_numbers=("NCHW", "OIHW", "NCHW"),
        preferred_element_type=jnp.float32)
    return out


if __name__ == "__main__":
    key = jax.random.PRNGKey(0)
    B, Cin, Cout, H, W = 2, 8, 16, 16, 16
    Ho, Wo = H // 2, W // 2
    ks = jax.random.split(key, 12)

    x = jax.random.normal(ks[0], (B, Cin, H, W), dtype=jnp.float32)
    rem = jax.random.normal(ks[1], (B, Cout, Ho, Wo), dtype=jnp.float32)
    w1 = 0.1 * jax.random.normal(ks[2], (Cout, Cin, 3, 3), dtype=jnp.float32)
    w2 = 0.1 * jax.random.normal(ks[3], (Cout, 2 * Cout, 3, 3), dtype=jnp.float32)
    bn1 = (1.0 + 0.1 * jax.random.normal(ks[4], (Cin,), dtype=jnp.float32),
           0.1 * jax.random.normal(ks[5], (Cin,), dtype=jnp.float32),
           0.1 * jax.random.normal(ks[6], (Cin,), dtype=jnp.float32),
           0.5 + jax.random.uniform(ks[7], (Cin,), dtype=jnp.float32))
    bn2 = (1.0 + 0.1 * jax.random.normal(ks[8], (2 * Cout,), dtype=jnp.float32),
           0.1 * jax.random.normal(ks[9], (2 * Cout,), dtype=jnp.float32),
           0.1 * jax.random.normal(ks[10], (2 * Cout,), dtype=jnp.float32),
           0.5 + jax.random.uniform(ks[11], (2 * Cout,), dtype=jnp.float32))
    params = {"w1": w1, "w2": w2, "bn1": bn1, "bn2": bn2}

    out = conv2x_forward(x, rem, params)
    out = jax.block_until_ready(out)
    assert out.shape == (B, Cout, Ho, Wo)

    # Exact-semantics check: reference with the same bf16-operand / f32-accum
    # numerics as the kernel (only accumulation order differs).
    ref_bf16 = conv2x_reference(x, rem, params, operand_dtype=jnp.bfloat16)
    assert jnp.allclose(out, ref_bf16, atol=2e-3, rtol=2e-3), \
        float(jnp.max(jnp.abs(out - ref_bf16)))

    # Sanity check against the full-f32 PyTorch semantics (loose tolerance
    # accounts for the intentional bf16 operand rounding).
    ref_f32 = conv2x_reference(x, rem, params, operand_dtype=jnp.float32)
    assert jnp.allclose(out, ref_f32, atol=1.5e-1, rtol=1.5e-1), \
        float(jnp.max(jnp.abs(out - ref_f32)))

    print("KERNEL_OK")
</pallas_src>

<mosaic_0001>
module attributes {stable_mosaic.version = 11 : i64} {
  func.func @_conv2x_fused_kernel(%arg0: i32, %arg1: memref<1x8x8x32xf32, #tpu.memory_space<vmem>>, %arg2: memref<1x8x8x16xf32, #tpu.memory_space<vmem>>, %arg3: memref<4x32x16xbf16, #tpu.memory_space<vmem>>, %arg4: memref<9x32x16xbf16, #tpu.memory_space<vmem>>, %arg5: memref<1x1x32xf32, #tpu.memory_space<vmem>>, %arg6: memref<1x1x32xf32, #tpu.memory_space<vmem>>, %arg7: memref<1x1x16xf32, #tpu.memory_space<vmem>>, %arg8: memref<1x1x16xf32, #tpu.memory_space<vmem>>, %arg9: memref<1x1x16xf32, #tpu.memory_space<vmem>>, %arg10: memref<1x1x16xf32, #tpu.memory_space<vmem>>, %arg11: memref<1x8x8x16xf32, #tpu.memory_space<vmem>>, %arg12: memref<9x9x32xbf16, #tpu.memory_space<vmem>>, %arg13: memref<10x10x32xbf16, #tpu.memory_space<vmem>>) attributes {dimension_semantics = [#tpu.dimension_semantics<parallel>], iteration_bounds = array<i64: 2>, scalar_prefetch = 0 : i64, scratch_operands = 2 : i64, tpu.core_type = #tpu.core_type<tc>, window_params = [{transform_indices = @transform_0, window_bounds = array<i64: 1, 8, 8, 32>}, {transform_indices = @transform_1, window_bounds = array<i64: 1, 8, 8, 16>}, {pipeline_mode = #tpu.pipeline_mode<synchronous>, transform_indices = @transform_2, window_bounds = array<i64: 4, 32, 16>}, {pipeline_mode = #tpu.pipeline_mode<synchronous>, transform_indices = @transform_3, window_bounds = array<i64: 9, 32, 16>}, {pipeline_mode = #tpu.pipeline_mode<synchronous>, transform_indices = @transform_4, window_bounds = array<i64: 1, 1, 32>}, {pipeline_mode = #tpu.pipeline_mode<synchronous>, transform_indices = @transform_5, window_bounds = array<i64: 1, 1, 32>}, {pipeline_mode = #tpu.pipeline_mode<synchronous>, transform_indices = @transform_6, window_bounds = array<i64: 1, 1, 16>}, {pipeline_mode = #tpu.pipeline_mode<synchronous>, transform_indices = @transform_7, window_bounds = array<i64: 1, 1, 16>}, {pipeline_mode = #tpu.pipeline_mode<synchronous>, transform_indices = @transform_8, window_bounds = array<i64: 1, 1, 16>}, {pipeline_mode = #tpu.pipeline_mode<synchronous>, transform_indices = @transform_9, window_bounds = array<i64: 1, 1, 16>}, {transform_indices = @transform_10, window_bounds = array<i64: 1, 8, 8, 16>}]} {
    %cst = arith.constant 0.000000e+00 : bf16
    %0 = vector.broadcast %cst : bf16 to vector<9x9x32xbf16>
    %c0 = arith.constant 0 : index
    %c0_0 = arith.constant 0 : index
    %c0_1 = arith.constant 0 : index
    %1 = vector.load %arg12[%c0, %c0_0, %c0_1] : memref<9x9x32xbf16, #tpu.memory_space<vmem>>, vector<9x9x32xbf16>
    tpu.vector_store %arg12[%c0, %c0_0, %c0_1], %0 {strides = array<i32>} : memref<9x9x32xbf16, #tpu.memory_space<vmem>>, vector<9x9x32xbf16>,
    %cst_2 = arith.constant 0.000000e+00 : bf16
    %2 = vector.broadcast %cst_2 : bf16 to vector<10x10x32xbf16>
    %c0_3 = arith.constant 0 : index
    %c0_4 = arith.constant 0 : index
    %c0_5 = arith.constant 0 : index
    %3 = vector.load %arg13[%c0_3, %c0_4, %c0_5] : memref<10x10x32xbf16, #tpu.memory_space<vmem>>, vector<10x10x32xbf16>
    tpu.vector_store %arg13[%c0_3, %c0_4, %c0_5], %2 {strides = array<i32>} : memref<10x10x32xbf16, #tpu.memory_space<vmem>>, vector<10x10x32xbf16>,
    %c0_6 = arith.constant 0 : index
    %c0_7 = arith.constant 0 : index
    %c0_8 = arith.constant 0 : index
    %c0_9 = arith.constant 0 : index
    %4 = vector.load %arg1[%c0_6, %c0_7, %c0_8, %c0_9] : memref<1x8x8x32xf32, #tpu.memory_space<vmem>>, vector<1x8x8x32xf32>
    %5 = vector.shape_cast %4 : vector<1x8x8x32xf32> to vector<8x8x32xf32>
    %c0_10 = arith.constant 0 : index
    %c0_11 = arith.constant 0 : index
    %c0_12 = arith.constant 0 : index
    %6 = vector.load %arg5[%c0_10, %c0_11, %c0_12] : memref<1x1x32xf32, #tpu.memory_space<vmem>>, vector<1x1x32xf32>
    %7 = vector.broadcast %6 : vector<1x1x32xf32> to vector<8x8x32xf32>
    %8 = arith.mulf %5, %7 : vector<8x8x32xf32>
    %c0_13 = arith.constant 0 : index
    %c0_14 = arith.constant 0 : index
    %c0_15 = arith.constant 0 : index
    %9 = vector.load %arg6[%c0_13, %c0_14, %c0_15] : memref<1x1x32xf32, #tpu.memory_space<vmem>>, vector<1x1x32xf32>
    %10 = vector.broadcast %9 : vector<1x1x32xf32> to vector<8x8x32xf32>
    %11 = arith.addf %8, %10 : vector<8x8x32xf32>
    %cst_16 = arith.constant 0.000000e+00 : f32
    %12 = vector.broadcast %cst_16 : f32 to vector<8x8x32xf32>
    %13 = arith.maximumf %11, %12 : vector<8x8x32xf32>
    %14 = arith.truncf %13 : vector<8x8x32xf32> to vector<8x8x32xbf16>
    %c1 = arith.constant 1 : index
    %c1_17 = arith.constant 1 : index
    %c0_18 = arith.constant 0 : index
    %15 = vector.load %arg12[%c1, %c1_17, %c0_18] : memref<9x9x32xbf16, #tpu.memory_space<vmem>>, vector<8x8x32xbf16>
    tpu.vector_store %arg12[%c1, %c1_17, %c0_18], %14 {strides = array<i32>} : memref<9x9x32xbf16, #tpu.memory_space<vmem>>, vector<8x8x32xbf16>,
    %cst_19 = arith.constant 0.000000e+00 : f32
    %16 = vector.broadcast %cst_19 : f32 to vector<64x16xf32>
    %c0_20 = arith.constant 0 : index
    %c0_21 = arith.constant 0 : index
    %c0_22 = arith.constant 0 : index
    %17 = vector.load %arg12[%c0_20, %c0_21, %c0_22] : memref<9x9x32xbf16, #tpu.memory_space<vmem>>, vector<8x8x32xbf16>
    %18 = vector.shape_cast %17 : vector<8x8x32xbf16> to vector<64x32xbf16>
    %c0_23 = arith.constant 0 : index
    %c0_24 = arith.constant 0 : index
    %c0_25 = arith.constant 0 : index
    %19 = vector.load %arg3[%c0_23, %c0_24, %c0_25] : memref<4x32x16xbf16, #tpu.memory_space<vmem>>, vector<1x32x16xbf16>
    %20 = vector.shape_cast %19 : vector<1x32x16xbf16> to vector<32x16xbf16>
    %cst_26 = arith.constant dense<0.000000e+00> : vector<64x16xf32>
    %21 = tpu.matmul %18, %20, %cst_26 {dimension_numbers = #tpu.dot_dimension_numbers<[1], [0], [0], [1], [0, 0, 1, 1], [], []>} : vector<64x32xbf16>, vector<32x16xbf16>, vector<64x16xf32> -> vector<64x16xf32>
    %22 = arith.addf %16, %21 : vector<64x16xf32>
    %c0_27 = arith.constant 0 : index
    %c1_28 = arith.constant 1 : index
    %c0_29 = arith.constant 0 : index
    %23 = vector.load %arg12[%c0_27, %c1_28, %c0_29] : memref<9x9x32xbf16, #tpu.memory_space<vmem>>, vector<8x8x32xbf16>
    %24 = vector.shape_cast %23 : vector<8x8x32xbf16> to vector<64x32xbf16>
    %c1_30 = arith.constant 1 : index
    %c0_31 = arith.constant 0 : index
    %c0_32 = arith.constant 0 : index
    %25 = vector.load %arg3[%c1_30, %c0_31, %c0_32] : memref<4x32x16xbf16, #tpu.memory_space<vmem>>, vector<1x32x16xbf16>
    %26 = vector.shape_cast %25 : vector<1x32x16xbf16> to vector<32x16xbf16>
    %cst_33 = arith.constant dense<0.000000e+00> : vector<64x16xf32>
    %27 = tpu.matmul %24, %26, %cst_33 {dimension_numbers = #tpu.dot_dimension_numbers<[1], [0], [0], [1], [0, 0, 1, 1], [], []>} : vector<64x32xbf16>, vector<32x16xbf16>, vector<64x16xf32> -> vector<64x16xf32>
    %28 = arith.addf %22, %27 : vector<64x16xf32>
    %c1_34 = arith.constant 1 : index
    %c0_35 = arith.constant 0 : index
    %c0_36 = arith.constant 0 : index
    %29 = vector.load %arg12[%c1_34, %c0_35, %c0_36] : memref<9x9x32xbf16, #tpu.memory_space<vmem>>, vector<8x8x32xbf16>
    %30 = vector.shape_cast %29 : vector<8x8x32xbf16> to vector<64x32xbf16>
    %c2 = arith.constant 2 : index
    %c0_37 = arith.constant 0 : index
    %c0_38 = arith.constant 0 : index
    %31 = vector.load %arg3[%c2, %c0_37, %c0_38] : memref<4x32x16xbf16, #tpu.memory_space<vmem>>, vector<1x32x16xbf16>
    %32 = vector.shape_cast %31 : vector<1x32x16xbf16> to vector<32x16xbf16>
    %cst_39 = arith.constant dense<0.000000e+00> : vector<64x16xf32>
    %33 = tpu.matmul %30, %32, %cst_39 {dimension_numbers = #tpu.dot_dimension_numbers<[1], [0], [0], [1], [0, 0, 1, 1], [], []>} : vector<64x32xbf16>, vector<32x16xbf16>, vector<64x16xf32> -> vector<64x16xf32>
    %34 = arith.addf %28, %33 : vector<64x16xf32>
    %c1_40 = arith.constant 1 : index
    %c1_41 = arith.constant 1 : index
    %c0_42 = arith.constant 0 : index
    %35 = vector.load %arg12[%c1_40, %c1_41, %c0_42] : memref<9x9x32xbf16, #tpu.memory_space<vmem>>, vector<8x8x32xbf16>
    %36 = vector.shape_cast %35 : vector<8x8x32xbf16> to vector<64x32xbf16>
    %c3 = arith.constant 3 : index
    %c0_43 = arith.constant 0 : index
    %c0_44 = arith.constant 0 : index
    %37 = vector.load %arg3[%c3, %c0_43, %c0_44] : memref<4x32x16xbf16, #tpu.memory_space<vmem>>, vector<1x32x16xbf16>
    %38 = vector.shape_cast %37 : vector<1x32x16xbf16> to vector<32x16xbf16>
    %cst_45 = arith.constant dense<0.000000e+00> : vector<64x16xf32>
    %39 = tpu.matmul %36, %38, %cst_45 {dimension_numbers = #tpu.dot_dimension_numbers<[1], [0], [0], [1], [0, 0, 1, 1], [], []>} : vector<64x32xbf16>, vector<32x16xbf16>, vector<64x16xf32> -> vector<64x16xf32>
    %40 = arith.addf %34, %39 : vector<64x16xf32>
    %41 = vector.shape_cast %40 : vector<64x16xf32> to vector<8x8x16xf32>
    %c0_46 = arith.constant 0 : index
    %c0_47 = arith.constant 0 : index
    %c0_48 = arith.constant 0 : index
    %42 = vector.load %arg7[%c0_46, %c0_47, %c0_48] : memref<1x1x16xf32, #tpu.memory_space<vmem>>, vector<1x1x16xf32>
    %43 = vector.broadcast %42 : vector<1x1x16xf32> to vector<8x8x16xf32>
    %44 = arith.mulf %41, %43 : vector<8x8x16xf32>
    %c0_49 = arith.constant 0 : index
    %c0_50 = arith.constant 0 : index
    %c0_51 = arith.constant 0 : index
    %45 = vector.load %arg8[%c0_49, %c0_50, %c0_51] : memref<1x1x16xf32, #tpu.memory_space<vmem>>, vector<1x1x16xf32>
    %46 = vector.broadcast %45 : vector<1x1x16xf32> to vector<8x8x16xf32>
    %47 = arith.addf %44, %46 : vector<8x8x16xf32>
    %cst_52 = arith.constant 0.000000e+00 : f32
    %48 = vector.broadcast %cst_52 : f32 to vector<8x8x16xf32>
    %49 = arith.maximumf %47, %48 : vector<8x8x16xf32>
    %c0_53 = arith.constant 0 : index
    %c0_54 = arith.constant 0 : index
    %c0_55 = arith.constant 0 : index
    %c0_56 = arith.constant 0 : index
    %50 = vector.load %arg2[%c0_53, %c0_54, %c0_55, %c0_56] : memref<1x8x8x16xf32, #tpu.memory_space<vmem>>, vector<1x8x8x16xf32>
    %51 = vector.shape_cast %50 : vector<1x8x8x16xf32> to vector<8x8x16xf32>
    %c0_57 = arith.constant 0 : index
    %c0_58 = arith.constant 0 : index
    %c0_59 = arith.constant 0 : index
    %52 = vector.load %arg9[%c0_57, %c0_58, %c0_59] : memref<1x1x16xf32, #tpu.memory_space<vmem>>, vector<1x1x16xf32>
    %53 = vector.broadcast %52 : vector<1x1x16xf32> to vector<8x8x16xf32>
    %54 = arith.mulf %51, %53 : vector<8x8x16xf32>
    %c0_60 = arith.constant 0 : index
    %c0_61 = arith.constant 0 : index
    %c0_62 = arith.constant 0 : index
    %55 = vector.load %arg10[%c0_60, %c0_61, %c0_62] : memref<1x1x16xf32, #tpu.memory_space<vmem>>, vector<1x1x16xf32>
    %56 = vector.broadcast %55 : vector<1x1x16xf32> to vector<8x8x16xf32>
    %57 = arith.addf %54, %56 : vector<8x8x16xf32>
    %cst_63 = arith.constant 0.000000e+00 : f32
    %58 = vector.broadcast %cst_63 : f32 to vector<8x8x16xf32>
    %59 = arith.maximumf %57, %58 : vector<8x8x16xf32>
    %60 = tpu.concatenate %49, %59 in 2 : vector<8x8x16xf32>, vector<8x8x16xf32> -> vector<8x8x32xf32>
    %61 = arith.truncf %60 : vector<8x8x32xf32> to vector<8x8x32xbf16>
    %c1_64 = arith.constant 1 : index
    %c1_65 = arith.constant 1 : index
    %c0_66 = arith.constant 0 : index
    %62 = vector.load %arg13[%c1_64, %c1_65, %c0_66] : memref<10x10x32xbf16, #tpu.memory_space<vmem>>, vector<8x8x32xbf16>
    tpu.vector_store %arg13[%c1_64, %c1_65, %c0_66], %61 {strides = array<i32>} : memref<10x10x32xbf16, #tpu.memory_space<vmem>>, vector<8x8x32xbf16>,
    %cst_67 = arith.constant 0.000000e+00 : f32
    %63 = vector.broadcast %cst_67 : f32 to vector<64x16xf32>
    %c0_68 = arith.constant 0 : index
    %c0_69 = arith.constant 0 : index
    %c0_70 = arith.constant 0 : index
    %64 = vector.load %arg13[%c0_68, %c0_69, %c0_70] : memref<10x10x32xbf16, #tpu.memory_space<vmem>>, vector<8x8x32xbf16>
    %65 = vector.shape_cast %64 : vector<8x8x32xbf16> to vector<64x32xbf16>
    %c0_71 = arith.constant 0 : index
    %c0_72 = arith.constant 0 : index
    %c0_73 = arith.constant 0 : index
    %66 = vector.load %arg4[%c0_71, %c0_72, %c0_73] : memref<9x32x16xbf16, #tpu.memory_space<vmem>>, vector<1x32x16xbf16>
    %67 = vector.shape_cast %66 : vector<1x32x16xbf16> to vector<32x16xbf16>
    %cst_74 = arith.constant dense<0.000000e+00> : vector<64x16xf32>
    %68 = tpu.matmul %65, %67, %cst_74 {dimension_numbers = #tpu.dot_dimension_numbers<[1], [0], [0], [1], [0, 0, 1, 1], [], []>} : vector<64x32xbf16>, vector<32x16xbf16>, vector<64x16xf32> -> vector<64x16xf32>
    %69 = arith.addf %63, %68 : vector<64x16xf32>
    %c0_75 = arith.constant 0 : index
    %c1_76 = arith.constant 1 : index
    %c0_77 = arith.constant 0 : index
    %70 = vector.load %arg13[%c0_75, %c1_76, %c0_77] : memref<10x10x32xbf16, #tpu.memory_space<vmem>>, vector<8x8x32xbf16>
    %71 = vector.shape_cast %70 : vector<8x8x32xbf16> to vector<64x32xbf16>
    %c1_78 = arith.constant 1 : index
    %c0_79 = arith.constant 0 : index
    %c0_80 = arith.constant 0 : index
    %72 = vector.load %arg4[%c1_78, %c0_79, %c0_80] : memref<9x32x16xbf16, #tpu.memory_space<vmem>>, vector<1x32x16xbf16>
    %73 = vector.shape_cast %72 : vector<1x32x16xbf16> to vector<32x16xbf16>
    %cst_81 = arith.constant dense<0.000000e+00> : vector<64x16xf32>
    %74 = tpu.matmul %71, %73, %cst_81 {dimension_numbers = #tpu.dot_dimension_numbers<[1], [0], [0], [1], [0, 0, 1, 1], [], []>} : vector<64x32xbf16>, vector<32x16xbf16>, vector<64x16xf32> -> vector<64x16xf32>
    %75 = arith.addf %69, %74 : vector<64x16xf32>
    %c0_82 = arith.constant 0 : index
    %c2_83 = arith.constant 2 : index
    %c0_84 = arith.constant 0 : index
    %76 = vector.load %arg13[%c0_82, %c2_83, %c0_84] : memref<10x10x32xbf16, #tpu.memory_space<vmem>>, vector<8x8x32xbf16>
    %77 = vector.shape_cast %76 : vector<8x8x32xbf16> to vector<64x32xbf16>
    %c2_85 = arith.constant 2 : index
    %c0_86 = arith.constant 0 : index
    %c0_87 = arith.constant 0 : index
    %78 = vector.load %arg4[%c2_85, %c0_86, %c0_87] : memref<9x32x16xbf16, #tpu.memory_space<vmem>>, vector<1x32x16xbf16>
    %79 = vector.shape_cast %78 : vector<1x32x16xbf16> to vector<32x16xbf16>
    %cst_88 = arith.constant dense<0.000000e+00> : vector<64x16xf32>
    %80 = tpu.matmul %77, %79, %cst_88 {dimension_numbers = #tpu.dot_dimension_numbers<[1], [0], [0], [1], [0, 0, 1, 1], [], []>} : vector<64x32xbf16>, vector<32x16xbf16>, vector<64x16xf32> -> vector<64x16xf32>
    %81 = arith.addf %75, %80 : vector<64x16xf32>
    %c1_89 = arith.constant 1 : index
    %c0_90 = arith.constant 0 : index
    %c0_91 = arith.constant 0 : index
    %82 = vector.load %arg13[%c1_89, %c0_90, %c0_91] : memref<10x10x32xbf16, #tpu.memory_space<vmem>>, vector<8x8x32xbf16>
    %83 = vector.shape_cast %82 : vector<8x8x32xbf16> to vector<64x32xbf16>
    %c3_92 = arith.constant 3 : index
    %c0_93 = arith.constant 0 : index
    %c0_94 = arith.constant 0 : index
    %84 = vector.load %arg4[%c3_92, %c0_93, %c0_94] : memref<9x32x16xbf16, #tpu.memory_space<vmem>>, vector<1x32x16xbf16>
    %85 = vector.shape_cast %84 : vector<1x32x16xbf16> to vector<32x16xbf16>
    %cst_95 = arith.constant dense<0.000000e+00> : vector<64x16xf32>
    %86 = tpu.matmul %83, %85, %cst_95 {dimension_numbers = #tpu.dot_dimension_numbers<[1], [0], [0], [1], [0, 0, 1, 1], [], []>} : vector<64x32xbf16>, vector<32x16xbf16>, vector<64x16xf32> -> vector<64x16xf32>
    %87 = arith.addf %81, %86 : vector<64x16xf32>
    %c1_96 = arith.constant 1 : index
    %c1_97 = arith.constant 1 : index
    %c0_98 = arith.constant 0 : index
    %88 = vector.load %arg13[%c1_96, %c1_97, %c0_98] : memref<10x10x32xbf16, #tpu.memory_space<vmem>>, vector<8x8x32xbf16>
    %89 = vector.shape_cast %88 : vector<8x8x32xbf16> to vector<64x32xbf16>
    %c4 = arith.constant 4 : index
    %c0_99 = arith.constant 0 : index
    %c0_100 = arith.constant 0 : index
    %90 = vector.load %arg4[%c4, %c0_99, %c0_100] : memref<9x32x16xbf16, #tpu.memory_space<vmem>>, vector<1x32x16xbf16>
    %91 = vector.shape_cast %90 : vector<1x32x16xbf16> to vector<32x16xbf16>
    %cst_101 = arith.constant dense<0.000000e+00> : vector<64x16xf32>
    %92 = tpu.matmul %89, %91, %cst_101 {dimension_numbers = #tpu.dot_dimension_numbers<[1], [0], [0], [1], [0, 0, 1, 1], [], []>} : vector<64x32xbf16>, vector<32x16xbf16>, vector<64x16xf32> -> vector<64x16xf32>
    %93 = arith.addf %87, %92 : vector<64x16xf32>
    %c1_102 = arith.constant 1 : index
    %c2_103 = arith.constant 2 : index
    %c0_104 = arith.constant 0 : index
    %94 = vector.load %arg13[%c1_102, %c2_103, %c0_104] : memref<10x10x32xbf16, #tpu.memory_space<vmem>>, vector<8x8x32xbf16>
    %95 = vector.shape_cast %94 : vector<8x8x32xbf16> to vector<64x32xbf16>
    %c5 = arith.constant 5 : index
    %c0_105 = arith.constant 0 : index
    %c0_106 = arith.constant 0 : index
    %96 = vector.load %arg4[%c5, %c0_105, %c0_106] : memref<9x32x16xbf16, #tpu.memory_space<vmem>>, vector<1x32x16xbf16>
    %97 = vector.shape_cast %96 : vector<1x32x16xbf16> to vector<32x16xbf16>
    %cst_107 = arith.constant dense<0.000000e+00> : vector<64x16xf32>
    %98 = tpu.matmul %95, %97, %cst_107 {dimension_numbers = #tpu.dot_dimension_numbers<[1], [0], [0], [1], [0, 0, 1, 1], [], []>} : vector<64x32xbf16>, vector<32x16xbf16>, vector<64x16xf32> -> vector<64x16xf32>
    %99 = arith.addf %93, %98 : vector<64x16xf32>
    %c2_108 = arith.constant 2 : index
    %c0_109 = arith.constant 0 : index
    %c0_110 = arith.constant 0 : index
    %100 = vector.load %arg13[%c2_108, %c0_109, %c0_110] : memref<10x10x32xbf16, #tpu.memory_space<vmem>>, vector<8x8x32xbf16>
    %101 = vector.shape_cast %100 : vector<8x8x32xbf16> to vector<64x32xbf16>
    %c6 = arith.constant 6 : index
    %c0_111 = arith.constant 0 : index
    %c0_112 = arith.constant 0 : index
    %102 = vector.load %arg4[%c6, %c0_111, %c0_112] : memref<9x32x16xbf16, #tpu.memory_space<vmem>>, vector<1x32x16xbf16>
    %103 = vector.shape_cast %102 : vector<1x32x16xbf16> to vector<32x16xbf16>
    %cst_113 = arith.constant dense<0.000000e+00> : vector<64x16xf32>
    %104 = tpu.matmul %101, %103, %cst_113 {dimension_numbers = #tpu.dot_dimension_numbers<[1], [0], [0], [1], [0, 0, 1, 1], [], []>} : vector<64x32xbf16>, vector<32x16xbf16>, vector<64x16xf32> -> vector<64x16xf32>
    %105 = arith.addf %99, %104 : vector<64x16xf32>
    %c2_114 = arith.constant 2 : index
    %c1_115 = arith.constant 1 : index
    %c0_116 = arith.constant 0 : index
    %106 = vector.load %arg13[%c2_114, %c1_115, %c0_116] : memref<10x10x32xbf16, #tpu.memory_space<vmem>>, vector<8x8x32xbf16>
    %107 = vector.shape_cast %106 : vector<8x8x32xbf16> to vector<64x32xbf16>
    %c7 = arith.constant 7 : index
    %c0_117 = arith.constant 0 : index
    %c0_118 = arith.constant 0 : index
    %108 = vector.load %arg4[%c7, %c0_117, %c0_118] : memref<9x32x16xbf16, #tpu.memory_space<vmem>>, vector<1x32x16xbf16>
    %109 = vector.shape_cast %108 : vector<1x32x16xbf16> to vector<32x16xbf16>
    %cst_119 = arith.constant dense<0.000000e+00> : vector<64x16xf32>
    %110 = tpu.matmul %107, %109, %cst_119 {dimension_numbers = #tpu.dot_dimension_numbers<[1], [0], [0], [1], [0, 0, 1, 1], [], []>} : vector<64x32xbf16>, vector<32x16xbf16>, vector<64x16xf32> -> vector<64x16xf32>
    %111 = arith.addf %105, %110 : vector<64x16xf32>
    %c2_120 = arith.constant 2 : index
    %c2_121 = arith.constant 2 : index
    %c0_122 = arith.constant 0 : index
    %112 = vector.load %arg13[%c2_120, %c2_121, %c0_122] : memref<10x10x32xbf16, #tpu.memory_space<vmem>>, vector<8x8x32xbf16>
    %113 = vector.shape_cast %112 : vector<8x8x32xbf16> to vector<64x32xbf16>
    %c8 = arith.constant 8 : index
    %c0_123 = arith.constant 0 : index
    %c0_124 = arith.constant 0 : index
    %114 = vector.load %arg4[%c8, %c0_123, %c0_124] : memref<9x32x16xbf16, #tpu.memory_space<vmem>>, vector<1x32x16xbf16>
    %115 = vector.shape_cast %114 : vector<1x32x16xbf16> to vector<32x16xbf16>
    %cst_125 = arith.constant dense<0.000000e+00> : vector<64x16xf32>
    %116 = tpu.matmul %113, %115, %cst_125 {dimension_numbers = #tpu.dot_dimension_numbers<[1], [0], [0], [1], [0, 0, 1, 1], [], []>} : vector<64x32xbf16>, vector<32x16xbf16>, vector<64x16xf32> -> vector<64x16xf32>
    %117 = arith.addf %111, %116 : vector<64x16xf32>
    %118 = vector.shape_cast %117 : vector<64x16xf32> to vector<8x8x16xf32>
    %c0_126 = arith.constant 0 : index
    %c0_127 = arith.constant 0 : index
    %c0_128 = arith.constant 0 : index
    %c0_129 = arith.constant 0 : index
    %119 = vector.load %arg11[%c0_126, %c0_127, %c0_128, %c0_129] : memref<1x8x8x16xf32, #tpu.memory_space<vmem>>, vector<1x8x8x16xf32>
    %120 = vector.shape_cast %119 : vector<1x8x8x16xf32> to vector<8x8x16xf32>
    %121 = vector.shape_cast %118 : vector<8x8x16xf32> to vector<1x8x8x16xf32>
    tpu.vector_store %arg11[%c0_126, %c0_127, %c0_128, %c0_129], %121 {strides = array<i32>} : memref<1x8x8x16xf32, #tpu.memory_space<vmem>>, vector<1x8x8x16xf32>,
    return
  }
  func.func @transform_0(%arg0: i32) -> (i32, i32, i32, i32) {
    %c0_i32 = arith.constant 0 : i32
    %c0_i32_0 = arith.constant 0 : i32
    %c0_i32_1 = arith.constant 0 : i32
    %c0_i32_2 = arith.constant 0 : i32
    return %arg0, %c0_i32, %c0_i32_0, %c0_i32_1 : i32, i32, i32, i32
  }
  func.func @transform_1(%arg0: i32) -> (i32, i32, i32, i32) {
    %c0_i32 = arith.constant 0 : i32
    %c0_i32_0 = arith.constant 0 : i32
    %c0_i32_1 = arith.constant 0 : i32
    %c0_i32_2 = arith.constant 0 : i32
    return %arg0, %c0_i32, %c0_i32_0, %c0_i32_1 : i32, i32, i32, i32
  }
  func.func @transform_2(%arg0: i32) -> (i32, i32, i32) {
    %c0_i32 = arith.constant 0 : i32
    %c0_i32_0 = arith.constant 0 : i32
    %c0_i32_1 = arith.constant 0 : i32
    %c0_i32_2 = arith.constant 0 : i32
    return %c0_i32, %c0_i32_0, %c0_i32_1 : i32, i32, i32
  }
  func.func @transform_3(%arg0: i32) -> (i32, i32, i32) {
    %c0_i32 = arith.constant 0 : i32
    %c0_i32_0 = arith.constant 0 : i32
    %c0_i32_1 = arith.constant 0 : i32
    %c0_i32_2 = arith.constant 0 : i32
    return %c0_i32, %c0_i32_0, %c0_i32_1 : i32, i32, i32
  }
  func.func @transform_4(%arg0: i32) -> (i32, i32, i32) {
    %c0_i32 = arith.constant 0 : i32
    %c0_i32_0 = arith.constant 0 : i32
    %c0_i32_1 = arith.constant 0 : i32
    %c0_i32_2 = arith.constant 0 : i32
    return %c0_i32, %c0_i32_0, %c0_i32_1 : i32, i32, i32
  }
  func.func @transform_5(%arg0: i32) -> (i32, i32, i32) {
    %c0_i32 = arith.constant 0 : i32
    %c0_i32_0 = arith.constant 0 : i32
    %c0_i32_1 = arith.constant 0 : i32
    %c0_i32_2 = arith.constant 0 : i32
    return %c0_i32, %c0_i32_0, %c0_i32_1 : i32, i32, i32
  }
  func.func @transform_6(%arg0: i32) -> (i32, i32, i32) {
    %c0_i32 = arith.constant 0 : i32
    %c0_i32_0 = arith.constant 0 : i32
    %c0_i32_1 = arith.constant 0 : i32
    %c0_i32_2 = arith.constant 0 : i32
    return %c0_i32, %c0_i32_0, %c0_i32_1 : i32, i32, i32
  }
  func.func @transform_7(%arg0: i32) -> (i32, i32, i32) {
    %c0_i32 = arith.constant 0 : i32
    %c0_i32_0 = arith.constant 0 : i32
    %c0_i32_1 = arith.constant 0 : i32
    %c0_i32_2 = arith.constant 0 : i32
    return %c0_i32, %c0_i32_0, %c0_i32_1 : i32, i32, i32
  }
  func.func @transform_8(%arg0: i32) -> (i32, i32, i32) {
    %c0_i32 = arith.constant 0 : i32
    %c0_i32_0 = arith.constant 0 : i32
    %c0_i32_1 = arith.constant 0 : i32
    %c0_i32_2 = arith.constant 0 : i32
    return %c0_i32, %c0_i32_0, %c0_i32_1 : i32, i32, i32
  }
  func.func @transform_9(%arg0: i32) -> (i32, i32, i32) {
    %c0_i32 = arith.constant 0 : i32
    %c0_i32_0 = arith.constant 0 : i32
    %c0_i32_1 = arith.constant 0 : i32
    %c0_i32_2 = arith.constant 0 : i32
    return %c0_i32, %c0_i32_0, %c0_i32_1 : i32, i32, i32
  }
  func.func @transform_10(%arg0: i32) -> (i32, i32, i32, i32) {
    %c0_i32 = arith.constant 0 : i32
    %c0_i32_0 = arith.constant 0 : i32
    %c0_i32_1 = arith.constant 0 : i32
    %c0_i32_2 = arith.constant 0 : i32
    return %arg0, %c0_i32, %c0_i32_0, %c0_i32_1 : i32, i32, i32, i32
  }
}

</mosaic_0001>

<llo_original>
// kernel: tpu_custom_call.1
$region0: #{tpu_custom_call.1}
  #allocation0 [shape = 'u32[]', space=smem, size = 0x4, offset = 0x4, fixed_abs, tag = 'smem constant byte address 0x4 - core index']
  #allocation1 [shape = 'u32[144,128]{1,0:T(1,128)}', space=vmem, size = 0x12000, scoped, tag = 'internal scratch']
  #allocation2 [shape = 'bf16[9,9,32]{2,1,0:T(8,128)(2,1)}', space=vmem, size = 0x9000, scoped, tag = 'scratch operand']
  #allocation3 [shape = 'bf16[10,10,32]{2,1,0:T(8,128)(2,1)}', space=vmem, size = 0xa000, scoped, tag = 'scratch operand']
  %s0 = inlined_call_operand.vmem [shape: f32[2,8,8,32], index: 0, kind: input, shape index: {}]
  %s1 = inlined_call_operand.vmem [shape: f32[2,8,8,16], index: 1, kind: input, shape index: {}]
  %s2 = inlined_call_operand.vmem [shape: bf16[4,32,16], index: 2, kind: input, shape index: {}]
  %s3 = inlined_call_operand.vmem [shape: bf16[9,32,16], index: 3, kind: input, shape index: {}]
  %s4 = inlined_call_operand.vmem [shape: f32[1,1,32], index: 4, kind: input, shape index: {}]
  %s5 = inlined_call_operand.vmem [shape: f32[1,1,32], index: 5, kind: input, shape index: {}]
  %s6 = inlined_call_operand.vmem [shape: f32[1,1,16], index: 6, kind: input, shape index: {}]
  %s7 = inlined_call_operand.vmem [shape: f32[1,1,16], index: 7, kind: input, shape index: {}]
  %s8 = inlined_call_operand.vmem [shape: f32[1,1,16], index: 8, kind: input, shape index: {}]
  %s9 = inlined_call_operand.vmem [shape: f32[1,1,16], index: 9, kind: input, shape index: {}]
  %s10 = inlined_call_operand.hbm [shape: f32[2,8,8,16], index: 10, kind: output, shape index: {}]
  %s11 = sld [smem:[#allocation0]]
  $region73: #{tpu_custom_call.1} parent=0
    _
  %s13 = ssub.s32 1, %s11
  %s14 = scalar_select 0, %s13, %s11
  $region1: #{tpu_custom_call.1} parent=0
    #allocation4 [shape = 'u8[65536]{0}', space=vmem, size = 0x10000, scoped, tag = 'output window, operand 0']
    #allocation5 [shape = 's32[2]{0}', space=sflag, size = 0x8, scoped, tag = 'scoped memory for tpu_custom_call.1']
    %15 = vsyncpa [#allocation5], 0
    %s16 = scalar_lea.sflag [#allocation5], 1
    %17 = vsyncpa %s16, 0
    loop: start=0, step=1, limit=4
    $region2: #{tpu_custom_call.1} parent=1 // loop_pre_header
      _
    $region3: #{tpu_custom_call.1} parent=1 // loop_header
      %s19 = sphi 0, %s23
      %p20 = scmp.ge.s32.totalorder %s19, 4
      %s29 = sphi 0, %s31
      %s32 = sphi 0, %s29
      %s33 = sphi 0, %s32
      %s49 = sphi 0, %s33
      %s55 = sphi 0, %s57
      %s58 = sphi 0, %s55
      %s59 = sphi 0, %s58
      %s75 = sphi 0, %s59
      %s79 = sphi 0, %s79
      %s81 = sphi 0, %s79
      %s82 = sphi 0, %s81
      %s96 = sphi 0, %s82
      %s100 = sphi 0, %s100
      %s102 = sphi 0, %s100
      %s103 = sphi 0, %s102
      %s117 = sphi 0, %s103
      %s121 = sphi 0, %s121
      %s123 = sphi 0, %s121
      %s124 = sphi 0, %s123
      %s138 = sphi 0, %s124
      %s142 = sphi 0, %s142
      %s144 = sphi 0, %s142
      %s145 = sphi 0, %s144
      %s159 = sphi 0, %s145
      %s163 = sphi 0, %s163
      %s165 = sphi 0, %s163
      %s166 = sphi 0, %s165
      %s180 = sphi 0, %s166
      %s184 = sphi 0, %s184
      %s186 = sphi 0, %s184
      %s187 = sphi 0, %s186
      %s201 = sphi 0, %s187
      %s205 = sphi 0, %s205
      %s207 = sphi 0, %s205
      %s208 = sphi 0, %s207
      %s222 = sphi 0, %s208
      %s226 = sphi 0, %s226
      %s228 = sphi 0, %s226
      %s229 = sphi 0, %s228
      %s243 = sphi 0, %s229
      %s249 = sphi 0, %s251
      %s252 = sphi 0, %s249
      %s253 = sphi 0, %s252
      %s269 = sphi 0, %s253
    $region4: #{tpu_custom_call.1} parent=1 // loop_header_branch
      %22 = sbr.rel (%p20) target = $region8
    $region5: #{tpu_custom_call.1} parent=1 // loop_body
      %s24 = ssub.s32 %s19, 1
      %s25 = ssub.s32 %s19, 2
      %s26 = sadd.s32 %s19, 1
      %s27 = ssub.s32 %s19, %s26
      %p28 = scmp.eq.s32.totalorder %s27, 0
      %s30 = sadd.s32 %s29, 1
      %s31 = scalar_select %p28, %s29, %s30
      %p34 = pneg %p28
      %p35 = scmp.eq.s32.totalorder %s19, 1
      %p36 = por %p34, %p35
      %p37 = scmp.ne.s32.totalorder %s29, %s32
      %p38 = scmp.eq.s32.totalorder %s19, 0
      %p39 = por %p37, %p38
      %p40 = scmp.ne.s32.totalorder %s29, %s32
      %p41 = scmp.eq.s32.totalorder %s24, 1
      %p42 = por %p40, %p41
      %p43 = scmp.ne.s32.totalorder %s32, %s33
      %p44 = scmp.eq.s32.totalorder %s24, 0
      %p45 = por %p43, %p44
      %p46 = scmp.ne.s32.totalorder %s32, %s33
      %p47 = scmp.eq.s32.totalorder %s25, 1
      %p48 = por %p46, %p47
      %p50 = scmp.ne.s32.totalorder %s33, %s49
      %p51 = scmp.eq.s32.totalorder %s25, 0
      %p52 = por %p50, %p51
      %s53 = ssub.s32 %s19, %s26
      %p54 = scmp.eq.s32.totalorder %s53, 0
      %s56 = sadd.s32 %s55, 1
      %s57 = scalar_select %p54, %s55, %s56
      %p60 = pneg %p54
      %p61 = scmp.eq.s32.totalorder %s19, 1
      %p62 = por %p60, %p61
      %p63 = scmp.ne.s32.totalorder %s55, %s58
      %p64 = scmp.eq.s32.totalorder %s19, 0
      %p65 = por %p63, %p64
      %p66 = scmp.ne.s32.totalorder %s55, %s58
      %p67 = scmp.eq.s32.totalorder %s24, 1
      %p68 = por %p66, %p67
      %p69 = scmp.ne.s32.totalorder %s58, %s59
      %p70 = scmp.eq.s32.totalorder %s24, 0
      %p71 = por %p69, %p70
      %p72 = scmp.ne.s32.totalorder %s58, %s59
      %p73 = scmp.eq.s32.totalorder %s25, 1
      %p74 = por %p72, %p73
      %p76 = scmp.ne.s32.totalorder %s59, %s75
      %p77 = scmp.eq.s32.totalorder %s25, 0
      %p78 = por %p76, %p77
      %s80 = sadd.s32 %s79, 1
      %p83 = scmp.eq.s32.totalorder %s19, 1
      %p84 = scmp.ne.s32.totalorder %s79, %s81
      %p85 = scmp.eq.s32.totalorder %s19, 0
      %p86 = por %p84, %p85
      %p87 = scmp.ne.s32.totalorder %s79, %s81
      %p88 = scmp.eq.s32.totalorder %s24, 1
      %p89 = por %p87, %p88
      %p90 = scmp.ne.s32.totalorder %s81, %s82
      %p91 = scmp.eq.s32.totalorder %s24, 0
      %p92 = por %p90, %p91
      %p93 = scmp.ne.s32.totalorder %s81, %s82
      %p94 = scmp.eq.s32.totalorder %s25, 1
      %p95 = por %p93, %p94
      %p97 = scmp.ne.s32.totalorder %s82, %s96
      %p98 = scmp.eq.s32.totalorder %s25, 0
      %p99 = por %p97, %p98
      %s101 = sadd.s32 %s100, 1
      %p104 = scmp.eq.s32.totalorder %s19, 1
      %p105 = scmp.ne.s32.totalorder %s100, %s102
      %p106 = scmp.eq.s32.totalorder %s19, 0
      %p107 = por %p105, %p106
      %p108 = scmp.ne.s32.totalorder %s100, %s102
      %p109 = scmp.eq.s32.totalorder %s24, 1
      %p110 = por %p108, %p109
      %p111 = scmp.ne.s32.totalorder %s102, %s103
      %p112 = scmp.eq.s32.totalorder %s24, 0
      %p113 = por %p111, %p112
      %p114 = scmp.ne.s32.totalorder %s102, %s103
      %p115 = scmp.eq.s32.totalorder %s25, 1
      %p116 = por %p114, %p115
      %p118 = scmp.ne.s32.totalorder %s103, %s117
      %p119 = scmp.eq.s32.totalorder %s25, 0
      %p120 = por %p118, %p119
      %s122 = sadd.s32 %s121, 1
      %p125 = scmp.eq.s32.totalorder %s19, 1
      %p126 = scmp.ne.s32.totalorder %s121, %s123
      %p127 = scmp.eq.s32.totalorder %s19, 0
      %p128 = por %p126, %p127
      %p129 = scmp.ne.s32.totalorder %s121, %s123
      %p130 = scmp.eq.s32.totalorder %s24, 1
      %p131 = por %p129, %p130
      %p132 = scmp.ne.s32.totalorder %s123, %s124
      %p133 = scmp.eq.s32.totalorder %s24, 0
      %p134 = por %p132, %p133
      %p135 = scmp.ne.s32.totalorder %s123, %s124
      %p136 = scmp.eq.s32.totalorder %s25, 1
      %p137 = por %p135, %p136
      %p139 = scmp.ne.s32.totalorder %s124, %s138
      %p140 = scmp.eq.s32.totalorder %s25, 0
      %p141 = por %p139, %p140
      %s143 = sadd.s32 %s142, 1
      %p146 = scmp.eq.s32.totalorder %s19, 1
      %p147 = scmp.ne.s32.totalorder %s142, %s144
      %p148 = scmp.eq.s32.totalorder %s19, 0
      %p149 = por %p147, %p148
      %p150 = scmp.ne.s32.totalorder %s142, %s144
      %p151 = scmp.eq.s32.totalorder %s24, 1
      %p152 = por %p150, %p151
      %p153 = scmp.ne.s32.totalorder %s144, %s145
      %p154 = scmp.eq.s32.totalorder %s24, 0
      %p155 = por %p153, %p154
      %p156 = scmp.ne.s32.totalorder %s144, %s145
      %p157 = scmp.eq.s32.totalorder %s25, 1
      %p158 = por %p156, %p157
      %p160 = scmp.ne.s32.totalorder %s145, %s159
      %p161 = scmp.eq.s32.totalorder %s25, 0
      %p162 = por %p160, %p161
      %s164 = sadd.s32 %s163, 1
      %p167 = scmp.eq.s32.totalorder %s19, 1
      %p168 = scmp.ne.s32.totalorder %s163, %s165
      %p169 = scmp.eq.s32.totalorder %s19, 0
      %p170 = por %p168, %p169
      %p171 = scmp.ne.s32.totalorder %s163, %s165
      %p172 = scmp.eq.s32.totalorder %s24, 1
      %p173 = por %p171, %p172
      %p174 = scmp.ne.s32.totalorder %s165, %s166
      %p175 = scmp.eq.s32.totalorder %s24, 0
      %p176 = por %p174, %p175
      %p177 = scmp.ne.s32.totalorder %s165, %s166
      %p178 = scmp.eq.s32.totalorder %s25, 1
      %p179 = por %p177, %p178
      %p181 = scmp.ne.s32.totalorder %s166, %s180
      %p182 = scmp.eq.s32.totalorder %s25, 0
      %p183 = por %p181, %p182
      %s185 = sadd.s32 %s184, 1
      %p188 = scmp.eq.s32.totalorder %s19, 1
      %p189 = scmp.ne.s32.totalorder %s184, %s186
      %p190 = scmp.eq.s32.totalorder %s19, 0
      %p191 = por %p189, %p190
      %p192 = scmp.ne.s32.totalorder %s184, %s186
      %p193 = scmp.eq.s32.totalorder %s24, 1
      %p194 = por %p192, %p193
      %p195 = scmp.ne.s32.totalorder %s186, %s187
      %p196 = scmp.eq.s32.totalorder %s24, 0
      %p197 = por %p195, %p196
      %p198 = scmp.ne.s32.totalorder %s186, %s187
      %p199 = scmp.eq.s32.totalorder %s25, 1
      %p200 = por %p198, %p199
      %p202 = scmp.ne.s32.totalorder %s187, %s201
      %p203 = scmp.eq.s32.totalorder %s25, 0
      %p204 = por %p202, %p203
      %s206 = sadd.s32 %s205, 1
      %p209 = scmp.eq.s32.totalorder %s19, 1
      %p210 = scmp.ne.s32.totalorder %s205, %s207
      %p211 = scmp.eq.s32.totalorder %s19, 0
      %p212 = por %p210, %p211
      %p213 = scmp.ne.s32.totalorder %s205, %s207
      %p214 = scmp.eq.s32.totalorder %s24, 1
      %p215 = por %p213, %p214
      %p216 = scmp.ne.s32.totalorder %s207, %s208
      %p217 = scmp.eq.s32.totalorder %s24, 0
      %p218 = por %p216, %p217
      %p219 = scmp.ne.s32.totalorder %s207, %s208
      %p220 = scmp.eq.s32.totalorder %s25, 1
      %p221 = por %p219, %p220
      %p223 = scmp.ne.s32.totalorder %s208, %s222
      %p224 = scmp.eq.s32.totalorder %s25, 0
      %p225 = por %p223, %p224
      %s227 = sadd.s32 %s226, 1
      %p230 = scmp.eq.s32.totalorder %s19, 1
      %p231 = scmp.ne.s32.totalorder %s226, %s228
      %p232 = scmp.eq.s32.totalorder %s19, 0
      %p233 = por %p231, %p232
      %p234 = scmp.ne.s32.totalorder %s226, %s228
      %p235 = scmp.eq.s32.totalorder %s24, 1
      %p236 = por %p234, %p235
      %p237 = scmp.ne.s32.totalorder %s228, %s229
      %p238 = scmp.eq.s32.totalorder %s24, 0
      %p239 = por %p237, %p238
      %p240 = scmp.ne.s32.totalorder %s228, %s229
      %p241 = scmp.eq.s32.totalorder %s25, 1
      %p242 = por %p240, %p241
      %p244 = scmp.ne.s32.totalorder %s229, %s243
      %p245 = scmp.eq.s32.totalorder %s25, 0
      %p246 = por %p244, %p245
      %s247 = ssub.s32 %s19, %s26
      %p248 = scmp.eq.s32.totalorder %s247, 0
      %s250 = sadd.s32 %s249, 1
      %s251 = scalar_select %p248, %s249, %s250
      %p254 = pneg %p248
      %p255 = scmp.eq.s32.totalorder %s19, 1
      %p256 = por %p254, %p255
      %p257 = scmp.ne.s32.totalorder %s249, %s252
      %p258 = scmp.eq.s32.totalorder %s19, 0
      %p259 = por %p257, %p258
      %p260 = scmp.ne.s32.totalorder %s249, %s252
      %p261 = scmp.eq.s32.totalorder %s24, 1
      %p262 = por %p260, %p261
      %p263 = scmp.ne.s32.totalorder %s252, %s253
      %p264 = scmp.eq.s32.totalorder %s24, 0
      %p265 = por %p263, %p264
      %p266 = scmp.ne.s32.totalorder %s252, %s253
      %p267 = scmp.eq.s32.totalorder %s25, 1
      %p268 = por %p266, %p267
      %p270 = scmp.ne.s32.totalorder %s253, %s269
      %p271 = scmp.eq.s32.totalorder %s25, 0
      %p272 = por %p270, %p271
      %p273 = scmp.le.s32.totalorder 1, %s19
      %p274 = scmp.lt.s32.totalorder %s19, 3
      %p275 = pnand %p273, %p274
      %p276 = pneg %p275
      // Predicated region
      $region9: #{tpu_custom_call.1} parent=5 // pred_check
        _
      $region10: #{tpu_custom_call.1} parent=5 // pred_check_branch
        %278 = sbr.rel (%p275) target = $region12
      $region11: #{tpu_custom_call.1} parent=5 // pred_region
        %s279 = ssub.s32 %s19, 1
        // Predicated region
        $region13: #{tpu_custom_call.1} parent=11 // pred_check
          %p280 = pneg %p92
        $region14: #{tpu_custom_call.1} parent=11 // pred_check_branch
          %282 = sbr.rel (%p280) target = $region16
        $region15: #{tpu_custom_call.1} parent=11 // pred_region
          _
        $region16: #{tpu_custom_call.1} parent=11 // pred_fallthru
          _
        // Predicated region
        $region17: #{tpu_custom_call.1} parent=11 // pred_check
          %p283 = pneg %p113
        $region18: #{tpu_custom_call.1} parent=11 // pred_check_branch
          %285 = sbr.rel (%p283) target = $region20
        $region19: #{tpu_custom_call.1} parent=11 // pred_region
          _
        $region20: #{tpu_custom_call.1} parent=11 // pred_fallthru
          _
        // Predicated region
        $region21: #{tpu_custom_call.1} parent=11 // pred_check
          %p286 = pneg %p134
        $region22: #{tpu_custom_call.1} parent=11 // pred_check_branch
          %288 = sbr.rel (%p286) target = $region24
        $region23: #{tpu_custom_call.1} parent=11 // pred_region
          _
        $region24: #{tpu_custom_call.1} parent=11 // pred_fallthru
          _
        // Predicated region
        $region25: #{tpu_custom_call.1} parent=11 // pred_check
          %p289 = pneg %p155
        $region26: #{tpu_custom_call.1} parent=11 // pred_check_branch
          %291 = sbr.rel (%p289) target = $region28
        $region27: #{tpu_custom_call.1} parent=11 // pred_region
          _
        $region28: #{tpu_custom_call.1} parent=11 // pred_fallthru
          _
        // Predicated region
        $region29: #{tpu_custom_call.1} parent=11 // pred_check
          %p292 = pneg %p176
        $region30: #{tpu_custom_call.1} parent=11 // pred_check_branch
          %294 = sbr.rel (%p292) target = $region32
        $region31: #{tpu_custom_call.1} parent=11 // pred_region
          _
        $region32: #{tpu_custom_call.1} parent=11 // pred_fallthru
          _
        // Predicated region
        $region33: #{tpu_custom_call.1} parent=11 // pred_check
          %p295 = pneg %p197
        $region34: #{tpu_custom_call.1} parent=11 // pred_check_branch
          %297 = sbr.rel (%p295) target = $region36
        $region35: #{tpu_custom_call.1} parent=11 // pred_region
          _
        $region36: #{tpu_custom_call.1} parent=11 // pred_fallthru
          _
        // Predicated region
        $region37: #{tpu_custom_call.1} parent=11 // pred_check
          %p298 = pneg %p218
        $region38: #{tpu_custom_call.1} parent=11 // pred_check_branch
          %300 = sbr.rel (%p298) target = $region40
        $region39: #{tpu_custom_call.1} parent=11 // pred_region
          _
        $region40: #{tpu_custom_call.1} parent=11 // pred_fallthru
          _
        // Predicated region
        $region41: #{tpu_custom_call.1} parent=11 // pred_check
          %p301 = pneg %p239
        $region42: #{tpu_custom_call.1} parent=11 // pred_check_branch
          %303 = sbr.rel (%p301) target = $region44
        $region43: #{tpu_custom_call.1} parent=11 // pred_region
          _
        $region44: #{tpu_custom_call.1} parent=11 // pred_fallthru
          _
      $region12: #{tpu_custom_call.1} parent=5 // pred_fallthru
        _
      %p304 = scmp.lt.s32.totalorder %s19, 2
      // Predicated region
      $region45: #{tpu_custom_call.1} parent=5 // pred_check
        %p305 = pneg %p304
      $region46: #{tpu_custom_call.1} parent=5 // pred_check_branch
        %307 = sbr.rel (%p305) target = $region48
      $region47: #{tpu_custom_call.1} parent=5 // pred_region
        // Predicated region
        $region49: #{tpu_custom_call.1} parent=47 // pred_check
          %p308 = pneg %p39
        $region50: #{tpu_custom_call.1} parent=47 // pred_check_branch
          %310 = sbr.rel (%p308) target = $region52
        $region51: #{tpu_custom_call.1} parent=47 // pred_region
          %p311 = scmp.lt.s32.totalorder %s19, 1
          %s312 = scalar_select %p311, %s19, 1
          %s313 = smul.addr %s312, 8
          %s314 = smul.addr %s313, 8
          %s315 = scalar_lea.vmem %s0, %s314
        $region52: #{tpu_custom_call.1} parent=47 // pred_fallthru
          _
        // Predicated region
        $region53: #{tpu_custom_call.1} parent=47 // pred_check
          %p316 = pneg %p65
        $region54: #{tpu_custom_call.1} parent=47 // pred_check_branch
          %318 = sbr.rel (%p316) target = $region56
        $region55: #{tpu_custom_call.1} parent=47 // pred_region
          %p319 = scmp.lt.s32.totalorder %s19, 1
          %s320 = scalar_select %p319, %s19, 1
          %s321 = smul.addr %s320, 8
          %s322 = smul.addr %s321, 8
          %s323 = scalar_lea.vmem %s1, %s322
        $region56: #{tpu_custom_call.1} parent=47 // pred_fallthru
          _
      $region48: #{tpu_custom_call.1} parent=5 // pred_fallthru
        _
      %p324 = scmp.le.s32.totalorder 1, %s19
      %p325 = scmp.lt.s32.totalorder %s19, 3
      %p326 = pnand %p324, %p325
      %p327 = pneg %p326
      // Predicated region
      $region57: #{tpu_custom_call.1} parent=5 // pred_check
        _
      $region58: #{tpu_custom_call.1} parent=5 // pred_check_branch
        %329 = sbr.rel (%p326) target = $region60
      $region59: #{tpu_custom_call.1} parent=5 // pred_region
        %s330 = ssub.s32 %s19, 1
        %p331 = scmp.lt.s32.totalorder %s24, 1
        %s332 = scalar_select %p331, %s24, 1
        %s333 = smul.addr %s332, 8
        %s334 = smul.addr %s333, 8
        %s335 = scalar_lea.vmem %s0, %s334
        %p336 = pneg %p45
        %p337 = pneg %p42
        %p338 = scmp.lt.s32.totalorder %s24, 1
        %s339 = scalar_select %p338, %s24, 1
        %s340 = smul.addr %s339, 8
        %s341 = smul.addr %s340, 8
        %s342 = scalar_lea.vmem %s1, %s341
        %p343 = pneg %p71
        %p344 = pneg %p68
        %p345 = pneg %p92
        %p346 = pneg %p89
        %p347 = pneg %p113
        %p348 = pneg %p110
        %p349 = pneg %p134
        %p350 = pneg %p131
        %p351 = pneg %p155
        %p352 = pneg %p152
        %p353 = pneg %p176
        %p354 = pneg %p173
        %p355 = pneg %p197
        %p356 = pneg %p194
        %p357 = pneg %p218
        %p358 = pneg %p215
        %p359 = pneg %p239
        %p360 = pneg %p236
        %p361 = pneg %p265
        %p362 = pneg %p262
        %s363 = sand.u32 %s252, 1
        %s364 = scalar_lea.sflag [#allocation5], %s363
        %s365 = sand.u32 %s252, 1
        %s366 = smul.addr %s365, 64
        %s367 = scalar_lea.vmem [#allocation4], %s366
        %p368 = scmp.lt.s32.totalorder %s24, 1
        %s369 = scalar_select %p368, %s24, 1
        %s370 = smul.addr %s369, 8
        %s371 = smul.addr %s370, 8
        %s372 = scalar_lea.vmem %s0, %s371
        %p373 = scmp.lt.s32.totalorder %s24, 1
        %s374 = scalar_select %p373, %s24, 1
        %s375 = smul.addr %s374, 8
        %s376 = smul.addr %s375, 8
        %s377 = scalar_lea.vmem %s1, %s376
        %vm379 = vcmask 257024
        %380 = vst.msk [vmem:[#allocation2] sm:$0xf] %vm379, 0
        %vm381 = vcmask 253952
        %vm382 = vsmask.f32 256
        %vm383 = vmand %vm381, %vm382
        %v384 = vld [vmem:[#allocation2 + $0x4] sm:$0x1]
        %v385 = vsel %vm383, 0, %v384
        %386 = vst [vmem:[#allocation2 + $0x4] sm:$0x1] %v385
        %387 = vst.msk [vmem:[#allocation2 + $0x8] sm:$0xf] %vm379, 0
        %v388 = vld [vmem:[#allocation2 + $0xc] sm:$0x1]
        %v389 = vsel %vm383, 0, %v388
        %390 = vst [vmem:[#allocation2 + $0xc] sm:$0x1] %v389
        %391 = vst.msk [vmem:[#allocation2 + $0x10] sm:$0xf] %vm379, 0
        %v392 = vld [vmem:[#allocation2 + $0x14] sm:$0x1]
        %v393 = vsel %vm383, 0, %v392
        %394 = vst [vmem:[#allocation2 + $0x14] sm:$0x1] %v393
        %395 = vst.msk [vmem:[#allocation2 + $0x18] sm:$0xf] %vm379, 0
        %v396 = vld [vmem:[#allocation2 + $0x1c] sm:$0x1]
        %v397 = vsel %vm383, 0, %v396
        %398 = vst [vmem:[#allocation2 + $0x1c] sm:$0x1] %v397
        %399 = vst.msk [vmem:[#allocation2 + $0x20] sm:$0xf] %vm379, 0
        %v400 = vld [vmem:[#allocation2 + $0x24] sm:$0x1]
        %v401 = vsel %vm383, 0, %v400
        %402 = vst [vmem:[#allocation2 + $0x24] sm:$0x1] %v401
        %403 = vst.msk [vmem:[#allocation2 + $0x28] sm:$0xf] %vm379, 0
        %v404 = vld [vmem:[#allocation2 + $0x2c] sm:$0x1]
        %v405 = vsel %vm383, 0, %v404
        %406 = vst [vmem:[#allocation2 + $0x2c] sm:$0x1] %v405
        %407 = vst.msk [vmem:[#allocation2 + $0x30] sm:$0xf] %vm379, 0
        %v408 = vld [vmem:[#allocation2 + $0x34] sm:$0x1]
        %v409 = vsel %vm383, 0, %v408
        %410 = vst [vmem:[#allocation2 + $0x34] sm:$0x1] %v409
        %411 = vst.msk [vmem:[#allocation2 + $0x38] sm:$0xf] %vm379, 0
        %v412 = vld [vmem:[#allocation2 + $0x3c] sm:$0x1]
        %v413 = vsel %vm383, 0, %v412
        %414 = vst [vmem:[#allocation2 + $0x3c] sm:$0x1] %v413
        %415 = vst.msk [vmem:[#allocation2 + $0x40] sm:$0xf] %vm379, 0
        %v416 = vld [vmem:[#allocation2 + $0x44] sm:$0x1]
        %v417 = vsel %vm383, 0, %v416
        %418 = vst [vmem:[#allocation2 + $0x44] sm:$0x1] %v417
        %419 = vst.msk [vmem:[#allocation3] sm:$0xf] %vm379, 0
        %vm420 = vcmask 253952
        %421 = vst.msk [vmem:[#allocation3 + $0x4] sm:$0x1] %vm420, 0
        %422 = vst.msk [vmem:[#allocation3 + $0x8] sm:$0xf] %vm379, 0
        %423 = vst.msk [vmem:[#allocation3 + $0xc] sm:$0x1] %vm420, 0
        %424 = vst.msk [vmem:[#allocation3 + $0x10] sm:$0xf] %vm379, 0
        %425 = vst.msk [vmem:[#allocation3 + $0x14] sm:$0x1] %vm420, 0
        %426 = vst.msk [vmem:[#allocation3 + $0x18] sm:$0xf] %vm379, 0
        %427 = vst.msk [vmem:[#allocation3 + $0x1c] sm:$0x1] %vm420, 0
        %428 = vst.msk [vmem:[#allocation3 + $0x20] sm:$0xf] %vm379, 0
        %429 = vst.msk [vmem:[#allocation3 + $0x24] sm:$0x1] %vm420, 0
        %430 = vst.msk [vmem:[#allocation3 + $0x28] sm:$0xf] %vm379, 0
        %431 = vst.msk [vmem:[#allocation3 + $0x2c] sm:$0x1] %vm420, 0
        %432 = vst.msk [vmem:[#allocation3 + $0x30] sm:$0xf] %vm379, 0
        %433 = vst.msk [vmem:[#allocation3 + $0x34] sm:$0x1] %vm420, 0
        %434 = vst.msk [vmem:[#allocation3 + $0x38] sm:$0xf] %vm379, 0
        %435 = vst.msk [vmem:[#allocation3 + $0x3c] sm:$0x1] %vm420, 0
        %436 = vst.msk [vmem:[#allocation3 + $0x40] sm:$0xf] %vm379, 0
        %437 = vst.msk [vmem:[#allocation3 + $0x44] sm:$0x1] %vm420, 0
        %438 = vst.msk [vmem:[#allocation3 + $0x48] sm:$0xf] %vm379, 0
        %439 = vst.msk [vmem:[#allocation3 + $0x4c] sm:$0x1] %vm420, 0
        %v440 = vld [vmem:[%s372] sm:$0xff]
        %v441 = vld [vmem:[%s372 + $0x8] sm:$0xff]
        %v442 = vld [vmem:[%s372 + $0x10] sm:$0xff]
        %v443 = vld [vmem:[%s372 + $0x18] sm:$0xff]
        %v444 = vld [vmem:[%s372 + $0x20] sm:$0xff]
        %v445 = vld [vmem:[%s372 + $0x28] sm:$0xff]
        %v446 = vld [vmem:[%s372 + $0x30] sm:$0xff]
        %v447 = vld [vmem:[%s372 + $0x38] sm:$0xff]
        %v448 = vld [vmem:[%s4] sm:$0x1]
        %v450 = vlaneseq
        %v451 = vshrl.u32 %v450, 7
        %v452 = vsub.s32 0, %v451
        %v453 = vrot.slane %v448, %v452
        %v455 = vmul.f32 %v440, %v453
        %v456 = vmul.f32 %v441, %v453
        %v457 = vmul.f32 %v442, %v453
        %v458 = vmul.f32 %v443, %v453
        %v459 = vmul.f32 %v444, %v453
        %v460 = vmul.f32 %v445, %v453
        %v461 = vmul.f32 %v446, %v453
        %v462 = vmul.f32 %v447, %v453
        %v463 = vld [vmem:[%s5] sm:$0x1]
        %v465 = vlaneseq
        %v466 = vshrl.u32 %v465, 7
        %v467 = vsub.s32 0, %v466
        %v468 = vrot.slane %v463, %v467
        %v470 = vadd.f32 %v455, %v468
        %v471 = vadd.f32 %v456, %v468
        %v472 = vadd.f32 %v457, %v468
        %v473 = vadd.f32 %v458, %v468
        %v474 = vadd.f32 %v459, %v468
        %v475 = vadd.f32 %v460, %v468
        %v476 = vadd.f32 %v461, %v468
        %v477 = vadd.f32 %v462, %v468
        %v478 = vmax.f32 %v470, 0.0
        %v479 = vmax.f32 %v471, 0.0
        %v480 = vmax.f32 %v472, 0.0
        %v481 = vmax.f32 %v473, 0.0
        %v482 = vmax.f32 %v474, 0.0
        %v483 = vmax.f32 %v475, 0.0
        %v484 = vmax.f32 %v476, 0.0
        %v485 = vmax.f32 %v477, 0.0
        %v486 = vpack.c.bf16 %v478, %v478
        %v487 = vpack.c.bf16 %v479, %v479
        %v488 = vpack.c.bf16 %v480, %v480
        %v489 = vpack.c.bf16 %v481, %v481
        %v490 = vpack.c.bf16 %v482, %v482
        %v491 = vpack.c.bf16 %v483, %v483
        %v492 = vpack.c.bf16 %v484, %v484
        %v493 = vpack.c.bf16 %v485, %v485
        %v502 = vunpack.c.l.b16 %v486
        %v503 = vunpack.c.l.b16 %v487
        %v504 = vunpack.c.l.b16 %v488
        %v505 = vunpack.c.l.b16 %v489
        %v506 = vunpack.c.l.b16 %v490
        %v507 = vunpack.c.l.b16 %v491
        %v508 = vunpack.c.l.b16 %v492
        %v509 = vunpack.c.l.b16 %v493
        %v510 = vpack.c.b16 %v502, %v502
        %v511 = vpack.c.b16 %v503, %v503
        %v512 = vpack.c.b16 %v504, %v504
        %v513 = vpack.c.b16 %v505, %v505
        %v514 = vpack.c.b16 %v506, %v506
        %v515 = vpack.c.b16 %v507, %v507
        %v516 = vpack.c.b16 %v508, %v508
        %v517 = vpack.c.b16 %v509, %v509
        %v519 = vshrl.u32 %v510, 16
        %v521 = vrot.slane %v519, 7
        %v522 = vshll.u32 %v510, 16
        %v524 = vor.u32 %v521, %v522
        %v525 = vrot.slane %v521, 4
        %v527 = vshrl.u32 %v511, 16
        %v529 = vrot.slane %v527, 7
        %v530 = vshll.u32 %v511, 16
        %v532 = vor.u32 %v529, %v530
        %v533 = vrot.slane %v529, 4
        %v535 = vshrl.u32 %v512, 16
        %v537 = vrot.slane %v535, 7
        %v538 = vshll.u32 %v512, 16
        %v540 = vor.u32 %v537, %v538
        %v541 = vrot.slane %v537, 4
        %v543 = vshrl.u32 %v513, 16
        %v545 = vrot.slane %v543, 7
        %v546 = vshll.u32 %v513, 16
        %v548 = vor.u32 %v545, %v546
        %v549 = vrot.slane %v545, 4
        %v551 = vshrl.u32 %v514, 16
        %v553 = vrot.slane %v551, 7
        %v554 = vshll.u32 %v514, 16
        %v556 = vor.u32 %v553, %v554
        %v557 = vrot.slane %v553, 4
        %v559 = vshrl.u32 %v515, 16
        %v561 = vrot.slane %v559, 7
        %v562 = vshll.u32 %v515, 16
        %v564 = vor.u32 %v561, %v562
        %v565 = vrot.slane %v561, 4
        %v567 = vshrl.u32 %v516, 16
        %v569 = vrot.slane %v567, 7
        %v570 = vshll.u32 %v516, 16
        %v572 = vor.u32 %v569, %v570
        %v573 = vrot.slane %v569, 4
        %v575 = vshrl.u32 %v517, 16
        %v577 = vrot.slane %v575, 7
        %v578 = vshll.u32 %v517, 16
        %v580 = vor.u32 %v577, %v578
        %v581 = vrot.slane %v577, 4
        %s598 = scalar_lea.vmem [#allocation2], 8
        %vm599 = vcmask 257024
        %vm600 = vsmask.f32 7938
        %vm601 = vmand %vm599, %vm600
        %v602 = vld [vmem:[%s598] sm:$0xf]
        %v603 = vsel %vm601, %v524, %v602
        %604 = vst [vmem:[%s598] sm:$0xf] %v603
        %v605 = vld [vmem:[%s598 + $0x4] sm:$0x1]
        %v606 = vsel %vm383, %v525, %v605
        %607 = vst [vmem:[%s598 + $0x4] sm:$0x1] %v606
        %v608 = vld [vmem:[%s598 + $0x8] sm:$0xf]
        %v609 = vsel %vm601, %v532, %v608
        %610 = vst [vmem:[%s598 + $0x8] sm:$0xf] %v609
        %v611 = vld [vmem:[%s598 + $0xc] sm:$0x1]
        %v612 = vsel %vm383, %v533, %v611
        %613 = vst [vmem:[%s598 + $0xc] sm:$0x1] %v612
        %v614 = vld [vmem:[%s598 + $0x10] sm:$0xf]
        %v615 = vsel %vm601, %v540, %v614
        %616 = vst [vmem:[%s598 + $0x10] sm:$0xf] %v615
        %v617 = vld [vmem:[%s598 + $0x14] sm:$0x1]
        %v618 = vsel %vm383, %v541, %v617
        %619 = vst [vmem:[%s598 + $0x14] sm:$0x1] %v618
        %v620 = vld [vmem:[%s598 + $0x18] sm:$0xf]
        %v621 = vsel %vm601, %v548, %v620
        %622 = vst [vmem:[%s598 + $0x18] sm:$0xf] %v621
        %v623 = vld [vmem:[%s598 + $0x1c] sm:$0x1]
        %v624 = vsel %vm383, %v549, %v623
        %625 = vst [vmem:[%s598 + $0x1c] sm:$0x1] %v624
        %v626 = vld [vmem:[%s598 + $0x20] sm:$0xf]
        %v627 = vsel %vm601, %v556, %v626
        %628 = vst [vmem:[%s598 + $0x20] sm:$0xf] %v627
        %v629 = vld [vmem:[%s598 + $0x24] sm:$0x1]
        %v630 = vsel %vm383, %v557, %v629
        %631 = vst [vmem:[%s598 + $0x24] sm:$0x1] %v630
        %v632 = vld [vmem:[%s598 + $0x28] sm:$0xf]
        %v633 = vsel %vm601, %v564, %v632
        %634 = vst [vmem:[%s598 + $0x28] sm:$0xf] %v633
        %v635 = vld [vmem:[%s598 + $0x2c] sm:$0x1]
        %v636 = vsel %vm383, %v565, %v635
        %637 = vst [vmem:[%s598 + $0x2c] sm:$0x1] %v636
        %v638 = vld [vmem:[%s598 + $0x30] sm:$0xf]
        %v639 = vsel %vm601, %v572, %v638
        %640 = vst [vmem:[%s598 + $0x30] sm:$0xf] %v639
        %v641 = vld [vmem:[%s598 + $0x34] sm:$0x1]
        %v642 = vsel %vm383, %v573, %v641
        %643 = vst [vmem:[%s598 + $0x34] sm:$0x1] %v642
        %v644 = vld [vmem:[%s598 + $0x38] sm:$0xf]
        %v645 = vsel %vm601, %v580, %v644
        %646 = vst [vmem:[%s598 + $0x38] sm:$0xf] %v645
        %v647 = vld [vmem:[%s598 + $0x3c] sm:$0x1]
        %v648 = vsel %vm383, %v581, %v647
        %649 = vst [vmem:[%s598 + $0x3c] sm:$0x1] %v648
        %v650 = vld [vmem:[#allocation2] sm:$0xf]
        %v651 = vld [vmem:[#allocation2 + $0x8] sm:$0xf]
        %v652 = vld [vmem:[#allocation2 + $0x10] sm:$0xf]
        %v653 = vld [vmem:[#allocation2 + $0x18] sm:$0xf]
        %v654 = vld [vmem:[#allocation2 + $0x20] sm:$0xf]
        %v655 = vld [vmem:[#allocation2 + $0x28] sm:$0xf]
        %v656 = vld [vmem:[#allocation2 + $0x30] sm:$0xf]
        %v657 = vld [vmem:[#allocation2 + $0x38] sm:$0xf]
        %v658 = vld [vmem:[%s2] sm:$0xf]
        %v659 = vld [vmem:[%s2 + $0x4] sm:$0xf]
        %v660 = vld [vmem:[%s2 + $0x8] sm:$0xf]
        %v661 = vld [vmem:[%s2 + $0xc] sm:$0xf]
        %v662 = vld [vmem:[#allocation2 + $0x4] sm:$0x1]
        %v663 = vld [vmem:[#allocation2 + $0xc] sm:$0x1]
        %v664 = vld [vmem:[#allocation2 + $0x14] sm:$0x1]
        %v665 = vld [vmem:[#allocation2 + $0x1c] sm:$0x1]
        %v666 = vld [vmem:[#allocation2 + $0x24] sm:$0x1]
        %v667 = vld [vmem:[#allocation2 + $0x2c] sm:$0x1]
        %v668 = vld [vmem:[#allocation2 + $0x34] sm:$0x1]
        %v669 = vld [vmem:[#allocation2 + $0x3c] sm:$0x1]
        %vm670 = vsmask.f32 3328
        %vm671 = vsmask.f32 7440
        %vm672 = vmor %vm670, %vm671
        %v674 = vshrl.u32 %v650, 16
        %v676 = vrot.slane %v674, 4
        %v677 = vshll.u32 %v650, 16
        %v679 = vrot.slane %v677, 5
        %v680 = vor.u32 %v676, %v679
        %v681 = vrot.slane %v680, 4
        %v683 = vshll.u32 %v662, 16
        %v685 = vrot.slane %v683, 5
        %v686 = vsel %vm672, %v681, %v685
        %v688 = vshrl.u32 %v651, 16
        %v690 = vrot.slane %v688, 4
        %v691 = vshll.u32 %v651, 16
        %v693 = vrot.slane %v691, 5
        %v694 = vor.u32 %v690, %v693
        %v695 = vrot.slane %v694, 4
        %v697 = vshll.u32 %v663, 16
        %v699 = vrot.slane %v697, 5
        %v700 = vsel %vm672, %v695, %v699
        %v702 = vshrl.u32 %v652, 16
        %v704 = vrot.slane %v702, 4
        %v705 = vshll.u32 %v652, 16
        %v707 = vrot.slane %v705, 5
        %v708 = vor.u32 %v704, %v707
        %v709 = vrot.slane %v708, 4
        %v711 = vshll.u32 %v664, 16
        %v713 = vrot.slane %v711, 5
        %v714 = vsel %vm672, %v709, %v713
        %v716 = vshrl.u32 %v653, 16
        %v718 = vrot.slane %v716, 4
        %v719 = vshll.u32 %v653, 16
        %v721 = vrot.slane %v719, 5
        %v722 = vor.u32 %v718, %v721
        %v723 = vrot.slane %v722, 4
        %v725 = vshll.u32 %v665, 16
        %v727 = vrot.slane %v725, 5
        %v728 = vsel %vm672, %v723, %v727
        %v730 = vshrl.u32 %v654, 16
        %v732 = vrot.slane %v730, 4
        %v733 = vshll.u32 %v654, 16
        %v735 = vrot.slane %v733, 5
        %v736 = vor.u32 %v732, %v735
        %v737 = vrot.slane %v736, 4
        %v739 = vshll.u32 %v666, 16
        %v741 = vrot.slane %v739, 5
        %v742 = vsel %vm672, %v737, %v741
        %v744 = vshrl.u32 %v655, 16
        %v746 = vrot.slane %v744, 4
        %v747 = vshll.u32 %v655, 16
        %v749 = vrot.slane %v747, 5
        %v750 = vor.u32 %v746, %v749
        %v751 = vrot.slane %v750, 4
        %v753 = vshll.u32 %v667, 16
        %v755 = vrot.slane %v753, 5
        %v756 = vsel %vm672, %v751, %v755
        %v758 = vshrl.u32 %v656, 16
        %v760 = vrot.slane %v758, 4
        %v761 = vshll.u32 %v656, 16
        %v763 = vrot.slane %v761, 5
        %v764 = vor.u32 %v760, %v763
        %v765 = vrot.slane %v764, 4
        %v767 = vshll.u32 %v668, 16
        %v769 = vrot.slane %v767, 5
        %v770 = vsel %vm672, %v765, %v769
        %v772 = vshrl.u32 %v657, 16
        %v774 = vrot.slane %v772, 4
        %v775 = vshll.u32 %v657, 16
        %v777 = vrot.slane %v775, 5
        %v778 = vor.u32 %v774, %v777
        %v779 = vrot.slane %v778, 4
        %v781 = vshll.u32 %v669, 16
        %v783 = vrot.slane %v781, 5
        %v784 = vsel %vm672, %v779, %v783
        %s785 = scalar_lea.vmem %s2, 16
        %v786 = vld [vmem:[%s785] sm:$0xf]
        %v787 = vld [vmem:[%s785 + $0x4] sm:$0xf]
        %v788 = vld [vmem:[%s785 + $0x8] sm:$0xf]
        %v789 = vld [vmem:[%s785 + $0xc] sm:$0xf]
        %v790 = vunpack.c.l.b16 %v686
        %v791 = vunpack.c.l.b16 %v700
        %v792 = vunpack.c.l.b16 %v714
        %v793 = vunpack.c.l.b16 %v728
        %v794 = vunpack.c.l.b16 %v742
        %v795 = vunpack.c.l.b16 %v756
        %v796 = vunpack.c.l.b16 %v770
        %v797 = vunpack.c.l.b16 %v784
        %v798 = vpack.c.b16 %v791, %v790
        %v799 = vpack.c.b16 %v793, %v792
        %v800 = vpack.c.b16 %v795, %v794
        %v801 = vpack.c.b16 %v797, %v796
        %v806 = vunpack.c.l.b16 %v786
        %v807 = vunpack.c.l.b16 %v787
        %v808 = vunpack.c.l.b16 %v788
        %v809 = vunpack.c.l.b16 %v789
        %v810 = vpack.c.b16 %v807, %v806
        %v811 = vpack.c.b16 %v809, %v808
        %vm814 = vcmask 261120
        %v816 = vsel %vm814, %v798, 0
        %v819 = vsel %vm814, %v799, 0
        %v822 = vsel %vm814, %v800, 0
        %v825 = vsel %vm814, %v801, 0
        %827 = vmatprep.subr.bf16.mxu0 0
        %828 = vmatpush1.bf16.msra.mxu0 %v810
        %829 = vmatprep.subr.bf16.mxu0 0
        %830 = vmatpush1.bf16.msra.mxu0 %v811
        %831 = vmatprep.subr.bf16.mxu0 0
        %832 = vmatpush1.bf16.msra.mxu0 0
        %833 = vmatprep.subr.bf16.mxu0 0
        %834 = vmatpush1.bf16.msra.mxu0 0
        %835 = vmatprep.subr.bf16.mxu0 0
        %836 = vmatpush1.bf16.msra.mxu0 0
        %837 = vmatprep.subr.bf16.mxu0 0
        %838 = vmatpush1.bf16.msra.mxu0 0
        %839 = vmatprep.subr.bf16.mxu0 0
        %840 = vmatpush1.bf16.msra.mxu0 0
        %841 = vmatprep.subr.bf16.mxu0 0
        %842 = vmatpush1.bf16.msra.mxu0 0
        %843 = vmatprep.subr.bf16.mxu0 0
        %844 = vmatpush1.bf16.msra.mxu0 0
        %845 = vmatprep.subr.bf16.mxu0 0
        %846 = vmatpush1.bf16.msra.mxu0 0
        %847 = vmatprep.subr.bf16.mxu0 0
        %848 = vmatpush1.bf16.msra.mxu0 0
        %849 = vmatprep.subr.bf16.mxu0 0
        %850 = vmatpush1.bf16.msra.mxu0 0
        %851 = vmatprep.subr.bf16.mxu0 0
        %852 = vmatpush1.bf16.msra.mxu0 0
        %853 = vmatprep.subr.bf16.mxu0 0
        %854 = vmatpush1.bf16.msra.mxu0 0
        %855 = vmatprep.subr.bf16.mxu0 0
        %856 = vmatpush1.bf16.msra.mxu0 0
        %857 = vmatprep.subr.bf16.mxu0 0
        %858 = vmatpush1.bf16.msra.mxu0 0
        %859 = vmatprep.mubr.bf16.mxu0 0
        %860 = vmatmul.mubr.bf16.gmra.mrb[0].mxu0 %v816
        %v861 = vpop.f32.mrb[0].mxu0
        %v862 = vadd.f32 0.0, %v861
        %v863 = vpop.f32.mrb[0].mxu0
        %v864 = vpop.f32.mrb[0].mxu0
        %v865 = vadd.f32 0.0, %v864
        %v866 = vpop.f32.mrb[0].mxu0
        %867 = vmatprep.mubr.bf16.mxu0 0
        %868 = vmatmul.mubr.bf16.gmra.mrb[0].mxu0 %v819
        %v869 = vpop.f32.mrb[0].mxu0
        %v870 = vadd.f32 0.0, %v869
        %v871 = vpop.f32.mrb[0].mxu0
        %v872 = vpop.f32.mrb[0].mxu0
        %v873 = vadd.f32 0.0, %v872
        %v874 = vpop.f32.mrb[0].mxu0
        %875 = vmatprep.mubr.bf16.mxu0 0
        %876 = vmatmul.mubr.bf16.gmra.mrb[0].mxu0 %v822
        %v877 = vpop.f32.mrb[0].mxu0
        %v878 = vadd.f32 0.0, %v877
        %v879 = vpop.f32.mrb[0].mxu0
        %v880 = vpop.f32.mrb[0].mxu0
        %v881 = vadd.f32 0.0, %v880
        %v882 = vpop.f32.mrb[0].mxu0
        %883 = vmatprep.mubr.bf16.mxu0 0
        %884 = vmatmul.mubr.bf16.gmra.mrb[0].mxu0 %v825
        %v885 = vpop.f32.mrb[0].mxu0
        %v886 = vadd.f32 0.0, %v885
        %v887 = vpop.f32.mrb[0].mxu0
        %v888 = vpop.f32.mrb[0].mxu0
        %v889 = vadd.f32 0.0, %v888
        %v890 = vpop.f32.mrb[0].mxu0
        %891 = vdwg.mxu0
        %v900 = vunpack.c.l.b16 %v650
        %v901 = vunpack.c.l.b16 %v651
        %v902 = vunpack.c.l.b16 %v652
        %v903 = vunpack.c.l.b16 %v653
        %v904 = vunpack.c.l.b16 %v654
        %v905 = vunpack.c.l.b16 %v655
        %v906 = vunpack.c.l.b16 %v656
        %v907 = vunpack.c.l.b16 %v657
        %v908 = vpack.c.b16 %v901, %v900
        %v909 = vpack.c.b16 %v903, %v902
        %v910 = vpack.c.b16 %v905, %v904
        %v911 = vpack.c.b16 %v907, %v906
        %v916 = vunpack.c.l.b16 %v658
        %v917 = vunpack.c.l.b16 %v659
        %v918 = vunpack.c.l.b16 %v660
        %v919 = vunpack.c.l.b16 %v661
        %v920 = vpack.c.b16 %v917, %v916
        %v921 = vpack.c.b16 %v919, %v918
        %v925 = vsel %vm814, %v908, 0
        %v928 = vsel %vm814, %v909, 0
        %v931 = vsel %vm814, %v910, 0
        %v934 = vsel %vm814, %v911, 0
        %936 = vmatprep.subr.bf16.mxu0 0
        %937 = vmatpush1.bf16.msra.mxu0 %v920
        %938 = vmatprep.subr.bf16.mxu0 0
        %939 = vmatpush1.bf16.msra.mxu0 %v921
        %940 = vmatprep.subr.bf16.mxu0 0
        %941 = vmatpush1.bf16.msra.mxu0 0
        %942 = vmatprep.subr.bf16.mxu0 0
        %943 = vmatpush1.bf16.msra.mxu0 0
        %944 = vmatprep.subr.bf16.mxu0 0
        %945 = vmatpush1.bf16.msra.mxu0 0
        %946 = vmatprep.subr.bf16.mxu0 0
        %947 = vmatpush1.bf16.msra.mxu0 0
        %948 = vmatprep.subr.bf16.mxu0 0
        %949 = vmatpush1.bf16.msra.mxu0 0
        %950 = vmatprep.subr.bf16.mxu0 0
        %951 = vmatpush1.bf16.msra.mxu0 0
        %952 = vmatprep.subr.bf16.mxu0 0
        %953 = vmatpush1.bf16.msra.mxu0 0
        %954 = vmatprep.subr.bf16.mxu0 0
        %955 = vmatpush1.bf16.msra.mxu0 0
        %956 = vmatprep.subr.bf16.mxu0 0
        %957 = vmatpush1.bf16.msra.mxu0 0
        %958 = vmatprep.subr.bf16.mxu0 0
        %959 = vmatpush1.bf16.msra.mxu0 0
        %960 = vmatprep.subr.bf16.mxu0 0
        %961 = vmatpush1.bf16.msra.mxu0 0
        %962 = vmatprep.subr.bf16.mxu0 0
        %963 = vmatpush1.bf16.msra.mxu0 0
        %964 = vmatprep.subr.bf16.mxu0 0
        %965 = vmatpush1.bf16.msra.mxu0 0
        %966 = vmatprep.subr.bf16.mxu0 0
        %967 = vmatpush1.bf16.msra.mxu0 0
        %968 = vmatprep.mubr.bf16.mxu0 0
        %969 = vmatmul.mubr.bf16.gmra.mrb[0].mxu0 %v925
        %v970 = vpop.f32.mrb[0].mxu0
        %v971 = vadd.f32 %v862, %v970
        %v972 = vpop.f32.mrb[0].mxu0
        %v973 = vpop.f32.mrb[0].mxu0
        %v974 = vadd.f32 %v865, %v973
        %v975 = vpop.f32.mrb[0].mxu0
        %976 = vmatprep.mubr.bf16.mxu0 0
        %977 = vmatmul.mubr.bf16.gmra.mrb[0].mxu0 %v928
        %v978 = vpop.f32.mrb[0].mxu0
        %v979 = vadd.f32 %v870, %v978
        %v980 = vpop.f32.mrb[0].mxu0
        %v981 = vpop.f32.mrb[0].mxu0
        %v982 = vadd.f32 %v873, %v981
        %v983 = vpop.f32.mrb[0].mxu0
        %984 = vmatprep.mubr.bf16.mxu0 0
        %985 = vmatmul.mubr.bf16.gmra.mrb[0].mxu0 %v931
        %v986 = vpop.f32.mrb[0].mxu0
        %v987 = vadd.f32 %v878, %v986
        %v988 = vpop.f32.mrb[0].mxu0
        %v989 = vpop.f32.mrb[0].mxu0
        %v990 = vadd.f32 %v881, %v989
        %v991 = vpop.f32.mrb[0].mxu0
        %992 = vmatprep.mubr.bf16.mxu0 0
        %993 = vmatmul.mubr.bf16.gmra.mrb[0].mxu0 %v934
        %v994 = vpop.f32.mrb[0].mxu0
        %v995 = vadd.f32 %v886, %v994
        %v996 = vpop.f32.mrb[0].mxu0
        %v997 = vpop.f32.mrb[0].mxu0
        %v998 = vadd.f32 %v889, %v997
        %v999 = vpop.f32.mrb[0].mxu0
        %1000 = vdwg.mxu0
        %v1001 = vld [vmem:[%s598] sm:$0xf]
        %v1002 = vld [vmem:[%s598 + $0x8] sm:$0xf]
        %v1003 = vld [vmem:[%s598 + $0x10] sm:$0xf]
        %v1004 = vld [vmem:[%s598 + $0x18] sm:$0xf]
        %v1005 = vld [vmem:[%s598 + $0x20] sm:$0xf]
        %v1006 = vld [vmem:[%s598 + $0x28] sm:$0xf]
        %v1007 = vld [vmem:[%s598 + $0x30] sm:$0xf]
        %v1008 = vld [vmem:[%s598 + $0x38] sm:$0xf]
        %s1009 = scalar_lea.vmem %s2, 32
        %v1010 = vld [vmem:[%s1009] sm:$0xf]
        %v1011 = vld [vmem:[%s1009 + $0x4] sm:$0xf]
        %v1012 = vld [vmem:[%s1009 + $0x8] sm:$0xf]
        %v1013 = vld [vmem:[%s1009 + $0xc] sm:$0xf]
        %v1022 = vunpack.c.l.b16 %v1001
        %v1023 = vunpack.c.l.b16 %v1002
        %v1024 = vunpack.c.l.b16 %v1003
        %v1025 = vunpack.c.l.b16 %v1004
        %v1026 = vunpack.c.l.b16 %v1005
        %v1027 = vunpack.c.l.b16 %v1006
        %v1028 = vunpack.c.l.b16 %v1007
        %v1029 = vunpack.c.l.b16 %v1008
        %v1030 = vpack.c.b16 %v1023, %v1022
        %v1031 = vpack.c.b16 %v1025, %v1024
        %v1032 = vpack.c.b16 %v1027, %v1026
        %v1033 = vpack.c.b16 %v1029, %v1028
        %v1038 = vunpack.c.l.b16 %v1010
        %v1039 = vunpack.c.l.b16 %v1011
        %v1040 = vunpack.c.l.b16 %v1012
        %v1041 = vunpack.c.l.b16 %v1013
        %v1042 = vpack.c.b16 %v1039, %v1038
        %v1043 = vpack.c.b16 %v1041, %v1040
        %v1047 = vsel %vm814, %v1030, 0
        %v1050 = vsel %vm814, %v1031, 0
        %v1053 = vsel %vm814, %v1032, 0
        %v1056 = vsel %vm814, %v1033, 0
        %1058 = vmatprep.subr.bf16.mxu0 0
        %1059 = vmatpush1.bf16.msra.mxu0 %v1042
        %1060 = vmatprep.subr.bf16.mxu0 0
        %1061 = vmatpush1.bf16.msra.mxu0 %v1043
        %1062 = vmatprep.subr.bf16.mxu0 0
        %1063 = vmatpush1.bf16.msra.mxu0 0
        %1064 = vmatprep.subr.bf16.mxu0 0
        %1065 = vmatpush1.bf16.msra.mxu0 0
        %1066 = vmatprep.subr.bf16.mxu0 0
        %1067 = vmatpush1.bf16.msra.mxu0 0
        %1068 = vmatprep.subr.bf16.mxu0 0
        %1069 = vmatpush1.bf16.msra.mxu0 0
        %1070 = vmatprep.subr.bf16.mxu0 0
        %1071 = vmatpush1.bf16.msra.mxu0 0
        %1072 = vmatprep.subr.bf16.mxu0 0
        %1073 = vmatpush1.bf16.msra.mxu0 0
        %1074 = vmatprep.subr.bf16.mxu0 0
        %1075 = vmatpush1.bf16.msra.mxu0 0
        %1076 = vmatprep.subr.bf16.mxu0 0
        %1077 = vmatpush1.bf16.msra.mxu0 0
        %1078 = vmatprep.subr.bf16.mxu0 0
        %1079 = vmatpush1.bf16.msra.mxu0 0
        %1080 = vmatprep.subr.bf16.mxu0 0
        %1081 = vmatpush1.bf16.msra.mxu0 0
        %1082 = vmatprep.subr.bf16.mxu0 0
        %1083 = vmatpush1.bf16.msra.mxu0 0
        %1084 = vmatprep.subr.bf16.mxu0 0
        %1085 = vmatpush1.bf16.msra.mxu0 0
        %1086 = vmatprep.subr.bf16.mxu0 0
        %1087 = vmatpush1.bf16.msra.mxu0 0
        %1088 = vmatprep.subr.bf16.mxu0 0
        %1089 = vmatpush1.bf16.msra.mxu0 0
        %1090 = vmatprep.mubr.bf16.mxu0 0
        %1091 = vmatmul.mubr.bf16.gmra.mrb[0].mxu0 %v1047
        %v1092 = vpop.f32.mrb[0].mxu0
        %v1093 = vadd.f32 0.0, %v1092
        %v1094 = vpop.f32.mrb[0].mxu0
        %v1095 = vpop.f32.mrb[0].mxu0
        %v1096 = vadd.f32 0.0, %v1095
        %v1097 = vpop.f32.mrb[0].mxu0
        %1098 = vmatprep.mubr.bf16.mxu0 0
        %1099 = vmatmul.mubr.bf16.gmra.mrb[0].mxu0 %v1050
        %v1100 = vpop.f32.mrb[0].mxu0
        %v1101 = vadd.f32 0.0, %v1100
        %v1102 = vpop.f32.mrb[0].mxu0
        %v1103 = vpop.f32.mrb[0].mxu0
        %v1104 = vadd.f32 0.0, %v1103
        %v1105 = vpop.f32.mrb[0].mxu0
        %1106 = vmatprep.mubr.bf16.mxu0 0
        %1107 = vmatmul.mubr.bf16.gmra.mrb[0].mxu0 %v1053
        %v1108 = vpop.f32.mrb[0].mxu0
        %v1109 = vadd.f32 0.0, %v1108
        %v1110 = vpop.f32.mrb[0].mxu0
        %v1111 = vpop.f32.mrb[0].mxu0
        %v1112 = vadd.f32 0.0, %v1111
        %v1113 = vpop.f32.mrb[0].mxu0
        %1114 = vmatprep.mubr.bf16.mxu0 0
        %1115 = vmatmul.mubr.bf16.gmra.mrb[0].mxu0 %v1056
        %v1116 = vpop.f32.mrb[0].mxu0
        %v1117 = vadd.f32 0.0, %v1116
        %v1118 = vpop.f32.mrb[0].mxu0
        %v1119 = vpop.f32.mrb[0].mxu0
        %v1120 = vadd.f32 0.0, %v1119
        %v1121 = vpop.f32.mrb[0].mxu0
        %1122 = vdwg.mxu0
        %v1123 = vadd.f32 %v971, %v1093
        %v1124 = vadd.f32 %v974, %v1096
        %v1125 = vadd.f32 %v979, %v1101
        %v1126 = vadd.f32 %v982, %v1104
        %v1127 = vadd.f32 %v987, %v1109
        %v1128 = vadd.f32 %v990, %v1112
        %v1129 = vadd.f32 %v995, %v1117
        %v1130 = vadd.f32 %v998, %v1120
        %v1131 = vld [vmem:[%s598] sm:$0xf]
        %v1132 = vld [vmem:[%s598 + $0x4] sm:$0x1]
        %v1133 = vld [vmem:[%s598 + $0x8] sm:$0xf]
        %v1134 = vld [vmem:[%s598 + $0xc] sm:$0x1]
        %v1135 = vld [vmem:[%s598 + $0x10] sm:$0xf]
        %v1136 = vld [vmem:[%s598 + $0x14] sm:$0x1]
        %v1137 = vld [vmem:[%s598 + $0x18] sm:$0xf]
        %v1138 = vld [vmem:[%s598 + $0x1c] sm:$0x1]
        %v1139 = vld [vmem:[%s598 + $0x20] sm:$0xf]
        %v1140 = vld [vmem:[%s598 + $0x24] sm:$0x1]
        %v1141 = vld [vmem:[%s598 + $0x28] sm:$0xf]
        %v1142 = vld [vmem:[%s598 + $0x2c] sm:$0x1]
        %v1143 = vld [vmem:[%s598 + $0x30] sm:$0xf]
        %v1144 = vld [vmem:[%s598 + $0x34] sm:$0x1]
        %v1145 = vld [vmem:[%s598 + $0x38] sm:$0xf]
        %v1146 = vld [vmem:[%s598 + $0x3c] sm:$0x1]
        %v1148 = vshrl.u32 %v1131, 16
        %v1150 = vrot.slane %v1148, 4
        %v1151 = vshll.u32 %v1131, 16
        %v1153 = vrot.slane %v1151, 5
        %v1154 = vor.u32 %v1150, %v1153
        %v1155 = vrot.slane %v1154, 4
        %v1157 = vshll.u32 %v1132, 16
        %v1159 = vrot.slane %v1157, 5
        %v1160 = vsel %vm672, %v1155, %v1159
        %v1162 = vshrl.u32 %v1133, 16
        %v1164 = vrot.slane %v1162, 4
        %v1165 = vshll.u32 %v1133, 16
        %v1167 = vrot.slane %v1165, 5
        %v1168 = vor.u32 %v1164, %v1167
        %v1169 = vrot.slane %v1168, 4
        %v1171 = vshll.u32 %v1134, 16
        %v1173 = vrot.slane %v1171, 5
        %v1174 = vsel %vm672, %v1169, %v1173
        %v1176 = vshrl.u32 %v1135, 16
        %v1178 = vrot.slane %v1176, 4
        %v1179 = vshll.u32 %v1135, 16
        %v1181 = vrot.slane %v1179, 5
        %v1182 = vor.u32 %v1178, %v1181
        %v1183 = vrot.slane %v1182, 4
        %v1185 = vshll.u32 %v1136, 16
        %v1187 = vrot.slane %v1185, 5
        %v1188 = vsel %vm672, %v1183, %v1187
        %v1190 = vshrl.u32 %v1137, 16
        %v1192 = vrot.slane %v1190, 4
        %v1193 = vshll.u32 %v1137, 16
        %v1195 = vrot.slane %v1193, 5
        %v1196 = vor.u32 %v1192, %v1195
        %v1197 = vrot.slane %v1196, 4
        %v1199 = vshll.u32 %v1138, 16
        %v1201 = vrot.slane %v1199, 5
        %v1202 = vsel %vm672, %v1197, %v1201
        %v1204 = vshrl.u32 %v1139, 16
        %v1206 = vrot.slane %v1204, 4
        %v1207 = vshll.u32 %v1139, 16
        %v1209 = vrot.slane %v1207, 5
        %v1210 = vor.u32 %v1206, %v1209
        %v1211 = vrot.slane %v1210, 4
        %v1213 = vshll.u32 %v1140, 16
        %v1215 = vrot.slane %v1213, 5
        %v1216 = vsel %vm672, %v1211, %v1215
        %v1218 = vshrl.u32 %v1141, 16
        %v1220 = vrot.slane %v1218, 4
        %v1221 = vshll.u32 %v1141, 16
        %v1223 = vrot.slane %v1221, 5
        %v1224 = vor.u32 %v1220, %v1223
        %v1225 = vrot.slane %v1224, 4
        %v1227 = vshll.u32 %v1142, 16
        %v1229 = vrot.slane %v1227, 5
        %v1230 = vsel %vm672, %v1225, %v1229
        %v1232 = vshrl.u32 %v1143, 16
        %v1234 = vrot.slane %v1232, 4
        %v1235 = vshll.u32 %v1143, 16
        %v1237 = vrot.slane %v1235, 5
        %v1238 = vor.u32 %v1234, %v1237
        %v1239 = vrot.slane %v1238, 4
        %v1241 = vshll.u32 %v1144, 16
        %v1243 = vrot.slane %v1241, 5
        %v1244 = vsel %vm672, %v1239, %v1243
        %v1246 = vshrl.u32 %v1145, 16
        %v1248 = vrot.slane %v1246, 4
        %v1249 = vshll.u32 %v1145, 16
        %v1251 = vrot.slane %v1249, 5
        %v1252 = vor.u32 %v1248, %v1251
        %v1253 = vrot.slane %v1252, 4
        %v1255 = vshll.u32 %v1146, 16
        %v1257 = vrot.slane %v1255, 5
        %v1258 = vsel %vm672, %v1253, %v1257
        %s1259 = scalar_lea.vmem %s2, 48
        %v1260 = vld [vmem:[%s1259] sm:$0xf]
        %v1261 = vld [vmem:[%s1259 + $0x4] sm:$0xf]
        %v1262 = vld [vmem:[%s1259 + $0x8] sm:$0xf]
        %v1263 = vld [vmem:[%s1259 + $0xc] sm:$0xf]
        %v1264 = vunpack.c.l.b16 %v1160
        %v1265 = vunpack.c.l.b16 %v1174
        %v1266 = vunpack.c.l.b16 %v1188
        %v1267 = vunpack.c.l.b16 %v1202
        %v1268 = vunpack.c.l.b16 %v1216
        %v1269 = vunpack.c.l.b16 %v1230
        %v1270 = vunpack.c.l.b16 %v1244
        %v1271 = vunpack.c.l.b16 %v1258
        %v1272 = vpack.c.b16 %v1265, %v1264
        %v1273 = vpack.c.b16 %v1267, %v1266
        %v1274 = vpack.c.b16 %v1269, %v1268
        %v1275 = vpack.c.b16 %v1271, %v1270
        %v1280 = vunpack.c.l.b16 %v1260
        %v1281 = vunpack.c.l.b16 %v1261
        %v1282 = vunpack.c.l.b16 %v1262
        %v1283 = vunpack.c.l.b16 %v1263
        %v1284 = vpack.c.b16 %v1281, %v1280
        %v1285 = vpack.c.b16 %v1283, %v1282
        %v1289 = vsel %vm814, %v1272, 0
        %v1292 = vsel %vm814, %v1273, 0
        %v1295 = vsel %vm814, %v1274, 0
        %v1298 = vsel %vm814, %v1275, 0
        %1300 = vmatprep.subr.bf16.mxu0 0
        %1301 = vmatpush1.bf16.msra.mxu0 %v1284
        %1302 = vmatprep.subr.bf16.mxu0 0
        %1303 = vmatpush1.bf16.msra.mxu0 %v1285
        %1304 = vmatprep.subr.bf16.mxu0 0
        %1305 = vmatpush1.bf16.msra.mxu0 0
        %1306 = vmatprep.subr.bf16.mxu0 0
        %1307 = vmatpush1.bf16.msra.mxu0 0
        %1308 = vmatprep.subr.bf16.mxu0 0
        %1309 = vmatpush1.bf16.msra.mxu0 0
        %1310 = vmatprep.subr.bf16.mxu0 0
        %1311 = vmatpush1.bf16.msra.mxu0 0
        %1312 = vmatprep.subr.bf16.mxu0 0
        %1313 = vmatpush1.bf16.msra.mxu0 0
        %1314 = vmatprep.subr.bf16.mxu0 0
        %1315 = vmatpush1.bf16.msra.mxu0 0
        %1316 = vmatprep.subr.bf16.mxu0 0
        %1317 = vmatpush1.bf16.msra.mxu0 0
        %1318 = vmatprep.subr.bf16.mxu0 0
        %1319 = vmatpush1.bf16.msra.mxu0 0
        %1320 = vmatprep.subr.bf16.mxu0 0
        %1321 = vmatpush1.bf16.msra.mxu0 0
        %1322 = vmatprep.subr.bf16.mxu0 0
        %1323 = vmatpush1.bf16.msra.mxu0 0
        %1324 = vmatprep.subr.bf16.mxu0 0
        %1325 = vmatpush1.bf16.msra.mxu0 0
        %1326 = vmatprep.subr.bf16.mxu0 0
        %1327 = vmatpush1.bf16.msra.mxu0 0
        %1328 = vmatprep.subr.bf16.mxu0 0
        %1329 = vmatpush1.bf16.msra.mxu0 0
        %1330 = vmatprep.subr.bf16.mxu0 0
        %1331 = vmatpush1.bf16.msra.mxu0 0
        %1332 = vmatprep.mubr.bf16.mxu0 0
        %1333 = vmatmul.mubr.bf16.gmra.mrb[0].mxu0 %v1289
        %v1334 = vpop.f32.mrb[0].mxu0
        %v1335 = vadd.f32 0.0, %v1334
        %v1336 = vpop.f32.mrb[0].mxu0
        %v1337 = vpop.f32.mrb[0].mxu0
        %v1338 = vadd.f32 0.0, %v1337
        %v1339 = vpop.f32.mrb[0].mxu0
        %1340 = vmatprep.mubr.bf16.mxu0 0
        %1341 = vmatmul.mubr.bf16.gmra.mrb[0].mxu0 %v1292
        %v1342 = vpop.f32.mrb[0].mxu0
        %v1343 = vadd.f32 0.0, %v1342
        %v1344 = vpop.f32.mrb[0].mxu0
        %v1345 = vpop.f32.mrb[0].mxu0
        %v1346 = vadd.f32 0.0, %v1345
        %v1347 = vpop.f32.mrb[0].mxu0
        %1348 = vmatprep.mubr.bf16.mxu0 0
        %1349 = vmatmul.mubr.bf16.gmra.mrb[0].mxu0 %v1295
        %v1350 = vpop.f32.mrb[0].mxu0
        %v1351 = vadd.f32 0.0, %v1350
        %v1352 = vpop.f32.mrb[0].mxu0
        %v1353 = vpop.f32.mrb[0].mxu0
        %v1354 = vadd.f32 0.0, %v1353
        %v1355 = vpop.f32.mrb[0].mxu0
        %1356 = vmatprep.mubr.bf16.mxu0 0
        %1357 = vmatmul.mubr.bf16.gmra.mrb[0].mxu0 %v1298
        %v1358 = vpop.f32.mrb[0].mxu0
        %v1359 = vadd.f32 0.0, %v1358
        %v1360 = vpop.f32.mrb[0].mxu0
        %v1361 = vpop.f32.mrb[0].mxu0
        %v1362 = vadd.f32 0.0, %v1361
        %v1363 = vpop.f32.mrb[0].mxu0
        %1364 = vdwg.mxu0
        %v1365 = vadd.f32 %v1123, %v1335
        %v1366 = vadd.f32 %v1124, %v1338
        %v1367 = vadd.f32 %v1125, %v1343
        %v1368 = vadd.f32 %v1126, %v1346
        %v1369 = vadd.f32 %v1127, %v1351
        %v1370 = vadd.f32 %v1128, %v1354
        %v1371 = vadd.f32 %v1129, %v1359
        %v1372 = vadd.f32 %v1130, %v1362
        %v1373 = vld [vmem:[%s6] sm:$0x1]
        %v1375 = vlaneseq
        %v1376 = vshrl.u32 %v1375, 7
        %v1377 = vsub.s32 0, %v1376
        %v1378 = vrot.slane %v1373, %v1377
        %v1380 = vmul.f32 %v1365, %v1378
        %v1381 = vmul.f32 %v1366, %v1378
        %v1382 = vmul.f32 %v1367, %v1378
        %v1383 = vmul.f32 %v1368, %v1378
        %v1384 = vmul.f32 %v1369, %v1378
        %v1385 = vmul.f32 %v1370, %v1378
        %v1386 = vmul.f32 %v1371, %v1378
        %v1387 = vmul.f32 %v1372, %v1378
        %v1388 = vld [vmem:[%s7] sm:$0x1]
        %v1390 = vlaneseq
        %v1391 = vshrl.u32 %v1390, 7
        %v1392 = vsub.s32 0, %v1391
        %v1393 = vrot.slane %v1388, %v1392
        %v1395 = vadd.f32 %v1380, %v1393
        %v1396 = vadd.f32 %v1381, %v1393
        %v1397 = vadd.f32 %v1382, %v1393
        %v1398 = vadd.f32 %v1383, %v1393
        %v1399 = vadd.f32 %v1384, %v1393
        %v1400 = vadd.f32 %v1385, %v1393
        %v1401 = vadd.f32 %v1386, %v1393
        %v1402 = vadd.f32 %v1387, %v1393
        %v1403 = vmax.f32 %v1395, 0.0
        %v1404 = vmax.f32 %v1396, 0.0
        %v1405 = vmax.f32 %v1397, 0.0
        %v1406 = vmax.f32 %v1398, 0.0
        %v1407 = vmax.f32 %v1399, 0.0
        %v1408 = vmax.f32 %v1400, 0.0
        %v1409 = vmax.f32 %v1401, 0.0
        %v1410 = vmax.f32 %v1402, 0.0
        %v1411 = vld [vmem:[%s377] sm:$0xff]
        %v1412 = vld [vmem:[%s377 + $0x8] sm:$0xff]
        %v1413 = vld [vmem:[%s377 + $0x10] sm:$0xff]
        %v1414 = vld [vmem:[%s377 + $0x18] sm:$0xff]
        %v1415 = vld [vmem:[%s377 + $0x20] sm:$0xff]
        %v1416 = vld [vmem:[%s377 + $0x28] sm:$0xff]
        %v1417 = vld [vmem:[%s377 + $0x30] sm:$0xff]
        %v1418 = vld [vmem:[%s377 + $0x38] sm:$0xff]
        %v1419 = vld [vmem:[%s8] sm:$0x1]
        %v1421 = vlaneseq
        %v1422 = vshrl.u32 %v1421, 7
        %v1423 = vsub.s32 0, %v1422
        %v1424 = vrot.slane %v1419, %v1423
        %v1426 = vmul.f32 %v1411, %v1424
        %v1427 = vmul.f32 %v1412, %v1424
        %v1428 = vmul.f32 %v1413, %v1424
        %v1429 = vmul.f32 %v1414, %v1424
        %v1430 = vmul.f32 %v1415, %v1424
        %v1431 = vmul.f32 %v1416, %v1424
        %v1432 = vmul.f32 %v1417, %v1424
        %v1433 = vmul.f32 %v1418, %v1424
        %v1434 = vld [vmem:[%s9] sm:$0x1]
        %v1436 = vlaneseq
        %v1437 = vshrl.u32 %v1436, 7
        %v1438 = vsub.s32 0, %v1437
        %v1439 = vrot.slane %v1434, %v1438
        %v1441 = vadd.f32 %v1426, %v1439
        %v1442 = vadd.f32 %v1427, %v1439
        %v1443 = vadd.f32 %v1428, %v1439
        %v1444 = vadd.f32 %v1429, %v1439
        %v1445 = vadd.f32 %v1430, %v1439
        %v1446 = vadd.f32 %v1431, %v1439
        %v1447 = vadd.f32 %v1432, %v1439
        %v1448 = vadd.f32 %v1433, %v1439
        %v1449 = vmax.f32 %v1441, 0.0
        %v1450 = vmax.f32 %v1442, 0.0
        %v1451 = vmax.f32 %v1443, 0.0
        %v1452 = vmax.f32 %v1444, 0.0
        %v1453 = vmax.f32 %v1445, 0.0
        %v1454 = vmax.f32 %v1446, 0.0
        %v1455 = vmax.f32 %v1447, 0.0
        %v1456 = vmax.f32 %v1448, 0.0
        %1465 = vrot.lane.b32.xlu0 %v1449, 16
        %v1466 = vpop.permute.xlu0 %1465
        %1467 = vrot.lane.b32.xlu0 %v1450, 16
        %v1468 = vpop.permute.xlu0 %1467
        %1469 = vrot.lane.b32.xlu0 %v1451, 16
        %v1470 = vpop.permute.xlu0 %1469
        %1471 = vrot.lane.b32.xlu0 %v1452, 16
        %v1472 = vpop.permute.xlu0 %1471
        %1473 = vrot.lane.b32.xlu0 %v1453, 16
        %v1474 = vpop.permute.xlu0 %1473
        %1475 = vrot.lane.b32.xlu0 %v1454, 16
        %v1476 = vpop.permute.xlu0 %1475
        %1477 = vrot.lane.b32.xlu0 %v1455, 16
        %v1478 = vpop.permute.xlu0 %1477
        %1479 = vrot.lane.b32.xlu0 %v1456, 16
        %v1480 = vpop.permute.xlu0 %1479
        %vm1489 = vcmask 130048
        %v1490 = vsel %vm1489, %v1403, %v1466
        %v1491 = vsel %vm1489, %v1404, %v1468
        %v1492 = vsel %vm1489, %v1405, %v1470
        %v1493 = vsel %vm1489, %v1406, %v1472
        %v1494 = vsel %vm1489, %v1407, %v1474
        %v1495 = vsel %vm1489, %v1408, %v1476
        %v1496 = vsel %vm1489, %v1409, %v1478
        %v1497 = vsel %vm1489, %v1410, %v1480
        %v1498 = vpack.c.bf16 %v1490, %v1490
        %v1499 = vpack.c.bf16 %v1491, %v1491
        %v1500 = vpack.c.bf16 %v1492, %v1492
        %v1501 = vpack.c.bf16 %v1493, %v1493
        %v1502 = vpack.c.bf16 %v1494, %v1494
        %v1503 = vpack.c.bf16 %v1495, %v1495
        %v1504 = vpack.c.bf16 %v1496, %v1496
        %v1505 = vpack.c.bf16 %v1497, %v1497
        %v1514 = vunpack.c.l.b16 %v1498
        %v1515 = vunpack.c.l.b16 %v1499
        %v1516 = vunpack.c.l.b16 %v1500
        %v1517 = vunpack.c.l.b16 %v1501
        %v1518 = vunpack.c.l.b16 %v1502
        %v1519 = vunpack.c.l.b16 %v1503
        %v1520 = vunpack.c.l.b16 %v1504
        %v1521 = vunpack.c.l.b16 %v1505
        %v1522 = vpack.c.b16 %v1514, %v1514
        %v1523 = vpack.c.b16 %v1515, %v1515
        %v1524 = vpack.c.b16 %v1516, %v1516
        %v1525 = vpack.c.b16 %v1517, %v1517
        %v1526 = vpack.c.b16 %v1518, %v1518
        %v1527 = vpack.c.b16 %v1519, %v1519
        %v1528 = vpack.c.b16 %v1520, %v1520
        %v1529 = vpack.c.b16 %v1521, %v1521
        %v1531 = vshrl.u32 %v1522, 16
        %v1533 = vrot.slane %v1531, 7
        %v1534 = vshll.u32 %v1522, 16
        %v1536 = vor.u32 %v1533, %v1534
        %v1537 = vrot.slane %v1533, 4
        %v1539 = vshrl.u32 %v1523, 16
        %v1541 = vrot.slane %v1539, 7
        %v1542 = vshll.u32 %v1523, 16
        %v1544 = vor.u32 %v1541, %v1542
        %v1545 = vrot.slane %v1541, 4
        %v1547 = vshrl.u32 %v1524, 16
        %v1549 = vrot.slane %v1547, 7
        %v1550 = vshll.u32 %v1524, 16
        %v1552 = vor.u32 %v1549, %v1550
        %v1553 = vrot.slane %v1549, 4
        %v1555 = vshrl.u32 %v1525, 16
        %v1557 = vrot.slane %v1555, 7
        %v1558 = vshll.u32 %v1525, 16
        %v1560 = vor.u32 %v1557, %v1558
        %v1561 = vrot.slane %v1557, 4
        %v1563 = vshrl.u32 %v1526, 16
        %v1565 = vrot.slane %v1563, 7
        %v1566 = vshll.u32 %v1526, 16
        %v1568 = vor.u32 %v1565, %v1566
        %v1569 = vrot.slane %v1565, 4
        %v1571 = vshrl.u32 %v1527, 16
        %v1573 = vrot.slane %v1571, 7
        %v1574 = vshll.u32 %v1527, 16
        %v1576 = vor.u32 %v1573, %v1574
        %v1577 = vrot.slane %v1573, 4
        %v1579 = vshrl.u32 %v1528, 16
        %v1581 = vrot.slane %v1579, 7
        %v1582 = vshll.u32 %v1528, 16
        %v1584 = vor.u32 %v1581, %v1582
        %v1585 = vrot.slane %v1581, 4
        %v1587 = vshrl.u32 %v1529, 16
        %v1589 = vrot.slane %v1587, 7
        %v1590 = vshll.u32 %v1529, 16
        %v1592 = vor.u32 %v1589, %v1590
        %v1593 = vrot.slane %v1589, 4
        %s1610 = scalar_lea.vmem [#allocation3], 8
        %v1611 = vld [vmem:[%s1610] sm:$0xf]
        %v1612 = vsel %vm601, %v1536, %v1611
        %1613 = vst [vmem:[%s1610] sm:$0xf] %v1612
        %v1614 = vld [vmem:[%s1610 + $0x4] sm:$0x1]
        %v1615 = vsel %vm383, %v1537, %v1614
        %1616 = vst [vmem:[%s1610 + $0x4] sm:$0x1] %v1615
        %v1617 = vld [vmem:[%s1610 + $0x8] sm:$0xf]
        %v1618 = vsel %vm601, %v1544, %v1617
        %1619 = vst [vmem:[%s1610 + $0x8] sm:$0xf] %v1618
        %v1620 = vld [vmem:[%s1610 + $0xc] sm:$0x1]
        %v1621 = vsel %vm383, %v1545, %v1620
        %1622 = vst [vmem:[%s1610 + $0xc] sm:$0x1] %v1621
        %v1623 = vld [vmem:[%s1610 + $0x10] sm:$0xf]
        %v1624 = vsel %vm601, %v1552, %v1623
        %1625 = vst [vmem:[%s1610 + $0x10] sm:$0xf] %v1624
        %v1626 = vld [vmem:[%s1610 + $0x14] sm:$0x1]
        %v1627 = vsel %vm383, %v1553, %v1626
        %1628 = vst [vmem:[%s1610 + $0x14] sm:$0x1] %v1627
        %v1629 = vld [vmem:[%s1610 + $0x18] sm:$0xf]
        %v1630 = vsel %vm601, %v1560, %v1629
        %1631 = vst [vmem:[%s1610 + $0x18] sm:$0xf] %v1630
        %v1632 = vld [vmem:[%s1610 + $0x1c] sm:$0x1]
        %v1633 = vsel %vm383, %v1561, %v1632
        %1634 = vst [vmem:[%s1610 + $0x1c] sm:$0x1] %v1633
        %v1635 = vld [vmem:[%s1610 + $0x20] sm:$0xf]
        %v1636 = vsel %vm601, %v1568, %v1635
        %1637 = vst [vmem:[%s1610 + $0x20] sm:$0xf] %v1636
        %v1638 = vld [vmem:[%s1610 + $0x24] sm:$0x1]
        %v1639 = vsel %vm383, %v1569, %v1638
        %1640 = vst [vmem:[%s1610 + $0x24] sm:$0x1] %v1639
        %v1641 = vld [vmem:[%s1610 + $0x28] sm:$0xf]
        %v1642 = vsel %vm601, %v1576, %v1641
        %1643 = vst [vmem:[%s1610 + $0x28] sm:$0xf] %v1642
        %v1644 = vld [vmem:[%s1610 + $0x2c] sm:$0x1]
        %v1645 = vsel %vm383, %v1577, %v1644
        %1646 = vst [vmem:[%s1610 + $0x2c] sm:$0x1] %v1645
        %v1647 = vld [vmem:[%s1610 + $0x30] sm:$0xf]
        %v1648 = vsel %vm601, %v1584, %v1647
        %1649 = vst [vmem:[%s1610 + $0x30] sm:$0xf] %v1648
        %v1650 = vld [vmem:[%s1610 + $0x34] sm:$0x1]
        %v1651 = vsel %vm383, %v1585, %v1650
        %1652 = vst [vmem:[%s1610 + $0x34] sm:$0x1] %v1651
        %v1653 = vld [vmem:[%s1610 + $0x38] sm:$0xf]
        %v1654 = vsel %vm601, %v1592, %v1653
        %1655 = vst [vmem:[%s1610 + $0x38] sm:$0xf] %v1654
        %v1656 = vld [vmem:[%s1610 + $0x3c] sm:$0x1]
        %v1657 = vsel %vm383, %v1593, %v1656
        %1658 = vst [vmem:[%s1610 + $0x3c] sm:$0x1] %v1657
        %v1659 = vld [vmem:[#allocation3] sm:$0xf]
        %v1660 = vld [vmem:[#allocation3 + $0x8] sm:$0xf]
        %v1661 = vld [vmem:[#allocation3 + $0x10] sm:$0xf]
        %v1662 = vld [vmem:[#allocation3 + $0x18] sm:$0xf]
        %v1663 = vld [vmem:[#allocation3 + $0x20] sm:$0xf]
        %v1664 = vld [vmem:[#allocation3 + $0x28] sm:$0xf]
        %v1665 = vld [vmem:[#allocation3 + $0x30] sm:$0xf]
        %v1666 = vld [vmem:[#allocation3 + $0x38] sm:$0xf]
        %v1667 = vld [vmem:[%s3] sm:$0xf]
        %v1668 = vld [vmem:[%s3 + $0x4] sm:$0xf]
        %v1669 = vld [vmem:[%s3 + $0x8] sm:$0xf]
        %v1670 = vld [vmem:[%s3 + $0xc] sm:$0xf]
        %v1671 = vld [vmem:[#allocation3 + $0x4] sm:$0x1]
        %v1672 = vld [vmem:[#allocation3 + $0xc] sm:$0x1]
        %v1673 = vld [vmem:[#allocation3 + $0x14] sm:$0x1]
        %v1674 = vld [vmem:[#allocation3 + $0x1c] sm:$0x1]
        %v1675 = vld [vmem:[#allocation3 + $0x24] sm:$0x1]
        %v1676 = vld [vmem:[#allocation3 + $0x2c] sm:$0x1]
        %v1677 = vld [vmem:[#allocation3 + $0x34] sm:$0x1]
        %v1678 = vld [vmem:[#allocation3 + $0x3c] sm:$0x1]
        %v1680 = vshrl.u32 %v1659, 16
        %v1682 = vrot.slane %v1680, 4
        %v1683 = vshll.u32 %v1659, 16
        %v1685 = vrot.slane %v1683, 5
        %v1686 = vor.u32 %v1682, %v1685
        %v1687 = vrot.slane %v1686, 4
        %v1689 = vshll.u32 %v1671, 16
        %v1691 = vrot.slane %v1689, 5
        %v1692 = vsel %vm672, %v1687, %v1691
        %v1694 = vshrl.u32 %v1660, 16
        %v1696 = vrot.slane %v1694, 4
        %v1697 = vshll.u32 %v1660, 16
        %v1699 = vrot.slane %v1697, 5
        %v1700 = vor.u32 %v1696, %v1699
        %v1701 = vrot.slane %v1700, 4
        %v1703 = vshll.u32 %v1672, 16
        %v1705 = vrot.slane %v1703, 5
        %v1706 = vsel %vm672, %v1701, %v1705
        %v1708 = vshrl.u32 %v1661, 16
        %v1710 = vrot.slane %v1708, 4
        %v1711 = vshll.u32 %v1661, 16
        %v1713 = vrot.slane %v1711, 5
        %v1714 = vor.u32 %v1710, %v1713
        %v1715 = vrot.slane %v1714, 4
        %v1717 = vshll.u32 %v1673, 16
        %v1719 = vrot.slane %v1717, 5
        %v1720 = vsel %vm672, %v1715, %v1719
        %v1722 = vshrl.u32 %v1662, 16
        %v1724 = vrot.slane %v1722, 4
        %v1725 = vshll.u32 %v1662, 16
        %v1727 = vrot.slane %v1725, 5
        %v1728 = vor.u32 %v1724, %v1727
        %v1729 = vrot.slane %v1728, 4
        %v1731 = vshll.u32 %v1674, 16
        %v1733 = vrot.slane %v1731, 5
        %v1734 = vsel %vm672, %v1729, %v1733
        %v1736 = vshrl.u32 %v1663, 16
        %v1738 = vrot.slane %v1736, 4
        %v1739 = vshll.u32 %v1663, 16
        %v1741 = vrot.slane %v1739, 5
        %v1742 = vor.u32 %v1738, %v1741
        %v1743 = vrot.slane %v1742, 4
        %v1745 = vshll.u32 %v1675, 16
        %v1747 = vrot.slane %v1745, 5
        %v1748 = vsel %vm672, %v1743, %v1747
        %v1750 = vshrl.u32 %v1664, 16
        %v1752 = vrot.slane %v1750, 4
        %v1753 = vshll.u32 %v1664, 16
        %v1755 = vrot.slane %v1753, 5
        %v1756 = vor.u32 %v1752, %v1755
        %v1757 = vrot.slane %v1756, 4
        %v1759 = vshll.u32 %v1676, 16
        %v1761 = vrot.slane %v1759, 5
        %v1762 = vsel %vm672, %v1757, %v1761
        %v1764 = vshrl.u32 %v1665, 16
        %v1766 = vrot.slane %v1764, 4
        %v1767 = vshll.u32 %v1665, 16
        %v1769 = vrot.slane %v1767, 5
        %v1770 = vor.u32 %v1766, %v1769
        %v1771 = vrot.slane %v1770, 4
        %v1773 = vshll.u32 %v1677, 16
        %v1775 = vrot.slane %v1773, 5
        %v1776 = vsel %vm672, %v1771, %v1775
        %v1778 = vshrl.u32 %v1666, 16
        %v1780 = vrot.slane %v1778, 4
        %v1781 = vshll.u32 %v1666, 16
        %v1783 = vrot.slane %v1781, 5
        %v1784 = vor.u32 %v1780, %v1783
        %v1785 = vrot.slane %v1784, 4
        %v1787 = vshll.u32 %v1678, 16
        %v1789 = vrot.slane %v1787, 5
        %v1790 = vsel %vm672, %v1785, %v1789
        %s1791 = scalar_lea.vmem %s3, 16
        %v1792 = vld [vmem:[%s1791] sm:$0xf]
        %v1793 = vld [vmem:[%s1791 + $0x4] sm:$0xf]
        %v1794 = vld [vmem:[%s1791 + $0x8] sm:$0xf]
        %v1795 = vld [vmem:[%s1791 + $0xc] sm:$0xf]
        %v1796 = vunpack.c.l.b16 %v1692
        %v1797 = vunpack.c.l.b16 %v1706
        %v1798 = vunpack.c.l.b16 %v1720
        %v1799 = vunpack.c.l.b16 %v1734
        %v1800 = vunpack.c.l.b16 %v1748
        %v1801 = vunpack.c.l.b16 %v1762
        %v1802 = vunpack.c.l.b16 %v1776
        %v1803 = vunpack.c.l.b16 %v1790
        %v1804 = vpack.c.b16 %v1797, %v1796
        %v1805 = vpack.c.b16 %v1799, %v1798
        %v1806 = vpack.c.b16 %v1801, %v1800
        %v1807 = vpack.c.b16 %v1803, %v1802
        %v1812 = vunpack.c.l.b16 %v1792
        %v1813 = vunpack.c.l.b16 %v1793
        %v1814 = vunpack.c.l.b16 %v1794
        %v1815 = vunpack.c.l.b16 %v1795
        %v1816 = vpack.c.b16 %v1813, %v1812
        %v1817 = vpack.c.b16 %v1815, %v1814
        %v1821 = vsel %vm814, %v1804, 0
        %v1824 = vsel %vm814, %v1805, 0
        %v1827 = vsel %vm814, %v1806, 0
        %v1830 = vsel %vm814, %v1807, 0
        %1832 = vmatprep.subr.bf16.mxu0 0
        %1833 = vmatpush1.bf16.msra.mxu0 %v1816
        %1834 = vmatprep.subr.bf16.mxu0 0
        %1835 = vmatpush1.bf16.msra.mxu0 %v1817
        %1836 = vmatprep.subr.bf16.mxu0 0
        %1837 = vmatpush1.bf16.msra.mxu0 0
        %1838 = vmatprep.subr.bf16.mxu0 0
        %1839 = vmatpush1.bf16.msra.mxu0 0
        %1840 = vmatprep.subr.bf16.mxu0 0
        %1841 = vmatpush1.bf16.msra.mxu0 0
        %1842 = vmatprep.subr.bf16.mxu0 0
        %1843 = vmatpush1.bf16.msra.mxu0 0
        %1844 = vmatprep.subr.bf16.mxu0 0
        %1845 = vmatpush1.bf16.msra.mxu0 0
        %1846 = vmatprep.subr.bf16.mxu0 0
        %1847 = vmatpush1.bf16.msra.mxu0 0
        %1848 = vmatprep.subr.bf16.mxu0 0
        %1849 = vmatpush1.bf16.msra.mxu0 0
        %1850 = vmatprep.subr.bf16.mxu0 0
        %1851 = vmatpush1.bf16.msra.mxu0 0
        %1852 = vmatprep.subr.bf16.mxu0 0
        %1853 = vmatpush1.bf16.msra.mxu0 0
        %1854 = vmatprep.subr.bf16.mxu0 0
        %1855 = vmatpush1.bf16.msra.mxu0 0
        %1856 = vmatprep.subr.bf16.mxu0 0
        %1857 = vmatpush1.bf16.msra.mxu0 0
        %1858 = vmatprep.subr.bf16.mxu0 0
        %1859 = vmatpush1.bf16.msra.mxu0 0
        %1860 = vmatprep.subr.bf16.mxu0 0
        %1861 = vmatpush1.bf16.msra.mxu0 0
        %1862 = vmatprep.subr.bf16.mxu0 0
        %1863 = vmatpush1.bf16.msra.mxu0 0
        %1864 = vmatprep.mubr.bf16.mxu0 0
        %1865 = vmatmul.mubr.bf16.gmra.mrb[0].mxu0 %v1821
        %v1866 = vpop.f32.mrb[0].mxu0
        %v1867 = vadd.f32 0.0, %v1866
        %v1868 = vpop.f32.mrb[0].mxu0
        %v1869 = vpop.f32.mrb[0].mxu0
        %v1870 = vadd.f32 0.0, %v1869
        %v1871 = vpop.f32.mrb[0].mxu0
        %1872 = vmatprep.mubr.bf16.mxu0 0
        %1873 = vmatmul.mubr.bf16.gmra.mrb[0].mxu0 %v1824
        %v1874 = vpop.f32.mrb[0].mxu0
        %v1875 = vadd.f32 0.0, %v1874
        %v1876 = vpop.f32.mrb[0].mxu0
        %v1877 = vpop.f32.mrb[0].mxu0
        %v1878 = vadd.f32 0.0, %v1877
        %v1879 = vpop.f32.mrb[0].mxu0
        %1880 = vmatprep.mubr.bf16.mxu0 0
        %1881 = vmatmul.mubr.bf16.gmra.mrb[0].mxu0 %v1827
        %v1882 = vpop.f32.mrb[0].mxu0
        %v1883 = vadd.f32 0.0, %v1882
        %v1884 = vpop.f32.mrb[0].mxu0
        %v1885 = vpop.f32.mrb[0].mxu0
        %v1886 = vadd.f32 0.0, %v1885
        %v1887 = vpop.f32.mrb[0].mxu0
        %1888 = vmatprep.mubr.bf16.mxu0 0
        %1889 = vmatmul.mubr.bf16.gmra.mrb[0].mxu0 %v1830
        %v1890 = vpop.f32.mrb[0].mxu0
        %v1891 = vadd.f32 0.0, %v1890
        %v1892 = vpop.f32.mrb[0].mxu0
        %v1893 = vpop.f32.mrb[0].mxu0
        %v1894 = vadd.f32 0.0, %v1893
        %v1895 = vpop.f32.mrb[0].mxu0
        %1896 = vdwg.mxu0
        %v1905 = vunpack.c.l.b16 %v1659
        %v1906 = vunpack.c.l.b16 %v1660
        %v1907 = vunpack.c.l.b16 %v1661
        %v1908 = vunpack.c.l.b16 %v1662
        %v1909 = vunpack.c.l.b16 %v1663
        %v1910 = vunpack.c.l.b16 %v1664
        %v1911 = vunpack.c.l.b16 %v1665
        %v1912 = vunpack.c.l.b16 %v1666
        %v1913 = vpack.c.b16 %v1906, %v1905
        %v1914 = vpack.c.b16 %v1908, %v1907
        %v1915 = vpack.c.b16 %v1910, %v1909
        %v1916 = vpack.c.b16 %v1912, %v1911
        %v1921 = vunpack.c.l.b16 %v1667
        %v1922 = vunpack.c.l.b16 %v1668
        %v1923 = vunpack.c.l.b16 %v1669
        %v1924 = vunpack.c.l.b16 %v1670
        %v1925 = vpack.c.b16 %v1922, %v1921
        %v1926 = vpack.c.b16 %v1924, %v1923
        %v1930 = vsel %vm814, %v1913, 0
        %v1933 = vsel %vm814, %v1914, 0
        %v1936 = vsel %vm814, %v1915, 0
        %v1939 = vsel %vm814, %v1916, 0
        %1941 = vmatprep.subr.bf16.mxu0 0
        %1942 = vmatpush1.bf16.msra.mxu0 %v1925
        %1943 = vmatprep.subr.bf16.mxu0 0
        %1944 = vmatpush1.bf16.msra.mxu0 %v1926
        %1945 = vmatprep.subr.bf16.mxu0 0
        %1946 = vmatpush1.bf16.msra.mxu0 0
        %1947 = vmatprep.subr.bf16.mxu0 0
        %1948 = vmatpush1.bf16.msra.mxu0 0
        %1949 = vmatprep.subr.bf16.mxu0 0
        %1950 = vmatpush1.bf16.msra.mxu0 0
        %1951 = vmatprep.subr.bf16.mxu0 0
        %1952 = vmatpush1.bf16.msra.mxu0 0
        %1953 = vmatprep.subr.bf16.mxu0 0
        %1954 = vmatpush1.bf16.msra.mxu0 0
        %1955 = vmatprep.subr.bf16.mxu0 0
        %1956 = vmatpush1.bf16.msra.mxu0 0
        %1957 = vmatprep.subr.bf16.mxu0 0
        %1958 = vmatpush1.bf16.msra.mxu0 0
        %1959 = vmatprep.subr.bf16.mxu0 0
        %1960 = vmatpush1.bf16.msra.mxu0 0
        %1961 = vmatprep.subr.bf16.mxu0 0
        %1962 = vmatpush1.bf16.msra.mxu0 0
        %1963 = vmatprep.subr.bf16.mxu0 0
        %1964 = vmatpush1.bf16.msra.mxu0 0
        %1965 = vmatprep.subr.bf16.mxu0 0
        %1966 = vmatpush1.bf16.msra.mxu0 0
        %1967 = vmatprep.subr.bf16.mxu0 0
        %1968 = vmatpush1.bf16.msra.mxu0 0
        %1969 = vmatprep.subr.bf16.mxu0 0
        %1970 = vmatpush1.bf16.msra.mxu0 0
        %1971 = vmatprep.subr.bf16.mxu0 0
        %1972 = vmatpush1.bf16.msra.mxu0 0
        %1973 = vmatprep.mubr.bf16.mxu0 0
        %1974 = vmatmul.mubr.bf16.gmra.mrb[0].mxu0 %v1930
        %v1975 = vpop.f32.mrb[0].mxu0
        %v1976 = vadd.f32 %v1867, %v1975
        %v1977 = vpop.f32.mrb[0].mxu0
        %v1978 = vpop.f32.mrb[0].mxu0
        %v1979 = vadd.f32 %v1870, %v1978
        %v1980 = vpop.f32.mrb[0].mxu0
        %1981 = vmatprep.mubr.bf16.mxu0 0
        %1982 = vmatmul.mubr.bf16.gmra.mrb[0].mxu0 %v1933
        %v1983 = vpop.f32.mrb[0].mxu0
        %v1984 = vadd.f32 %v1875, %v1983
        %v1985 = vpop.f32.mrb[0].mxu0
        %v1986 = vpop.f32.mrb[0].mxu0
        %v1987 = vadd.f32 %v1878, %v1986
        %v1988 = vpop.f32.mrb[0].mxu0
        %1989 = vmatprep.mubr.bf16.mxu0 0
        %1990 = vmatmul.mubr.bf16.gmra.mrb[0].mxu0 %v1936
        %v1991 = vpop.f32.mrb[0].mxu0
        %v1992 = vadd.f32 %v1883, %v1991
        %v1993 = vpop.f32.mrb[0].mxu0
        %v1994 = vpop.f32.mrb[0].mxu0
        %v1995 = vadd.f32 %v1886, %v1994
        %v1996 = vpop.f32.mrb[0].mxu0
        %1997 = vmatprep.mubr.bf16.mxu0 0
        %1998 = vmatmul.mubr.bf16.gmra.mrb[0].mxu0 %v1939
        %v1999 = vpop.f32.mrb[0].mxu0
        %v2000 = vadd.f32 %v1891, %v1999
        %v2001 = vpop.f32.mrb[0].mxu0
        %v2002 = vpop.f32.mrb[0].mxu0
        %v2003 = vadd.f32 %v1894, %v2002
        %v2004 = vpop.f32.mrb[0].mxu0
        %2005 = vdwg.mxu0
        %v2006 = vld [vmem:[#allocation3] sm:$0xe]
        %v2007 = vld [vmem:[#allocation3 + $0x8] sm:$0xe]
        %v2008 = vld [vmem:[#allocation3 + $0x10] sm:$0xe]
        %v2009 = vld [vmem:[#allocation3 + $0x18] sm:$0xe]
        %v2010 = vld [vmem:[#allocation3 + $0x20] sm:$0xe]
        %v2011 = vld [vmem:[#allocation3 + $0x28] sm:$0xe]
        %v2012 = vld [vmem:[#allocation3 + $0x30] sm:$0xe]
        %v2013 = vld [vmem:[#allocation3 + $0x38] sm:$0xe]
        %vm2030 = vcmask 1042432
        %vm2031 = vcmask 1046532
        %vm2032 = vmor %vm2030, %vm2031
        %v2033 = vrot.slane %v2006, 5
        %v2034 = vrot.slane %v2033, 4
        %v2035 = vrot.slane %v1671, 5
        %v2036 = vsel %vm2032, %v2034, %v2035
        %v2037 = vrot.slane %v2007, 5
        %v2038 = vrot.slane %v2037, 4
        %v2039 = vrot.slane %v1672, 5
        %v2040 = vsel %vm2032, %v2038, %v2039
        %v2041 = vrot.slane %v2008, 5
        %v2042 = vrot.slane %v2041, 4
        %v2043 = vrot.slane %v1673, 5
        %v2044 = vsel %vm2032, %v2042, %v2043
        %v2045 = vrot.slane %v2009, 5
        %v2046 = vrot.slane %v2045, 4
        %v2047 = vrot.slane %v1674, 5
        %v2048 = vsel %vm2032, %v2046, %v2047
        %v2049 = vrot.slane %v2010, 5
        %v2050 = vrot.slane %v2049, 4
        %v2051 = vrot.slane %v1675, 5
        %v2052 = vsel %vm2032, %v2050, %v2051
        %v2053 = vrot.slane %v2011, 5
        %v2054 = vrot.slane %v2053, 4
        %v2055 = vrot.slane %v1676, 5
        %v2056 = vsel %vm2032, %v2054, %v2055
        %v2057 = vrot.slane %v2012, 5
        %v2058 = vrot.slane %v2057, 4
        %v2059 = vrot.slane %v1677, 5
        %v2060 = vsel %vm2032, %v2058, %v2059
        %v2061 = vrot.slane %v2013, 5
        %v2062 = vrot.slane %v2061, 4
        %v2063 = vrot.slane %v1678, 5
        %v2064 = vsel %vm2032, %v2062, %v2063
        %s2065 = scalar_lea.vmem %s3, 32
        %v2066 = vld [vmem:[%s2065] sm:$0xf]
        %v2067 = vld [vmem:[%s2065 + $0x4] sm:$0xf]
        %v2068 = vld [vmem:[%s2065 + $0x8] sm:$0xf]
        %v2069 = vld [vmem:[%s2065 + $0xc] sm:$0xf]
        %v2070 = vunpack.c.l.b16 %v2036
        %v2071 = vunpack.c.l.b16 %v2040
        %v2072 = vunpack.c.l.b16 %v2044
        %v2073 = vunpack.c.l.b16 %v2048
        %v2074 = vunpack.c.l.b16 %v2052
        %v2075 = vunpack.c.l.b16 %v2056
        %v2076 = vunpack.c.l.b16 %v2060
        %v2077 = vunpack.c.l.b16 %v2064
        %v2078 = vpack.c.b16 %v2071, %v2070
        %v2079 = vpack.c.b16 %v2073, %v2072
        %v2080 = vpack.c.b16 %v2075, %v2074
        %v2081 = vpack.c.b16 %v2077, %v2076
        %v2086 = vunpack.c.l.b16 %v2066
        %v2087 = vunpack.c.l.b16 %v2067
        %v2088 = vunpack.c.l.b16 %v2068
        %v2089 = vunpack.c.l.b16 %v2069
        %v2090 = vpack.c.b16 %v2087, %v2086
        %v2091 = vpack.c.b16 %v2089, %v2088
        %v2095 = vsel %vm814, %v2078, 0
        %v2098 = vsel %vm814, %v2079, 0
        %v2101 = vsel %vm814, %v2080, 0
        %v2104 = vsel %vm814, %v2081, 0
        %2106 = vmatprep.subr.bf16.mxu0 0
        %2107 = vmatpush1.bf16.msra.mxu0 %v2090
        %2108 = vmatprep.subr.bf16.mxu0 0
        %2109 = vmatpush1.bf16.msra.mxu0 %v2091
        %2110 = vmatprep.subr.bf16.mxu0 0
        %2111 = vmatpush1.bf16.msra.mxu0 0
        %2112 = vmatprep.subr.bf16.mxu0 0
        %2113 = vmatpush1.bf16.msra.mxu0 0
        %2114 = vmatprep.subr.bf16.mxu0 0
        %2115 = vmatpush1.bf16.msra.mxu0 0
        %2116 = vmatprep.subr.bf16.mxu0 0
        %2117 = vmatpush1.bf16.msra.mxu0 0
        %2118 = vmatprep.subr.bf16.mxu0 0
        %2119 = vmatpush1.bf16.msra.mxu0 0
        %2120 = vmatprep.subr.bf16.mxu0 0
        %2121 = vmatpush1.bf16.msra.mxu0 0
        %2122 = vmatprep.subr.bf16.mxu0 0
        %2123 = vmatpush1.bf16.msra.mxu0 0
        %2124 = vmatprep.subr.bf16.mxu0 0
        %2125 = vmatpush1.bf16.msra.mxu0 0
        %2126 = vmatprep.subr.bf16.mxu0 0
        %2127 = vmatpush1.bf16.msra.mxu0 0
        %2128 = vmatprep.subr.bf16.mxu0 0
        %2129 = vmatpush1.bf16.msra.mxu0 0
        %2130 = vmatprep.subr.bf16.mxu0 0
        %2131 = vmatpush1.bf16.msra.mxu0 0
        %2132 = vmatprep.subr.bf16.mxu0 0
        %2133 = vmatpush1.bf16.msra.mxu0 0
        %2134 = vmatprep.subr.bf16.mxu0 0
        %2135 = vmatpush1.bf16.msra.mxu0 0
        %2136 = vmatprep.subr.bf16.mxu0 0
        %2137 = vmatpush1.bf16.msra.mxu0 0
        %2138 = vmatprep.mubr.bf16.mxu0 0
        %2139 = vmatmul.mubr.bf16.gmra.mrb[0].mxu0 %v2095
        %v2140 = vpop.f32.mrb[0].mxu0
        %v2141 = vadd.f32 0.0, %v2140
        %v2142 = vpop.f32.mrb[0].mxu0
        %v2143 = vpop.f32.mrb[0].mxu0
        %v2144 = vadd.f32 0.0, %v2143
        %v2145 = vpop.f32.mrb[0].mxu0
        %2146 = vmatprep.mubr.bf16.mxu0 0
        %2147 = vmatmul.mubr.bf16.gmra.mrb[0].mxu0 %v2098
        %v2148 = vpop.f32.mrb[0].mxu0
        %v2149 = vadd.f32 0.0, %v2148
        %v2150 = vpop.f32.mrb[0].mxu0
        %v2151 = vpop.f32.mrb[0].mxu0
        %v2152 = vadd.f32 0.0, %v2151
        %v2153 = vpop.f32.mrb[0].mxu0
        %2154 = vmatprep.mubr.bf16.mxu0 0
        %2155 = vmatmul.mubr.bf16.gmra.mrb[0].mxu0 %v2101
        %v2156 = vpop.f32.mrb[0].mxu0
        %v2157 = vadd.f32 0.0, %v2156
        %v2158 = vpop.f32.mrb[0].mxu0
        %v2159 = vpop.f32.mrb[0].mxu0
        %v2160 = vadd.f32 0.0, %v2159
        %v2161 = vpop.f32.mrb[0].mxu0
        %2162 = vmatprep.mubr.bf16.mxu0 0
        %2163 = vmatmul.mubr.bf16.gmra.mrb[0].mxu0 %v2104
        %v2164 = vpop.f32.mrb[0].mxu0
        %v2165 = vadd.f32 0.0, %v2164
        %v2166 = vpop.f32.mrb[0].mxu0
        %v2167 = vpop.f32.mrb[0].mxu0
        %v2168 = vadd.f32 0.0, %v2167
        %v2169 = vpop.f32.mrb[0].mxu0
        %2170 = vdwg.mxu0
        %v2171 = vadd.f32 %v1976, %v2141
        %v2172 = vadd.f32 %v1979, %v2144
        %v2173 = vadd.f32 %v1984, %v2149
        %v2174 = vadd.f32 %v1987, %v2152
        %v2175 = vadd.f32 %v1992, %v2157
        %v2176 = vadd.f32 %v1995, %v2160
        %v2177 = vadd.f32 %v2000, %v2165
        %v2178 = vadd.f32 %v2003, %v2168
        %v2179 = vld [vmem:[%s1610] sm:$0xf]
        %v2180 = vld [vmem:[%s1610 + $0x8] sm:$0xf]
        %v2181 = vld [vmem:[%s1610 + $0x10] sm:$0xf]
        %v2182 = vld [vmem:[%s1610 + $0x18] sm:$0xf]
        %v2183 = vld [vmem:[%s1610 + $0x20] sm:$0xf]
        %v2184 = vld [vmem:[%s1610 + $0x28] sm:$0xf]
        %v2185 = vld [vmem:[%s1610 + $0x30] sm:$0xf]
        %v2186 = vld [vmem:[%s1610 + $0x38] sm:$0xf]
        %s2187 = scalar_lea.vmem %s3, 48
        %v2188 = vld [vmem:[%s2187] sm:$0xf]
        %v2189 = vld [vmem:[%s2187 + $0x4] sm:$0xf]
        %v2190 = vld [vmem:[%s2187 + $0x8] sm:$0xf]
        %v2191 = vld [vmem:[%s2187 + $0xc] sm:$0xf]
        %v2200 = vunpack.c.l.b16 %v2179
        %v2201 = vunpack.c.l.b16 %v2180
        %v2202 = vunpack.c.l.b16 %v2181
        %v2203 = vunpack.c.l.b16 %v2182
        %v2204 = vunpack.c.l.b16 %v2183
        %v2205 = vunpack.c.l.b16 %v2184
        %v2206 = vunpack.c.l.b16 %v2185
        %v2207 = vunpack.c.l.b16 %v2186
        %v2208 = vpack.c.b16 %v2201, %v2200
        %v2209 = vpack.c.b16 %v2203, %v2202
        %v2210 = vpack.c.b16 %v2205, %v2204
        %v2211 = vpack.c.b16 %v2207, %v2206
        %v2216 = vunpack.c.l.b16 %v2188
        %v2217 = vunpack.c.l.b16 %v2189
        %v2218 = vunpack.c.l.b16 %v2190
        %v2219 = vunpack.c.l.b16 %v2191
        %v2220 = vpack.c.b16 %v2217, %v2216
        %v2221 = vpack.c.b16 %v2219, %v2218
        %v2225 = vsel %vm814, %v2208, 0
        %v2228 = vsel %vm814, %v2209, 0
        %v2231 = vsel %vm814, %v2210, 0
        %v2234 = vsel %vm814, %v2211, 0
        %2236 = vmatprep.subr.bf16.mxu0 0
        %2237 = vmatpush1.bf16.msra.mxu0 %v2220
        %2238 = vmatprep.subr.bf16.mxu0 0
        %2239 = vmatpush1.bf16.msra.mxu0 %v2221
        %2240 = vmatprep.subr.bf16.mxu0 0
        %2241 = vmatpush1.bf16.msra.mxu0 0
        %2242 = vmatprep.subr.bf16.mxu0 0
        %2243 = vmatpush1.bf16.msra.mxu0 0
        %2244 = vmatprep.subr.bf16.mxu0 0
        %2245 = vmatpush1.bf16.msra.mxu0 0
        %2246 = vmatprep.subr.bf16.mxu0 0
        %2247 = vmatpush1.bf16.msra.mxu0 0
        %2248 = vmatprep.subr.bf16.mxu0 0
        %2249 = vmatpush1.bf16.msra.mxu0 0
        %2250 = vmatprep.subr.bf16.mxu0 0
        %2251 = vmatpush1.bf16.msra.mxu0 0
        %2252 = vmatprep.subr.bf16.mxu0 0
        %2253 = vmatpush1.bf16.msra.mxu0 0
        %2254 = vmatprep.subr.bf16.mxu0 0
        %2255 = vmatpush1.bf16.msra.mxu0 0
        %2256 = vmatprep.subr.bf16.mxu0 0
        %2257 = vmatpush1.bf16.msra.mxu0 0
        %2258 = vmatprep.subr.bf16.mxu0 0
        %2259 = vmatpush1.bf16.msra.mxu0 0
        %2260 = vmatprep.subr.bf16.mxu0 0
        %2261 = vmatpush1.bf16.msra.mxu0 0
        %2262 = vmatprep.subr.bf16.mxu0 0
        %2263 = vmatpush1.bf16.msra.mxu0 0
        %2264 = vmatprep.subr.bf16.mxu0 0
        %2265 = vmatpush1.bf16.msra.mxu0 0
        %2266 = vmatprep.subr.bf16.mxu0 0
        %2267 = vmatpush1.bf16.msra.mxu0 0
        %2268 = vmatprep.mubr.bf16.mxu0 0
        %2269 = vmatmul.mubr.bf16.gmra.mrb[0].mxu0 %v2225
        %v2270 = vpop.f32.mrb[0].mxu0
        %v2271 = vadd.f32 0.0, %v2270
        %v2272 = vpop.f32.mrb[0].mxu0
        %v2273 = vpop.f32.mrb[0].mxu0
        %v2274 = vadd.f32 0.0, %v2273
        %v2275 = vpop.f32.mrb[0].mxu0
        %2276 = vmatprep.mubr.bf16.mxu0 0
        %2277 = vmatmul.mubr.bf16.gmra.mrb[0].mxu0 %v2228
        %v2278 = vpop.f32.mrb[0].mxu0
        %v2279 = vadd.f32 0.0, %v2278
        %v2280 = vpop.f32.mrb[0].mxu0
        %v2281 = vpop.f32.mrb[0].mxu0
        %v2282 = vadd.f32 0.0, %v2281
        %v2283 = vpop.f32.mrb[0].mxu0
        %2284 = vmatprep.mubr.bf16.mxu0 0
        %2285 = vmatmul.mubr.bf16.gmra.mrb[0].mxu0 %v2231
        %v2286 = vpop.f32.mrb[0].mxu0
        %v2287 = vadd.f32 0.0, %v2286
        %v2288 = vpop.f32.mrb[0].mxu0
        %v2289 = vpop.f32.mrb[0].mxu0
        %v2290 = vadd.f32 0.0, %v2289
        %v2291 = vpop.f32.mrb[0].mxu0
        %2292 = vmatprep.mubr.bf16.mxu0 0
        %2293 = vmatmul.mubr.bf16.gmra.mrb[0].mxu0 %v2234
        %v2294 = vpop.f32.mrb[0].mxu0
        %v2295 = vadd.f32 0.0, %v2294
        %v2296 = vpop.f32.mrb[0].mxu0
        %v2297 = vpop.f32.mrb[0].mxu0
        %v2298 = vadd.f32 0.0, %v2297
        %v2299 = vpop.f32.mrb[0].mxu0
        %2300 = vdwg.mxu0
        %v2301 = vadd.f32 %v2171, %v2271
        %v2302 = vadd.f32 %v2172, %v2274
        %v2303 = vadd.f32 %v2173, %v2279
        %v2304 = vadd.f32 %v2174, %v2282
        %v2305 = vadd.f32 %v2175, %v2287
        %v2306 = vadd.f32 %v2176, %v2290
        %v2307 = vadd.f32 %v2177, %v2295
        %v2308 = vadd.f32 %v2178, %v2298
        %v2309 = vld [vmem:[%s1610] sm:$0xf]
        %v2310 = vld [vmem:[%s1610 + $0x4] sm:$0x1]
        %v2311 = vld [vmem:[%s1610 + $0x8] sm:$0xf]
        %v2312 = vld [vmem:[%s1610 + $0xc] sm:$0x1]
        %v2313 = vld [vmem:[%s1610 + $0x10] sm:$0xf]
        %v2314 = vld [vmem:[%s1610 + $0x14] sm:$0x1]
        %v2315 = vld [vmem:[%s1610 + $0x18] sm:$0xf]
        %v2316 = vld [vmem:[%s1610 + $0x1c] sm:$0x1]
        %v2317 = vld [vmem:[%s1610 + $0x20] sm:$0xf]
        %v2318 = vld [vmem:[%s1610 + $0x24] sm:$0x1]
        %v2319 = vld [vmem:[%s1610 + $0x28] sm:$0xf]
        %v2320 = vld [vmem:[%s1610 + $0x2c] sm:$0x1]
        %v2321 = vld [vmem:[%s1610 + $0x30] sm:$0xf]
        %v2322 = vld [vmem:[%s1610 + $0x34] sm:$0x1]
        %v2323 = vld [vmem:[%s1610 + $0x38] sm:$0xf]
        %v2324 = vld [vmem:[%s1610 + $0x3c] sm:$0x1]
        %v2326 = vshrl.u32 %v2309, 16
        %v2328 = vrot.slane %v2326, 4
        %v2329 = vshll.u32 %v2309, 16
        %v2331 = vrot.slane %v2329, 5
        %v2332 = vor.u32 %v2328, %v2331
        %v2333 = vrot.slane %v2332, 4
        %v2335 = vshll.u32 %v2310, 16
        %v2337 = vrot.slane %v2335, 5
        %v2338 = vsel %vm672, %v2333, %v2337
        %v2340 = vshrl.u32 %v2311, 16
        %v2342 = vrot.slane %v2340, 4
        %v2343 = vshll.u32 %v2311, 16
        %v2345 = vrot.slane %v2343, 5
        %v2346 = vor.u32 %v2342, %v2345
        %v2347 = vrot.slane %v2346, 4
        %v2349 = vshll.u32 %v2312, 16
        %v2351 = vrot.slane %v2349, 5
        %v2352 = vsel %vm672, %v2347, %v2351
        %v2354 = vshrl.u32 %v2313, 16
        %v2356 = vrot.slane %v2354, 4
        %v2357 = vshll.u32 %v2313, 16
        %v2359 = vrot.slane %v2357, 5
        %v2360 = vor.u32 %v2356, %v2359
        %v2361 = vrot.slane %v2360, 4
        %v2363 = vshll.u32 %v2314, 16
        %v2365 = vrot.slane %v2363, 5
        %v2366 = vsel %vm672, %v2361, %v2365
        %v2368 = vshrl.u32 %v2315, 16
        %v2370 = vrot.slane %v2368, 4
        %v2371 = vshll.u32 %v2315, 16
        %v2373 = vrot.slane %v2371, 5
        %v2374 = vor.u32 %v2370, %v2373
        %v2375 = vrot.slane %v2374, 4
        %v2377 = vshll.u32 %v2316, 16
        %v2379 = vrot.slane %v2377, 5
        %v2380 = vsel %vm672, %v2375, %v2379
        %v2382 = vshrl.u32 %v2317, 16
        %v2384 = vrot.slane %v2382, 4
        %v2385 = vshll.u32 %v2317, 16
        %v2387 = vrot.slane %v2385, 5
        %v2388 = vor.u32 %v2384, %v2387
        %v2389 = vrot.slane %v2388, 4
        %v2391 = vshll.u32 %v2318, 16
        %v2393 = vrot.slane %v2391, 5
        %v2394 = vsel %vm672, %v2389, %v2393
        %v2396 = vshrl.u32 %v2319, 16
        %v2398 = vrot.slane %v2396, 4
        %v2399 = vshll.u32 %v2319, 16
        %v2401 = vrot.slane %v2399, 5
        %v2402 = vor.u32 %v2398, %v2401
        %v2403 = vrot.slane %v2402, 4
        %v2405 = vshll.u32 %v2320, 16
        %v2407 = vrot.slane %v2405, 5
        %v2408 = vsel %vm672, %v2403, %v2407
        %v2410 = vshrl.u32 %v2321, 16
        %v2412 = vrot.slane %v2410, 4
        %v2413 = vshll.u32 %v2321, 16
        %v2415 = vrot.slane %v2413, 5
        %v2416 = vor.u32 %v2412, %v2415
        %v2417 = vrot.slane %v2416, 4
        %v2419 = vshll.u32 %v2322, 16
        %v2421 = vrot.slane %v2419, 5
        %v2422 = vsel %vm672, %v2417, %v2421
        %v2424 = vshrl.u32 %v2323, 16
        %v2426 = vrot.slane %v2424, 4
        %v2427 = vshll.u32 %v2323, 16
        %v2429 = vrot.slane %v2427, 5
        %v2430 = vor.u32 %v2426, %v2429
        %v2431 = vrot.slane %v2430, 4
        %v2433 = vshll.u32 %v2324, 16
        %v2435 = vrot.slane %v2433, 5
        %v2436 = vsel %vm672, %v2431, %v2435
        %s2437 = scalar_lea.vmem %s3, 64
        %v2438 = vld [vmem:[%s2437] sm:$0xf]
        %v2439 = vld [vmem:[%s2437 + $0x4] sm:$0xf]
        %v2440 = vld [vmem:[%s2437 + $0x8] sm:$0xf]
        %v2441 = vld [vmem:[%s2437 + $0xc] sm:$0xf]
        %v2442 = vunpack.c.l.b16 %v2338
        %v2443 = vunpack.c.l.b16 %v2352
        %v2444 = vunpack.c.l.b16 %v2366
        %v2445 = vunpack.c.l.b16 %v2380
        %v2446 = vunpack.c.l.b16 %v2394
        %v2447 = vunpack.c.l.b16 %v2408
        %v2448 = vunpack.c.l.b16 %v2422
        %v2449 = vunpack.c.l.b16 %v2436
        %v2450 = vpack.c.b16 %v2443, %v2442
        %v2451 = vpack.c.b16 %v2445, %v2444
        %v2452 = vpack.c.b16 %v2447, %v2446
        %v2453 = vpack.c.b16 %v2449, %v2448
        %v2458 = vunpack.c.l.b16 %v2438
        %v2459 = vunpack.c.l.b16 %v2439
        %v2460 = vunpack.c.l.b16 %v2440
        %v2461 = vunpack.c.l.b16 %v2441
        %v2462 = vpack.c.b16 %v2459, %v2458
        %v2463 = vpack.c.b16 %v2461, %v2460
        %v2467 = vsel %vm814, %v2450, 0
        %v2470 = vsel %vm814, %v2451, 0
        %v2473 = vsel %vm814, %v2452, 0
        %v2476 = vsel %vm814, %v2453, 0
        %2478 = vmatprep.subr.bf16.mxu0 0
        %2479 = vmatpush1.bf16.msra.mxu0 %v2462
        %2480 = vmatprep.subr.bf16.mxu0 0
        %2481 = vmatpush1.bf16.msra.mxu0 %v2463
        %2482 = vmatprep.subr.bf16.mxu0 0
        %2483 = vmatpush1.bf16.msra.mxu0 0
        %2484 = vmatprep.subr.bf16.mxu0 0
        %2485 = vmatpush1.bf16.msra.mxu0 0
        %2486 = vmatprep.subr.bf16.mxu0 0
        %2487 = vmatpush1.bf16.msra.mxu0 0
        %2488 = vmatprep.subr.bf16.mxu0 0
        %2489 = vmatpush1.bf16.msra.mxu0 0
        %2490 = vmatprep.subr.bf16.mxu0 0
        %2491 = vmatpush1.bf16.msra.mxu0 0
        %2492 = vmatprep.subr.bf16.mxu0 0
        %2493 = vmatpush1.bf16.msra.mxu0 0
        %2494 = vmatprep.subr.bf16.mxu0 0
        %2495 = vmatpush1.bf16.msra.mxu0 0
        %2496 = vmatprep.subr.bf16.mxu0 0
        %2497 = vmatpush1.bf16.msra.mxu0 0
        %2498 = vmatprep.subr.bf16.mxu0 0
        %2499 = vmatpush1.bf16.msra.mxu0 0
        %2500 = vmatprep.subr.bf16.mxu0 0
        %2501 = vmatpush1.bf16.msra.mxu0 0
        %2502 = vmatprep.subr.bf16.mxu0 0
        %2503 = vmatpush1.bf16.msra.mxu0 0
        %2504 = vmatprep.subr.bf16.mxu0 0
        %2505 = vmatpush1.bf16.msra.mxu0 0
        %2506 = vmatprep.subr.bf16.mxu0 0
        %2507 = vmatpush1.bf16.msra.mxu0 0
        %2508 = vmatprep.subr.bf16.mxu0 0
        %2509 = vmatpush1.bf16.msra.mxu0 0
        %2510 = vmatprep.mubr.bf16.mxu0 0
        %2511 = vmatmul.mubr.bf16.gmra.mrb[0].mxu0 %v2467
        %v2512 = vpop.f32.mrb[0].mxu0
        %v2513 = vadd.f32 0.0, %v2512
        %v2514 = vpop.f32.mrb[0].mxu0
        %v2515 = vpop.f32.mrb[0].mxu0
        %v2516 = vadd.f32 0.0, %v2515
        %v2517 = vpop.f32.mrb[0].mxu0
        %2518 = vmatprep.mubr.bf16.mxu0 0
        %2519 = vmatmul.mubr.bf16.gmra.mrb[0].mxu0 %v2470
        %v2520 = vpop.f32.mrb[0].mxu0
        %v2521 = vadd.f32 0.0, %v2520
        %v2522 = vpop.f32.mrb[0].mxu0
        %v2523 = vpop.f32.mrb[0].mxu0
        %v2524 = vadd.f32 0.0, %v2523
        %v2525 = vpop.f32.mrb[0].mxu0
        %2526 = vmatprep.mubr.bf16.mxu0 0
        %2527 = vmatmul.mubr.bf16.gmra.mrb[0].mxu0 %v2473
        %v2528 = vpop.f32.mrb[0].mxu0
        %v2529 = vadd.f32 0.0, %v2528
        %v2530 = vpop.f32.mrb[0].mxu0
        %v2531 = vpop.f32.mrb[0].mxu0
        %v2532 = vadd.f32 0.0, %v2531
        %v2533 = vpop.f32.mrb[0].mxu0
        %2534 = vmatprep.mubr.bf16.mxu0 0
        %2535 = vmatmul.mubr.bf16.gmra.mrb[0].mxu0 %v2476
        %v2536 = vpop.f32.mrb[0].mxu0
        %v2537 = vadd.f32 0.0, %v2536
        %v2538 = vpop.f32.mrb[0].mxu0
        %v2539 = vpop.f32.mrb[0].mxu0
        %v2540 = vadd.f32 0.0, %v2539
        %v2541 = vpop.f32.mrb[0].mxu0
        %2542 = vdwg.mxu0
        %v2543 = vadd.f32 %v2301, %v2513
        %v2544 = vadd.f32 %v2302, %v2516
        %v2545 = vadd.f32 %v2303, %v2521
        %v2546 = vadd.f32 %v2304, %v2524
        %v2547 = vadd.f32 %v2305, %v2529
        %v2548 = vadd.f32 %v2306, %v2532
        %v2549 = vadd.f32 %v2307, %v2537
        %v2550 = vadd.f32 %v2308, %v2540
        %v2551 = vld [vmem:[%s1610] sm:$0xe]
        %v2552 = vld [vmem:[%s1610 + $0x8] sm:$0xe]
        %v2553 = vld [vmem:[%s1610 + $0x10] sm:$0xe]
        %v2554 = vld [vmem:[%s1610 + $0x18] sm:$0xe]
        %v2555 = vld [vmem:[%s1610 + $0x20] sm:$0xe]
        %v2556 = vld [vmem:[%s1610 + $0x28] sm:$0xe]
        %v2557 = vld [vmem:[%s1610 + $0x30] sm:$0xe]
        %v2558 = vld [vmem:[%s1610 + $0x38] sm:$0xe]
        %v2575 = vrot.slane %v2551, 5
        %v2576 = vrot.slane %v2575, 4
        %v2577 = vrot.slane %v2310, 5
        %v2578 = vsel %vm2032, %v2576, %v2577
        %v2579 = vrot.slane %v2552, 5
        %v2580 = vrot.slane %v2579, 4
        %v2581 = vrot.slane %v2312, 5
        %v2582 = vsel %vm2032, %v2580, %v2581
        %v2583 = vrot.slane %v2553, 5
        %v2584 = vrot.slane %v2583, 4
        %v2585 = vrot.slane %v2314, 5
        %v2586 = vsel %vm2032, %v2584, %v2585
        %v2587 = vrot.slane %v2554, 5
        %v2588 = vrot.slane %v2587, 4
        %v2589 = vrot.slane %v2316, 5
        %v2590 = vsel %vm2032, %v2588, %v2589
        %v2591 = vrot.slane %v2555, 5
        %v2592 = vrot.slane %v2591, 4
        %v2593 = vrot.slane %v2318, 5
        %v2594 = vsel %vm2032, %v2592, %v2593
        %v2595 = vrot.slane %v2556, 5
        %v2596 = vrot.slane %v2595, 4
        %v2597 = vrot.slane %v2320, 5
        %v2598 = vsel %vm2032, %v2596, %v2597
        %v2599 = vrot.slane %v2557, 5
        %v2600 = vrot.slane %v2599, 4
        %v2601 = vrot.slane %v2322, 5
        %v2602 = vsel %vm2032, %v2600, %v2601
        %v2603 = vrot.slane %v2558, 5
        %v2604 = vrot.slane %v2603, 4
        %v2605 = vrot.slane %v2324, 5
        %v2606 = vsel %vm2032, %v2604, %v2605
        %s2607 = scalar_lea.vmem %s3, 80
        %v2608 = vld [vmem:[%s2607] sm:$0xf]
        %v2609 = vld [vmem:[%s2607 + $0x4] sm:$0xf]
        %v2610 = vld [vmem:[%s2607 + $0x8] sm:$0xf]
        %v2611 = vld [vmem:[%s2607 + $0xc] sm:$0xf]
        %v2612 = vunpack.c.l.b16 %v2578
        %v2613 = vunpack.c.l.b16 %v2582
        %v2614 = vunpack.c.l.b16 %v2586
        %v2615 = vunpack.c.l.b16 %v2590
        %v2616 = vunpack.c.l.b16 %v2594
        %v2617 = vunpack.c.l.b16 %v2598
        %v2618 = vunpack.c.l.b16 %v2602
        %v2619 = vunpack.c.l.b16 %v2606
        %v2620 = vpack.c.b16 %v2613, %v2612
        %v2621 = vpack.c.b16 %v2615, %v2614
        %v2622 = vpack.c.b16 %v2617, %v2616
        %v2623 = vpack.c.b16 %v2619, %v2618
        %v2628 = vunpack.c.l.b16 %v2608
        %v2629 = vunpack.c.l.b16 %v2609
        %v2630 = vunpack.c.l.b16 %v2610
        %v2631 = vunpack.c.l.b16 %v2611
        %v2632 = vpack.c.b16 %v2629, %v2628
        %v2633 = vpack.c.b16 %v2631, %v2630
        %v2637 = vsel %vm814, %v2620, 0
        %v2640 = vsel %vm814, %v2621, 0
        %v2643 = vsel %vm814, %v2622, 0
        %v2646 = vsel %vm814, %v2623, 0
        %2648 = vmatprep.subr.bf16.mxu0 0
        %2649 = vmatpush1.bf16.msra.mxu0 %v2632
        %2650 = vmatprep.subr.bf16.mxu0 0
        %2651 = vmatpush1.bf16.msra.mxu0 %v2633
        %2652 = vmatprep.subr.bf16.mxu0 0
        %2653 = vmatpush1.bf16.msra.mxu0 0
        %2654 = vmatprep.subr.bf16.mxu0 0
        %2655 = vmatpush1.bf16.msra.mxu0 0
        %2656 = vmatprep.subr.bf16.mxu0 0
        %2657 = vmatpush1.bf16.msra.mxu0 0
        %2658 = vmatprep.subr.bf16.mxu0 0
        %2659 = vmatpush1.bf16.msra.mxu0 0
        %2660 = vmatprep.subr.bf16.mxu0 0
        %2661 = vmatpush1.bf16.msra.mxu0 0
        %2662 = vmatprep.subr.bf16.mxu0 0
        %2663 = vmatpush1.bf16.msra.mxu0 0
        %2664 = vmatprep.subr.bf16.mxu0 0
        %2665 = vmatpush1.bf16.msra.mxu0 0
        %2666 = vmatprep.subr.bf16.mxu0 0
        %2667 = vmatpush1.bf16.msra.mxu0 0
        %2668 = vmatprep.subr.bf16.mxu0 0
        %2669 = vmatpush1.bf16.msra.mxu0 0
        %2670 = vmatprep.subr.bf16.mxu0 0
        %2671 = vmatpush1.bf16.msra.mxu0 0
        %2672 = vmatprep.subr.bf16.mxu0 0
        %2673 = vmatpush1.bf16.msra.mxu0 0
        %2674 = vmatprep.subr.bf16.mxu0 0
        %2675 = vmatpush1.bf16.msra.mxu0 0
        %2676 = vmatprep.subr.bf16.mxu0 0
        %2677 = vmatpush1.bf16.msra.mxu0 0
        %2678 = vmatprep.subr.bf16.mxu0 0
        %2679 = vmatpush1.bf16.msra.mxu0 0
        %2680 = vmatprep.mubr.bf16.mxu0 0
        %2681 = vmatmul.mubr.bf16.gmra.mrb[0].mxu0 %v2637
        %v2682 = vpop.f32.mrb[0].mxu0
        %v2683 = vadd.f32 0.0, %v2682
        %v2684 = vpop.f32.mrb[0].mxu0
        %v2685 = vpop.f32.mrb[0].mxu0
        %v2686 = vadd.f32 0.0, %v2685
        %v2687 = vpop.f32.mrb[0].mxu0
        %2688 = vmatprep.mubr.bf16.mxu0 0
        %2689 = vmatmul.mubr.bf16.gmra.mrb[0].mxu0 %v2640
        %v2690 = vpop.f32.mrb[0].mxu0
        %v2691 = vadd.f32 0.0, %v2690
        %v2692 = vpop.f32.mrb[0].mxu0
        %v2693 = vpop.f32.mrb[0].mxu0
        %v2694 = vadd.f32 0.0, %v2693
        %v2695 = vpop.f32.mrb[0].mxu0
        %2696 = vmatprep.mubr.bf16.mxu0 0
        %2697 = vmatmul.mubr.bf16.gmra.mrb[0].mxu0 %v2643
        %v2698 = vpop.f32.mrb[0].mxu0
        %v2699 = vadd.f32 0.0, %v2698
        %v2700 = vpop.f32.mrb[0].mxu0
        %v2701 = vpop.f32.mrb[0].mxu0
        %v2702 = vadd.f32 0.0, %v2701
        %v2703 = vpop.f32.mrb[0].mxu0
        %2704 = vmatprep.mubr.bf16.mxu0 0
        %2705 = vmatmul.mubr.bf16.gmra.mrb[0].mxu0 %v2646
        %v2706 = vpop.f32.mrb[0].mxu0
        %v2707 = vadd.f32 0.0, %v2706
        %v2708 = vpop.f32.mrb[0].mxu0
        %v2709 = vpop.f32.mrb[0].mxu0
        %v2710 = vadd.f32 0.0, %v2709
        %v2711 = vpop.f32.mrb[0].mxu0
        %2712 = vdwg.mxu0
        %v2713 = vadd.f32 %v2543, %v2683
        %v2714 = vadd.f32 %v2544, %v2686
        %v2715 = vadd.f32 %v2545, %v2691
        %v2716 = vadd.f32 %v2546, %v2694
        %v2717 = vadd.f32 %v2547, %v2699
        %v2718 = vadd.f32 %v2548, %v2702
        %v2719 = vadd.f32 %v2549, %v2707
        %v2720 = vadd.f32 %v2550, %v2710
        %s2721 = scalar_lea.vmem [#allocation3], 16
        %v2722 = vld [vmem:[%s2721] sm:$0xf]
        %v2723 = vld [vmem:[%s2721 + $0x8] sm:$0xf]
        %v2724 = vld [vmem:[%s2721 + $0x10] sm:$0xf]
        %v2725 = vld [vmem:[%s2721 + $0x18] sm:$0xf]
        %v2726 = vld [vmem:[%s2721 + $0x20] sm:$0xf]
        %v2727 = vld [vmem:[%s2721 + $0x28] sm:$0xf]
        %v2728 = vld [vmem:[%s2721 + $0x30] sm:$0xf]
        %v2729 = vld [vmem:[%s2721 + $0x38] sm:$0xf]
        %s2730 = scalar_lea.vmem %s3, 96
        %v2731 = vld [vmem:[%s2730] sm:$0xf]
        %v2732 = vld [vmem:[%s2730 + $0x4] sm:$0xf]
        %v2733 = vld [vmem:[%s2730 + $0x8] sm:$0xf]
        %v2734 = vld [vmem:[%s2730 + $0xc] sm:$0xf]
        %v2743 = vunpack.c.l.b16 %v2722
        %v2744 = vunpack.c.l.b16 %v2723
        %v2745 = vunpack.c.l.b16 %v2724
        %v2746 = vunpack.c.l.b16 %v2725
        %v2747 = vunpack.c.l.b16 %v2726
        %v2748 = vunpack.c.l.b16 %v2727
        %v2749 = vunpack.c.l.b16 %v2728
        %v2750 = vunpack.c.l.b16 %v2729
        %v2751 = vpack.c.b16 %v2744, %v2743
        %v2752 = vpack.c.b16 %v2746, %v2745
        %v2753 = vpack.c.b16 %v2748, %v2747
        %v2754 = vpack.c.b16 %v2750, %v2749
        %v2759 = vunpack.c.l.b16 %v2731
        %v2760 = vunpack.c.l.b16 %v2732
        %v2761 = vunpack.c.l.b16 %v2733
        %v2762 = vunpack.c.l.b16 %v2734
        %v2763 = vpack.c.b16 %v2760, %v2759
        %v2764 = vpack.c.b16 %v2762, %v2761
        %v2768 = vsel %vm814, %v2751, 0
        %v2771 = vsel %vm814, %v2752, 0
        %v2774 = vsel %vm814, %v2753, 0
        %v2777 = vsel %vm814, %v2754, 0
        %2779 = vmatprep.subr.bf16.mxu0 0
        %2780 = vmatpush1.bf16.msra.mxu0 %v2763
        %2781 = vmatprep.subr.bf16.mxu0 0
        %2782 = vmatpush1.bf16.msra.mxu0 %v2764
        %2783 = vmatprep.subr.bf16.mxu0 0
        %2784 = vmatpush1.bf16.msra.mxu0 0
        %2785 = vmatprep.subr.bf16.mxu0 0
        %2786 = vmatpush1.bf16.msra.mxu0 0
        %2787 = vmatprep.subr.bf16.mxu0 0
        %2788 = vmatpush1.bf16.msra.mxu0 0
        %2789 = vmatprep.subr.bf16.mxu0 0
        %2790 = vmatpush1.bf16.msra.mxu0 0
        %2791 = vmatprep.subr.bf16.mxu0 0
        %2792 = vmatpush1.bf16.msra.mxu0 0
        %2793 = vmatprep.subr.bf16.mxu0 0
        %2794 = vmatpush1.bf16.msra.mxu0 0
        %2795 = vmatprep.subr.bf16.mxu0 0
        %2796 = vmatpush1.bf16.msra.mxu0 0
        %2797 = vmatprep.subr.bf16.mxu0 0
        %2798 = vmatpush1.bf16.msra.mxu0 0
        %2799 = vmatprep.subr.bf16.mxu0 0
        %2800 = vmatpush1.bf16.msra.mxu0 0
        %2801 = vmatprep.subr.bf16.mxu0 0
        %2802 = vmatpush1.bf16.msra.mxu0 0
        %2803 = vmatprep.subr.bf16.mxu0 0
        %2804 = vmatpush1.bf16.msra.mxu0 0
        %2805 = vmatprep.subr.bf16.mxu0 0
        %2806 = vmatpush1.bf16.msra.mxu0 0
        %2807 = vmatprep.subr.bf16.mxu0 0
        %2808 = vmatpush1.bf16.msra.mxu0 0
        %2809 = vmatprep.subr.bf16.mxu0 0
        %2810 = vmatpush1.bf16.msra.mxu0 0
        %2811 = vmatprep.mubr.bf16.mxu0 0
        %2812 = vmatmul.mubr.bf16.gmra.mrb[0].mxu0 %v2768
        %v2813 = vpop.f32.mrb[0].mxu0
        %v2814 = vadd.f32 0.0, %v2813
        %v2815 = vpop.f32.mrb[0].mxu0
        %v2816 = vpop.f32.mrb[0].mxu0
        %v2817 = vadd.f32 0.0, %v2816
        %v2818 = vpop.f32.mrb[0].mxu0
        %2819 = vmatprep.mubr.bf16.mxu0 0
        %2820 = vmatmul.mubr.bf16.gmra.mrb[0].mxu0 %v2771
        %v2821 = vpop.f32.mrb[0].mxu0
        %v2822 = vadd.f32 0.0, %v2821
        %v2823 = vpop.f32.mrb[0].mxu0
        %v2824 = vpop.f32.mrb[0].mxu0
        %v2825 = vadd.f32 0.0, %v2824
        %v2826 = vpop.f32.mrb[0].mxu0
        %2827 = vmatprep.mubr.bf16.mxu0 0
        %2828 = vmatmul.mubr.bf16.gmra.mrb[0].mxu0 %v2774
        %v2829 = vpop.f32.mrb[0].mxu0
        %v2830 = vadd.f32 0.0, %v2829
        %v2831 = vpop.f32.mrb[0].mxu0
        %v2832 = vpop.f32.mrb[0].mxu0
        %v2833 = vadd.f32 0.0, %v2832
        %v2834 = vpop.f32.mrb[0].mxu0
        %2835 = vmatprep.mubr.bf16.mxu0 0
        %2836 = vmatmul.mubr.bf16.gmra.mrb[0].mxu0 %v2777
        %v2837 = vpop.f32.mrb[0].mxu0
        %v2838 = vadd.f32 0.0, %v2837
        %v2839 = vpop.f32.mrb[0].mxu0
        %v2840 = vpop.f32.mrb[0].mxu0
        %v2841 = vadd.f32 0.0, %v2840
        %v2842 = vpop.f32.mrb[0].mxu0
        %2843 = vdwg.mxu0
        %v2844 = vadd.f32 %v2713, %v2814
        %v2845 = vadd.f32 %v2714, %v2817
        %v2846 = vadd.f32 %v2715, %v2822
        %v2847 = vadd.f32 %v2716, %v2825
        %v2848 = vadd.f32 %v2717, %v2830
        %v2849 = vadd.f32 %v2718, %v2833
        %v2850 = vadd.f32 %v2719, %v2838
        %v2851 = vadd.f32 %v2720, %v2841
        %v2852 = vld [vmem:[%s2721] sm:$0xf]
        %v2853 = vld [vmem:[%s2721 + $0x4] sm:$0x1]
        %v2854 = vld [vmem:[%s2721 + $0x8] sm:$0xf]
        %v2855 = vld [vmem:[%s2721 + $0xc] sm:$0x1]
        %v2856 = vld [vmem:[%s2721 + $0x10] sm:$0xf]
        %v2857 = vld [vmem:[%s2721 + $0x14] sm:$0x1]
        %v2858 = vld [vmem:[%s2721 + $0x18] sm:$0xf]
        %v2859 = vld [vmem:[%s2721 + $0x1c] sm:$0x1]
        %v2860 = vld [vmem:[%s2721 + $0x20] sm:$0xf]
        %v2861 = vld [vmem:[%s2721 + $0x24] sm:$0x1]
        %v2862 = vld [vmem:[%s2721 + $0x28] sm:$0xf]
        %v2863 = vld [vmem:[%s2721 + $0x2c] sm:$0x1]
        %v2864 = vld [vmem:[%s2721 + $0x30] sm:$0xf]
        %v2865 = vld [vmem:[%s2721 + $0x34] sm:$0x1]
        %v2866 = vld [vmem:[%s2721 + $0x38] sm:$0xf]
        %v2867 = vld [vmem:[%s2721 + $0x3c] sm:$0x1]
        %v2869 = vshrl.u32 %v2852, 16
        %v2871 = vrot.slane %v2869, 4
        %v2872 = vshll.u32 %v2852, 16
        %v2874 = vrot.slane %v2872, 5
        %v2875 = vor.u32 %v2871, %v2874
        %v2876 = vrot.slane %v2875, 4
        %v2878 = vshll.u32 %v2853, 16
        %v2880 = vrot.slane %v2878, 5
        %v2881 = vsel %vm672, %v2876, %v2880
        %v2883 = vshrl.u32 %v2854, 16
        %v2885 = vrot.slane %v2883, 4
        %v2886 = vshll.u32 %v2854, 16
        %v2888 = vrot.slane %v2886, 5
        %v2889 = vor.u32 %v2885, %v2888
        %v2890 = vrot.slane %v2889, 4
        %v2892 = vshll.u32 %v2855, 16
        %v2894 = vrot.slane %v2892, 5
        %v2895 = vsel %vm672, %v2890, %v2894
        %v2897 = vshrl.u32 %v2856, 16
        %v2899 = vrot.slane %v2897, 4
        %v2900 = vshll.u32 %v2856, 16
        %v2902 = vrot.slane %v2900, 5
        %v2903 = vor.u32 %v2899, %v2902
        %v2904 = vrot.slane %v2903, 4
        %v2906 = vshll.u32 %v2857, 16
        %v2908 = vrot.slane %v2906, 5
        %v2909 = vsel %vm672, %v2904, %v2908
        %v2911 = vshrl.u32 %v2858, 16
        %v2913 = vrot.slane %v2911, 4
        %v2914 = vshll.u32 %v2858, 16
        %v2916 = vrot.slane %v2914, 5
        %v2917 = vor.u32 %v2913, %v2916
        %v2918 = vrot.slane %v2917, 4
        %v2920 = vshll.u32 %v2859, 16
        %v2922 = vrot.slane %v2920, 5
        %v2923 = vsel %vm672, %v2918, %v2922
        %v2925 = vshrl.u32 %v2860, 16
        %v2927 = vrot.slane %v2925, 4
        %v2928 = vshll.u32 %v2860, 16
        %v2930 = vrot.slane %v2928, 5
        %v2931 = vor.u32 %v2927, %v2930
        %v2932 = vrot.slane %v2931, 4
        %v2934 = vshll.u32 %v2861, 16
        %v2936 = vrot.slane %v2934, 5
        %v2937 = vsel %vm672, %v2932, %v2936
        %v2939 = vshrl.u32 %v2862, 16
        %v2941 = vrot.slane %v2939, 4
        %v2942 = vshll.u32 %v2862, 16
        %v2944 = vrot.slane %v2942, 5
        %v2945 = vor.u32 %v2941, %v2944
        %v2946 = vrot.slane %v2945, 4
        %v2948 = vshll.u32 %v2863, 16
        %v2950 = vrot.slane %v2948, 5
        %v2951 = vsel %vm672, %v2946, %v2950
        %v2953 = vshrl.u32 %v2864, 16
        %v2955 = vrot.slane %v2953, 4
        %v2956 = vshll.u32 %v2864, 16
        %v2958 = vrot.slane %v2956, 5
        %v2959 = vor.u32 %v2955, %v2958
        %v2960 = vrot.slane %v2959, 4
        %v2962 = vshll.u32 %v2865, 16
        %v2964 = vrot.slane %v2962, 5
        %v2965 = vsel %vm672, %v2960, %v2964
        %v2967 = vshrl.u32 %v2866, 16
        %v2969 = vrot.slane %v2967, 4
        %v2970 = vshll.u32 %v2866, 16
        %v2972 = vrot.slane %v2970, 5
        %v2973 = vor.u32 %v2969, %v2972
        %v2974 = vrot.slane %v2973, 4
        %v2976 = vshll.u32 %v2867, 16
        %v2978 = vrot.slane %v2976, 5
        %v2979 = vsel %vm672, %v2974, %v2978
        %s2980 = scalar_lea.vmem %s3, 112
        %v2981 = vld [vmem:[%s2980] sm:$0xf]
        %v2982 = vld [vmem:[%s2980 + $0x4] sm:$0xf]
        %v2983 = vld [vmem:[%s2980 + $0x8] sm:$0xf]
        %v2984 = vld [vmem:[%s2980 + $0xc] sm:$0xf]
        %v2985 = vunpack.c.l.b16 %v2881
        %v2986 = vunpack.c.l.b16 %v2895
        %v2987 = vunpack.c.l.b16 %v2909
        %v2988 = vunpack.c.l.b16 %v2923
        %v2989 = vunpack.c.l.b16 %v2937
        %v2990 = vunpack.c.l.b16 %v2951
        %v2991 = vunpack.c.l.b16 %v2965
        %v2992 = vunpack.c.l.b16 %v2979
        %v2993 = vpack.c.b16 %v2986, %v2985
        %v2994 = vpack.c.b16 %v2988, %v2987
        %v2995 = vpack.c.b16 %v2990, %v2989
        %v2996 = vpack.c.b16 %v2992, %v2991
        %v3001 = vunpack.c.l.b16 %v2981
        %v3002 = vunpack.c.l.b16 %v2982
        %v3003 = vunpack.c.l.b16 %v2983
        %v3004 = vunpack.c.l.b16 %v2984
        %v3005 = vpack.c.b16 %v3002, %v3001
        %v3006 = vpack.c.b16 %v3004, %v3003
        %v3010 = vsel %vm814, %v2993, 0
        %v3013 = vsel %vm814, %v2994, 0
        %v3016 = vsel %vm814, %v2995, 0
        %v3019 = vsel %vm814, %v2996, 0
        %3021 = vmatprep.subr.bf16.mxu0 0
        %3022 = vmatpush1.bf16.msra.mxu0 %v3005
        %3023 = vmatprep.subr.bf16.mxu0 0
        %3024 = vmatpush1.bf16.msra.mxu0 %v3006
        %3025 = vmatprep.subr.bf16.mxu0 0
        %3026 = vmatpush1.bf16.msra.mxu0 0
        %3027 = vmatprep.subr.bf16.mxu0 0
        %3028 = vmatpush1.bf16.msra.mxu0 0
        %3029 = vmatprep.subr.bf16.mxu0 0
        %3030 = vmatpush1.bf16.msra.mxu0 0
        %3031 = vmatprep.subr.bf16.mxu0 0
        %3032 = vmatpush1.bf16.msra.mxu0 0
        %3033 = vmatprep.subr.bf16.mxu0 0
        %3034 = vmatpush1.bf16.msra.mxu0 0
        %3035 = vmatprep.subr.bf16.mxu0 0
        %3036 = vmatpush1.bf16.msra.mxu0 0
        %3037 = vmatprep.subr.bf16.mxu0 0
        %3038 = vmatpush1.bf16.msra.mxu0 0
        %3039 = vmatprep.subr.bf16.mxu0 0
        %3040 = vmatpush1.bf16.msra.mxu0 0
        %3041 = vmatprep.subr.bf16.mxu0 0
        %3042 = vmatpush1.bf16.msra.mxu0 0
        %3043 = vmatprep.subr.bf16.mxu0 0
        %3044 = vmatpush1.bf16.msra.mxu0 0
        %3045 = vmatprep.subr.bf16.mxu0 0
        %3046 = vmatpush1.bf16.msra.mxu0 0
        %3047 = vmatprep.subr.bf16.mxu0 0
        %3048 = vmatpush1.bf16.msra.mxu0 0
        %3049 = vmatprep.subr.bf16.mxu0 0
        %3050 = vmatpush1.bf16.msra.mxu0 0
        %3051 = vmatprep.subr.bf16.mxu0 0
        %3052 = vmatpush1.bf16.msra.mxu0 0
        %3053 = vmatprep.mubr.bf16.mxu0 0
        %3054 = vmatmul.mubr.bf16.gmra.mrb[0].mxu0 %v3010
        %v3055 = vpop.f32.mrb[0].mxu0
        %v3056 = vadd.f32 0.0, %v3055
        %v3057 = vpop.f32.mrb[0].mxu0
        %v3058 = vpop.f32.mrb[0].mxu0
        %v3059 = vadd.f32 0.0, %v3058
        %v3060 = vpop.f32.mrb[0].mxu0
        %3061 = vmatprep.mubr.bf16.mxu0 0
        %3062 = vmatmul.mubr.bf16.gmra.mrb[0].mxu0 %v3013
        %v3063 = vpop.f32.mrb[0].mxu0
        %v3064 = vadd.f32 0.0, %v3063
        %v3065 = vpop.f32.mrb[0].mxu0
        %v3066 = vpop.f32.mrb[0].mxu0
        %v3067 = vadd.f32 0.0, %v3066
        %v3068 = vpop.f32.mrb[0].mxu0
        %3069 = vmatprep.mubr.bf16.mxu0 0
        %3070 = vmatmul.mubr.bf16.gmra.mrb[0].mxu0 %v3016
        %v3071 = vpop.f32.mrb[0].mxu0
        %v3072 = vadd.f32 0.0, %v3071
        %v3073 = vpop.f32.mrb[0].mxu0
        %v3074 = vpop.f32.mrb[0].mxu0
        %v3075 = vadd.f32 0.0, %v3074
        %v3076 = vpop.f32.mrb[0].mxu0
        %3077 = vmatprep.mubr.bf16.mxu0 0
        %3078 = vmatmul.mubr.bf16.gmra.mrb[0].mxu0 %v3019
        %v3079 = vpop.f32.mrb[0].mxu0
        %v3080 = vadd.f32 0.0, %v3079
        %v3081 = vpop.f32.mrb[0].mxu0
        %v3082 = vpop.f32.mrb[0].mxu0
        %v3083 = vadd.f32 0.0, %v3082
        %v3084 = vpop.f32.mrb[0].mxu0
        %3085 = vdwg.mxu0
        %v3086 = vadd.f32 %v2844, %v3056
        %v3087 = vadd.f32 %v2845, %v3059
        %v3088 = vadd.f32 %v2846, %v3064
        %v3089 = vadd.f32 %v2847, %v3067
        %v3090 = vadd.f32 %v2848, %v3072
        %v3091 = vadd.f32 %v2849, %v3075
        %v3092 = vadd.f32 %v2850, %v3080
        %v3093 = vadd.f32 %v2851, %v3083
        %v3094 = vld [vmem:[%s2721] sm:$0xe]
        %v3095 = vld [vmem:[%s2721 + $0x8] sm:$0xe]
        %v3096 = vld [vmem:[%s2721 + $0x10] sm:$0xe]
        %v3097 = vld [vmem:[%s2721 + $0x18] sm:$0xe]
        %v3098 = vld [vmem:[%s2721 + $0x20] sm:$0xe]
        %v3099 = vld [vmem:[%s2721 + $0x28] sm:$0xe]
        %v3100 = vld [vmem:[%s2721 + $0x30] sm:$0xe]
        %v3101 = vld [vmem:[%s2721 + $0x38] sm:$0xe]
        %v3118 = vrot.slane %v3094, 5
        %v3119 = vrot.slane %v3118, 4
        %v3120 = vrot.slane %v2853, 5
        %v3121 = vsel %vm2032, %v3119, %v3120
        %v3122 = vrot.slane %v3095, 5
        %v3123 = vrot.slane %v3122, 4
        %v3124 = vrot.slane %v2855, 5
        %v3125 = vsel %vm2032, %v3123, %v3124
        %v3126 = vrot.slane %v3096, 5
        %v3127 = vrot.slane %v3126, 4
        %v3128 = vrot.slane %v2857, 5
        %v3129 = vsel %vm2032, %v3127, %v3128
        %v3130 = vrot.slane %v3097, 5
        %v3131 = vrot.slane %v3130, 4
        %v3132 = vrot.slane %v2859, 5
        %v3133 = vsel %vm2032, %v3131, %v3132
        %v3134 = vrot.slane %v3098, 5
        %v3135 = vrot.slane %v3134, 4
        %v3136 = vrot.slane %v2861, 5
        %v3137 = vsel %vm2032, %v3135, %v3136
        %v3138 = vrot.slane %v3099, 5
        %v3139 = vrot.slane %v3138, 4
        %v3140 = vrot.slane %v2863, 5
        %v3141 = vsel %vm2032, %v3139, %v3140
        %v3142 = vrot.slane %v3100, 5
        %v3143 = vrot.slane %v3142, 4
        %v3144 = vrot.slane %v2865, 5
        %v3145 = vsel %vm2032, %v3143, %v3144
        %v3146 = vrot.slane %v3101, 5
        %v3147 = vrot.slane %v3146, 4
        %v3148 = vrot.slane %v2867, 5
        %v3149 = vsel %vm2032, %v3147, %v3148
        %s3150 = scalar_lea.vmem %s3, 128
        %v3151 = vld [vmem:[%s3150] sm:$0xf]
        %v3152 = vld [vmem:[%s3150 + $0x4] sm:$0xf]
        %v3153 = vld [vmem:[%s3150 + $0x8] sm:$0xf]
        %v3154 = vld [vmem:[%s3150 + $0xc] sm:$0xf]
        %v3155 = vunpack.c.l.b16 %v3121
        %v3156 = vunpack.c.l.b16 %v3125
        %v3157 = vunpack.c.l.b16 %v3129
        %v3158 = vunpack.c.l.b16 %v3133
        %v3159 = vunpack.c.l.b16 %v3137
        %v3160 = vunpack.c.l.b16 %v3141
        %v3161 = vunpack.c.l.b16 %v3145
        %v3162 = vunpack.c.l.b16 %v3149
        %v3163 = vpack.c.b16 %v3156, %v3155
        %v3164 = vpack.c.b16 %v3158, %v3157
        %v3165 = vpack.c.b16 %v3160, %v3159
        %v3166 = vpack.c.b16 %v3162, %v3161
        %v3171 = vunpack.c.l.b16 %v3151
        %v3172 = vunpack.c.l.b16 %v3152
        %v3173 = vunpack.c.l.b16 %v3153
        %v3174 = vunpack.c.l.b16 %v3154
        %v3175 = vpack.c.b16 %v3172, %v3171
        %v3176 = vpack.c.b16 %v3174, %v3173
        %v3180 = vsel %vm814, %v3163, 0
        %v3183 = vsel %vm814, %v3164, 0
        %v3186 = vsel %vm814, %v3165, 0
        %v3189 = vsel %vm814, %v3166, 0
        %3191 = vmatprep.subr.bf16.mxu0 0
        %3192 = vmatpush1.bf16.msra.mxu0 %v3175
        %3193 = vmatprep.subr.bf16.mxu0 0
        %3194 = vmatpush1.bf16.msra.mxu0 %v3176
        %3195 = vmatprep.subr.bf16.mxu0 0
        %3196 = vmatpush1.bf16.msra.mxu0 0
        %3197 = vmatprep.subr.bf16.mxu0 0
        %3198 = vmatpush1.bf16.msra.mxu0 0
        %3199 = vmatprep.subr.bf16.mxu0 0
        %3200 = vmatpush1.bf16.msra.mxu0 0
        %3201 = vmatprep.subr.bf16.mxu0 0
        %3202 = vmatpush1.bf16.msra.mxu0 0
        %3203 = vmatprep.subr.bf16.mxu0 0
        %3204 = vmatpush1.bf16.msra.mxu0 0
        %3205 = vmatprep.subr.bf16.mxu0 0
        %3206 = vmatpush1.bf16.msra.mxu0 0
        %3207 = vmatprep.subr.bf16.mxu0 0
        %3208 = vmatpush1.bf16.msra.mxu0 0
        %3209 = vmatprep.subr.bf16.mxu0 0
        %3210 = vmatpush1.bf16.msra.mxu0 0
        %3211 = vmatprep.subr.bf16.mxu0 0
        %3212 = vmatpush1.bf16.msra.mxu0 0
        %3213 = vmatprep.subr.bf16.mxu0 0
        %3214 = vmatpush1.bf16.msra.mxu0 0
        %3215 = vmatprep.subr.bf16.mxu0 0
        %3216 = vmatpush1.bf16.msra.mxu0 0
        %3217 = vmatprep.subr.bf16.mxu0 0
        %3218 = vmatpush1.bf16.msra.mxu0 0
        %3219 = vmatprep.subr.bf16.mxu0 0
        %3220 = vmatpush1.bf16.msra.mxu0 0
        %3221 = vmatprep.subr.bf16.mxu0 0
        %3222 = vmatpush1.bf16.msra.mxu0 0
        %3223 = vmatprep.mubr.bf16.mxu0 0
        %3224 = vmatmul.mubr.bf16.gmra.mrb[0].mxu0 %v3180
        %v3225 = vpop.f32.mrb[0].mxu0
        %v3226 = vadd.f32 0.0, %v3225
        %v3227 = vpop.f32.mrb[0].mxu0
        %v3228 = vpop.f32.mrb[0].mxu0
        %v3229 = vadd.f32 0.0, %v3228
        %v3230 = vpop.f32.mrb[0].mxu0
        %3231 = vmatprep.mubr.bf16.mxu0 0
        %3232 = vmatmul.mubr.bf16.gmra.mrb[0].mxu0 %v3183
        %v3233 = vpop.f32.mrb[0].mxu0
        %v3234 = vadd.f32 0.0, %v3233
        %v3235 = vpop.f32.mrb[0].mxu0
        %v3236 = vpop.f32.mrb[0].mxu0
        %v3237 = vadd.f32 0.0, %v3236
        %v3238 = vpop.f32.mrb[0].mxu0
        %3239 = vmatprep.mubr.bf16.mxu0 0
        %3240 = vmatmul.mubr.bf16.gmra.mrb[0].mxu0 %v3186
        %v3241 = vpop.f32.mrb[0].mxu0
        %v3242 = vadd.f32 0.0, %v3241
        %v3243 = vpop.f32.mrb[0].mxu0
        %v3244 = vpop.f32.mrb[0].mxu0
        %v3245 = vadd.f32 0.0, %v3244
        %v3246 = vpop.f32.mrb[0].mxu0
        %3247 = vmatprep.mubr.bf16.mxu0 0
        %3248 = vmatmul.mubr.bf16.gmra.mrb[0].mxu0 %v3189
        %v3249 = vpop.f32.mrb[0].mxu0
        %v3250 = vadd.f32 0.0, %v3249
        %v3251 = vpop.f32.mrb[0].mxu0
        %v3252 = vpop.f32.mrb[0].mxu0
        %v3253 = vadd.f32 0.0, %v3252
        %v3254 = vpop.f32.mrb[0].mxu0
        %3255 = vdwg.mxu0
        %v3256 = vadd.f32 %v3086, %v3226
        %v3257 = vadd.f32 %v3087, %v3229
        %v3258 = vadd.f32 %v3088, %v3234
        %v3259 = vadd.f32 %v3089, %v3237
        %v3260 = vadd.f32 %v3090, %v3242
        %v3261 = vadd.f32 %v3091, %v3245
        %v3262 = vadd.f32 %v3092, %v3250
        %v3263 = vadd.f32 %v3093, %v3253
        %3264 = vst.msk [vmem:[%s367] sm:$0xff] %vm1489, %v3256
        %3265 = vst.msk [vmem:[%s367 + $0x8] sm:$0xff] %vm1489, %v3257
        %3266 = vst.msk [vmem:[%s367 + $0x10] sm:$0xff] %vm1489, %v3258
        %3267 = vst.msk [vmem:[%s367 + $0x18] sm:$0xff] %vm1489, %v3259
        %3268 = vst.msk [vmem:[%s367 + $0x20] sm:$0xff] %vm1489, %v3260
        %3269 = vst.msk [vmem:[%s367 + $0x28] sm:$0xff] %vm1489, %v3261
        %3270 = vst.msk [vmem:[%s367 + $0x30] sm:$0xff] %vm1489, %v3262
        %3271 = vst.msk [vmem:[%s367 + $0x38] sm:$0xff] %vm1489, %v3263
        %s3272 = sand.u32 %s252, 1
        %s3273 = scalar_lea.sflag [#allocation5], %s3272
        %s3274 = sand.u32 %s252, 1
        %s3275 = smul.addr %s3274, 64
        %s3276 = scalar_lea.vmem [#allocation4], %s3275
        // Predicated region
        $region61: #{tpu_custom_call.1} parent=59 // pred_check
          %p3277 = pneg %p262
        $region62: #{tpu_custom_call.1} parent=59 // pred_check_branch
          %3279 = sbr.rel (%p3277) target = $region64
        $region63: #{tpu_custom_call.1} parent=59 // pred_region
          %s3281 = ssub.s32 1024, 1024
          %3282 = vsyncadd %s3273, %s3281
          %s3283 = smul.addr %s24, 8
          %s3284 = smul.addr %s3283, 128
          %s3285 = scalar_lea.hbm %s10, %s3284
          %s3286 = sshll.u32 %s3276, 4
          %s3287 = int_to_ptr.vmem [resolvable:$true] %s3286
          %3292 = dma.vmem_to_hbm [thread:$0]  %s3287, 1024, %s3285, %s3273, 128, 128, 8
        $region64: #{tpu_custom_call.1} parent=59 // pred_fallthru
          _
      $region60: #{tpu_custom_call.1} parent=5 // pred_fallthru
        _
      %p3293 = scmp.le.s32.totalorder 2, %s19
      // Predicated region
      $region65: #{tpu_custom_call.1} parent=5 // pred_check
        %p3294 = pneg %p3293
      $region66: #{tpu_custom_call.1} parent=5 // pred_check_branch
        %3296 = sbr.rel (%p3294) target = $region68
      $region67: #{tpu_custom_call.1} parent=5 // pred_region
        %s3297 = ssub.s32 %s19, 2
        // Predicated region
        $region69: #{tpu_custom_call.1} parent=67 // pred_check
          %p3298 = pneg %p268
        $region70: #{tpu_custom_call.1} parent=67 // pred_check_branch
          %3300 = sbr.rel (%p3298) target = $region72
        $region71: #{tpu_custom_call.1} parent=67 // pred_region
          %s3301 = sand.u32 %s253, 1
          %s3302 = scalar_lea.sflag [#allocation5], %s3301
          %s3303 = sand.u32 %s253, 1
          %s3304 = smul.addr %s3303, 64
          %s3305 = scalar_lea.vmem [#allocation4], %s3304
          %3306 = dma.done %s3302, 1024
        $region72: #{tpu_custom_call.1} parent=67 // pred_fallthru
          _
      $region68: #{tpu_custom_call.1} parent=5 // pred_fallthru
        _
    $region6: #{tpu_custom_call.1} parent=1 // loop_footer
      %s23 = sadd.s32 1, %s19
    $region7: #{tpu_custom_call.1} parent=1 // loop_footer_branch
      %18 = sbr.rel target = $region3
    $region8: #{tpu_custom_call.1} parent=1 // loop_exit
      _
    %3307 = vsyncpa [#allocation5], 1
    %s3308 = scalar_lea.sflag [#allocation5], 1
    %3309 = vsyncpa %s3308, 1

</llo_original>
